<compile_context>
chip_gen: v6e
topology: v6e:2x2x1
jax: 0.10.0
libtpu: 0.0.40
codegen_flags: <defaults>
</compile_context>

<pallas_src>
import numpy as np
import jax
import jax.numpy as jnp
from jax.experimental import pallas as pl
from jax.experimental.pallas import tpu as pltpu


# ----------------------------- the fused kernel -----------------------------

def _lenet5_kernel(x_ref, band1_ref, b1_ref, sh1_ref, sw1_ref,
                   band2_ref, b2_ref, sh2_ref, sw2_ref,
                   g1_ref, fb1_ref, fc2_ref, fb2_ref, fc3_ref, fb3_ref,
                   o_ref):
    f32 = jnp.float32
    x = x_ref[0]                                           # (32, 32)  one image

    # ---- conv1 (1->6, k5) + tanh.  h1[i, j*6+co], lane-dense (168 lanes). ----
    # conv expressed as sum over kh of (x @ banded_weight)[kh:kh+28, :]
    h1 = jnp.zeros((28, 168), f32)
    for kh in range(5):
        y = jnp.dot(x, band1_ref[kh], preferred_element_type=f32)   # (32, 168)
        h1 = h1 + y[kh:kh + 28, :]
    h1 = jnp.tanh(h1 + b1_ref[...])

    # ---- pool1 (2x2 avg, stride 2) as two matmuls: rows then columns. ----
    p1 = jnp.dot(jnp.dot(sh1_ref[...], h1, preferred_element_type=f32),
                 sw1_ref[...], preferred_element_type=f32)          # (14, 84)

    # ---- conv2 (6->16, k5) + tanh.  h2[i, j*16+co] (160 lanes). ----
    h2 = jnp.zeros((10, 160), f32)
    for kh in range(5):
        y = jnp.dot(p1, band2_ref[kh], preferred_element_type=f32)  # (14, 160)
        h2 = h2 + y[kh:kh + 10, :]
    h2 = jnp.tanh(h2 + b2_ref[...])

    # ---- pool2 ----
    p2 = jnp.dot(jnp.dot(sh2_ref[...], h2, preferred_element_type=f32),
                 sw2_ref[...], preferred_element_type=f32)          # (5, 80)

    # ---- fc1 (PyTorch 16*5*5 NCHW-flatten folded into g1's row permutation) ----
    f = jnp.zeros((1, 120), f32)
    for a in range(5):
        f = f + jnp.dot(p2[a:a + 1, :], g1_ref[a], preferred_element_type=f32)
    f = jnp.tanh(f + fb1_ref[...])

    # ---- fc2, fc3 ----
    f = jnp.tanh(jnp.dot(f, fc2_ref[...], preferred_element_type=f32) + fb2_ref[...])
    f = jnp.tanh(jnp.dot(f, fc3_ref[...], preferred_element_type=f32) + fb3_ref[...])

    # ---- softmax (nn.Softmax on 2-D input -> dim=1) ----
    m = jnp.max(f, axis=-1, keepdims=True)
    e = jnp.exp(f - m)
    o_ref[0] = e * pl.reciprocal(jnp.sum(e, axis=-1, keepdims=True), approx=True)


# -------------------- one-time weight repacking (off hot path) --------------------

def init_params(key):
    """PyTorch-layout LeNet-5 parameters (same init style as nn.Conv2d/Linear)."""
    def uniform(key, shape, fan_in):
        bound = 1.0 / jnp.sqrt(fan_in)
        return jax.random.uniform(key, shape, jnp.float32, -bound, bound)

    keys = jax.random.split(key, 10)
    return {
        "conv1_w": uniform(keys[0], (6, 1, 5, 5), 1 * 5 * 5),
        "conv1_b": uniform(keys[1], (6,), 1 * 5 * 5),
        "conv2_w": uniform(keys[2], (16, 6, 5, 5), 6 * 5 * 5),
        "conv2_b": uniform(keys[3], (16,), 6 * 5 * 5),
        "fc1_w": uniform(keys[4], (120, 400), 400),
        "fc1_b": uniform(keys[5], (120,), 400),
        "fc2_w": uniform(keys[6], (84, 120), 120),
        "fc2_b": uniform(keys[7], (84,), 120),
        "fc3_w": uniform(keys[8], (10, 84), 84),
        "fc3_b": uniform(keys[9], (10,), 84),
    }


def _pool_rows(n):
    """(n//2, n) matrix: left-multiplying averages row pairs (factor 0.5)."""
    m = np.zeros((n // 2, n), np.float32)
    r = np.arange(n // 2)
    m[r, 2 * r] = 0.5
    m[r, 2 * r + 1] = 0.5
    return m


def _pool_cols(w_in, c):
    """(w_in*c, (w_in//2)*c): right-multiplying averages column pairs per channel."""
    m = np.zeros((w_in * c, (w_in // 2) * c), np.float32)
    for b in range(w_in // 2):
        for db in range(2):
            for ch in range(c):
                m[(2 * b + db) * c + ch, b * c + ch] = 0.5
    return m


def prepare_params(params):
    """Repack PyTorch-layout weights into the kernel's operands (runs once)."""
    f32 = jnp.float32
    w1 = params["conv1_w"].astype(f32)
    b1 = params["conv1_b"].astype(f32)
    w2 = params["conv2_w"].astype(f32)
    b2 = params["conv2_b"].astype(f32)
    f1w = params["fc1_w"].astype(f32)

    # conv1 banded matrices: band1[kh, j+kw, j*6+co] = w1[co, 0, kh, kw]
    kh, j, kw, co = np.meshgrid(np.arange(5), np.arange(28), np.arange(5),
                                np.arange(6), indexing="ij")
    band1 = jnp.zeros((5, 32, 168), f32).at[
        kh.ravel(), (j + kw).ravel(), (j * 6 + co).ravel()
    ].set(w1[co.ravel(), 0, kh.ravel(), kw.ravel()])

    # conv2 banded matrices: band2[kh, (j+kw)*6+ci, j*16+co] = w2[co, ci, kh, kw]
    kh, j, kw, ci, co = np.meshgrid(np.arange(5), np.arange(10), np.arange(5),
                                    np.arange(6), np.arange(16), indexing="ij")
    band2 = jnp.zeros((5, 84, 160), f32).at[
        kh.ravel(), ((j + kw) * 6 + ci).ravel(), (j * 16 + co).ravel()
    ].set(w2[co.ravel(), ci.ravel(), kh.ravel(), kw.ravel()])

    # fc1 regrouped per pooled row a: g1[a, b*16+co, o] = fc1_w[o, co*25 + a*5 + b]
    # (this folds the PyTorch view(-1, 16*5*5) NCHW-flatten into the weights)
    a, b, co, o = np.meshgrid(np.arange(5), np.arange(5), np.arange(16),
                              np.arange(120), indexing="ij")
    g1 = jnp.zeros((5, 80, 120), f32).at[
        a.ravel(), (b * 16 + co).ravel(), o.ravel()
    ].set(f1w[o.ravel(), co.ravel() * 25 + a.ravel() * 5 + b.ravel()])

    return dict(
        band1=band1,
        b1=jnp.tile(b1, 28).reshape(1, 168),
        sh1=jnp.asarray(_pool_rows(28)),          # (14, 28)
        sw1=jnp.asarray(_pool_cols(28, 6)),       # (168, 84)
        band2=band2,
        b2=jnp.tile(b2, 10).reshape(1, 160),
        sh2=jnp.asarray(_pool_rows(10)),          # (5, 10)
        sw2=jnp.asarray(_pool_cols(10, 16)),      # (160, 80)
        g1=g1,
        fb1=params["fc1_b"].reshape(1, 120).astype(f32),
        fc2=params["fc2_w"].astype(f32).T,        # (120, 84)
        fb2=params["fc2_b"].reshape(1, 84).astype(f32),
        fc3=params["fc3_w"].astype(f32).T,        # (84, 10)
        fb3=params["fc3_b"].reshape(1, 10).astype(f32),
    )


# ----------------------------- forward pass ---------------------------------

@jax.jit
def lenet5_forward(x, prep):
    # x: (B, 1, 32, 32) NCHW float32
    B = x.shape[0]
    x2 = x.astype(jnp.float32).reshape(B, 32, 32)    # C == 1: free reshape

    c2 = lambda b: (0, 0)
    c3 = lambda b: (0, 0, 0)
    out = pl.pallas_call(
        _lenet5_kernel,
        out_shape=jax.ShapeDtypeStruct((B, 1, 10), jnp.float32),
        grid=(B,),
        in_specs=[
            pl.BlockSpec((1, 32, 32), lambda b: (b, 0, 0)),   # x (one image/step)
            pl.BlockSpec((5, 32, 168), c3),                   # band1
            pl.BlockSpec((1, 168), c2),                       # conv1 bias row
            pl.BlockSpec((14, 28), c2),                       # pool1 rows
            pl.BlockSpec((168, 84), c2),                      # pool1 cols
            pl.BlockSpec((5, 84, 160), c3),                   # band2
            pl.BlockSpec((1, 160), c2),                       # conv2 bias row
            pl.BlockSpec((5, 10), c2),                        # pool2 rows
            pl.BlockSpec((160, 80), c2),                      # pool2 cols
            pl.BlockSpec((5, 80, 120), c3),                   # fc1 (permuted)
            pl.BlockSpec((1, 120), c2),                       # fc1 bias
            pl.BlockSpec((120, 84), c2),                      # fc2 weight
            pl.BlockSpec((1, 84), c2),                        # fc2 bias
            pl.BlockSpec((84, 10), c2),                       # fc3 weight
            pl.BlockSpec((1, 10), c2),                        # fc3 bias
        ],
        out_specs=pl.BlockSpec((1, 1, 10), lambda b: (b, 0, 0)),
        compiler_params=pltpu.CompilerParams(
            dimension_semantics=("parallel",)),               # megacore on v7x
    )(x2, prep["band1"], prep["b1"], prep["sh1"], prep["sw1"],
      prep["band2"], prep["b2"], prep["sh2"], prep["sw2"],
      prep["g1"], prep["fb1"], prep["fc2"], prep["fb2"],
      prep["fc3"], prep["fb3"])
    return out.reshape(B, 10)


# ----------------------------- numpy reference -------------------------------

def reference_forward(x, params):
    x = np.asarray(x, np.float64)
    w1 = np.asarray(params["conv1_w"], np.float64)
    b1 = np.asarray(params["conv1_b"], np.float64)
    w2 = np.asarray(params["conv2_w"], np.float64)
    b2 = np.asarray(params["conv2_b"], np.float64)
    f1w = np.asarray(params["fc1_w"], np.float64); f1b = np.asarray(params["fc1_b"], np.float64)
    f2w = np.asarray(params["fc2_w"], np.float64); f2b = np.asarray(params["fc2_b"], np.float64)
    f3w = np.asarray(params["fc3_w"], np.float64); f3b = np.asarray(params["fc3_b"], np.float64)

    def conv(a, w, b):
        B, C, H, W = a.shape
        O, _, k, _ = w.shape
        Ho, Wo = H - k + 1, W - k + 1
        out = np.zeros((B, O, Ho, Wo))
        for kh in range(k):
            for kw in range(k):
                out += np.einsum("bchw,oc->bohw",
                                 a[:, :, kh:kh + Ho, kw:kw + Wo], w[:, :, kh, kw])
        return out + b[None, :, None, None]

    def pool(a):
        return 0.25 * (a[:, :, 0::2, 0::2] + a[:, :, 0::2, 1::2]
                       + a[:, :, 1::2, 0::2] + a[:, :, 1::2, 1::2])

    y = pool(np.tanh(conv(x, w1, b1)))
    y = pool(np.tanh(conv(y, w2, b2)))
    f = y.reshape(x.shape[0], 400)
    f = np.tanh(f @ f1w.T + f1b)
    f = np.tanh(f @ f2w.T + f2b)
    f = np.tanh(f @ f3w.T + f3b)
    e = np.exp(f - f.max(axis=1, keepdims=True))
    return e / e.sum(axis=1, keepdims=True)


# ----------------------------------- main ------------------------------------

if __name__ == "__main__":
    key = jax.random.PRNGKey(0)
    k_params, k_x = jax.random.split(key)
    params = init_params(k_params)
    prep = prepare_params(params)     # one-time weight repacking (off the hot path)

    # LeNet-5 needs 32x32 spatial input for the 16*5*5 flatten; batch = 2.
    x = jax.random.normal(k_x, (2, 1, 32, 32), dtype=jnp.float32)

    out = lenet5_forward(x, prep)
    out = jax.block_until_ready(out)

    assert out.shape == (2, 10)
    assert bool(jnp.all(jnp.isfinite(out)))
    # rows are softmax distributions (approx reciprocal -> loose tolerance)
    assert bool(jnp.allclose(jnp.sum(out, axis=-1), 1.0, atol=2e-3))

    # check against a float64 numpy reference of the PyTorch module
    ref = reference_forward(x, params)
    assert float(np.max(np.abs(np.asarray(out, np.float64) - ref))) < 2e-3

    print("KERNEL_OK")
</pallas_src>

<mosaic_0001>
module attributes {stable_mosaic.version = 11 : i64} {
  func.func @_lenet5_kernel(%arg0: i32, %arg1: memref<1x32x32xf32, #tpu.memory_space<vmem>>, %arg2: memref<5x32x168xf32, #tpu.memory_space<vmem>>, %arg3: memref<1x168xf32, #tpu.memory_space<vmem>>, %arg4: memref<14x28xf32, #tpu.memory_space<vmem>>, %arg5: memref<168x84xf32, #tpu.memory_space<vmem>>, %arg6: memref<5x84x160xf32, #tpu.memory_space<vmem>>, %arg7: memref<1x160xf32, #tpu.memory_space<vmem>>, %arg8: memref<5x10xf32, #tpu.memory_space<vmem>>, %arg9: memref<160x80xf32, #tpu.memory_space<vmem>>, %arg10: memref<5x80x120xf32, #tpu.memory_space<vmem>>, %arg11: memref<1x120xf32, #tpu.memory_space<vmem>>, %arg12: memref<120x84xf32, #tpu.memory_space<vmem>>, %arg13: memref<1x84xf32, #tpu.memory_space<vmem>>, %arg14: memref<84x10xf32, #tpu.memory_space<vmem>>, %arg15: memref<1x10xf32, #tpu.memory_space<vmem>>, %arg16: memref<1x1x10xf32, #tpu.memory_space<vmem>>) attributes {dimension_semantics = [#tpu.dimension_semantics<parallel>], iteration_bounds = array<i64: 2>, scalar_prefetch = 0 : i64, scratch_operands = 0 : i64, tpu.core_type = #tpu.core_type<tc>, window_params = [{transform_indices = @transform_0, window_bounds = array<i64: 1, 32, 32>}, {pipeline_mode = #tpu.pipeline_mode<synchronous>, transform_indices = @transform_1, window_bounds = array<i64: 5, 32, 168>}, {pipeline_mode = #tpu.pipeline_mode<synchronous>, transform_indices = @transform_2, window_bounds = array<i64: 1, 168>}, {pipeline_mode = #tpu.pipeline_mode<synchronous>, transform_indices = @transform_3, window_bounds = array<i64: 14, 28>}, {pipeline_mode = #tpu.pipeline_mode<synchronous>, transform_indices = @transform_4, window_bounds = array<i64: 168, 84>}, {pipeline_mode = #tpu.pipeline_mode<synchronous>, transform_indices = @transform_5, window_bounds = array<i64: 5, 84, 160>}, {pipeline_mode = #tpu.pipeline_mode<synchronous>, transform_indices = @transform_6, window_bounds = array<i64: 1, 160>}, {pipeline_mode = #tpu.pipeline_mode<synchronous>, transform_indices = @transform_7, window_bounds = array<i64: 5, 10>}, {pipeline_mode = #tpu.pipeline_mode<synchronous>, transform_indices = @transform_8, window_bounds = array<i64: 160, 80>}, {pipeline_mode = #tpu.pipeline_mode<synchronous>, transform_indices = @transform_9, window_bounds = array<i64: 5, 80, 120>}, {pipeline_mode = #tpu.pipeline_mode<synchronous>, transform_indices = @transform_10, window_bounds = array<i64: 1, 120>}, {pipeline_mode = #tpu.pipeline_mode<synchronous>, transform_indices = @transform_11, window_bounds = array<i64: 120, 84>}, {pipeline_mode = #tpu.pipeline_mode<synchronous>, transform_indices = @transform_12, window_bounds = array<i64: 1, 84>}, {pipeline_mode = #tpu.pipeline_mode<synchronous>, transform_indices = @transform_13, window_bounds = array<i64: 84, 10>}, {pipeline_mode = #tpu.pipeline_mode<synchronous>, transform_indices = @transform_14, window_bounds = array<i64: 1, 10>}, {transform_indices = @transform_15, window_bounds = array<i64: 1, 1, 10>}]} {
    %c0 = arith.constant 0 : index
    %c0_0 = arith.constant 0 : index
    %c0_1 = arith.constant 0 : index
    %0 = vector.load %arg1[%c0, %c0_0, %c0_1] : memref<1x32x32xf32, #tpu.memory_space<vmem>>, vector<1x32x32xf32>
    %1 = vector.shape_cast %0 : vector<1x32x32xf32> to vector<32x32xf32>
    %cst = arith.constant 0.000000e+00 : f32
    %2 = vector.broadcast %cst : f32 to vector<28x168xf32>
    %c0_2 = arith.constant 0 : index
    %c0_3 = arith.constant 0 : index
    %c0_4 = arith.constant 0 : index
    %3 = vector.load %arg2[%c0_2, %c0_3, %c0_4] : memref<5x32x168xf32, #tpu.memory_space<vmem>>, vector<1x32x168xf32>
    %4 = vector.shape_cast %3 : vector<1x32x168xf32> to vector<32x168xf32>
    %cst_5 = arith.constant dense<0.000000e+00> : vector<32x168xf32>
    %5 = tpu.matmul %1, %4, %cst_5 {dimension_numbers = #tpu.dot_dimension_numbers<[1], [0], [0], [1], [0, 0, 1, 1], [], []>} : vector<32x32xf32>, vector<32x168xf32>, vector<32x168xf32> -> vector<32x168xf32>
    %6 = vector.extract_strided_slice %5 {offsets = [0, 0], sizes = [28, 168], strides = [1, 1]} : vector<32x168xf32> to vector<28x168xf32>
    %7 = arith.addf %2, %6 : vector<28x168xf32>
    %c1 = arith.constant 1 : index
    %c0_6 = arith.constant 0 : index
    %c0_7 = arith.constant 0 : index
    %8 = vector.load %arg2[%c1, %c0_6, %c0_7] : memref<5x32x168xf32, #tpu.memory_space<vmem>>, vector<1x32x168xf32>
    %9 = vector.shape_cast %8 : vector<1x32x168xf32> to vector<32x168xf32>
    %cst_8 = arith.constant dense<0.000000e+00> : vector<32x168xf32>
    %10 = tpu.matmul %1, %9, %cst_8 {dimension_numbers = #tpu.dot_dimension_numbers<[1], [0], [0], [1], [0, 0, 1, 1], [], []>} : vector<32x32xf32>, vector<32x168xf32>, vector<32x168xf32> -> vector<32x168xf32>
    %11 = vector.extract_strided_slice %10 {offsets = [1, 0], sizes = [28, 168], strides = [1, 1]} : vector<32x168xf32> to vector<28x168xf32>
    %12 = arith.addf %7, %11 : vector<28x168xf32>
    %c2 = arith.constant 2 : index
    %c0_9 = arith.constant 0 : index
    %c0_10 = arith.constant 0 : index
    %13 = vector.load %arg2[%c2, %c0_9, %c0_10] : memref<5x32x168xf32, #tpu.memory_space<vmem>>, vector<1x32x168xf32>
    %14 = vector.shape_cast %13 : vector<1x32x168xf32> to vector<32x168xf32>
    %cst_11 = arith.constant dense<0.000000e+00> : vector<32x168xf32>
    %15 = tpu.matmul %1, %14, %cst_11 {dimension_numbers = #tpu.dot_dimension_numbers<[1], [0], [0], [1], [0, 0, 1, 1], [], []>} : vector<32x32xf32>, vector<32x168xf32>, vector<32x168xf32> -> vector<32x168xf32>
    %16 = vector.extract_strided_slice %15 {offsets = [2, 0], sizes = [28, 168], strides = [1, 1]} : vector<32x168xf32> to vector<28x168xf32>
    %17 = arith.addf %12, %16 : vector<28x168xf32>
    %c3 = arith.constant 3 : index
    %c0_12 = arith.constant 0 : index
    %c0_13 = arith.constant 0 : index
    %18 = vector.load %arg2[%c3, %c0_12, %c0_13] : memref<5x32x168xf32, #tpu.memory_space<vmem>>, vector<1x32x168xf32>
    %19 = vector.shape_cast %18 : vector<1x32x168xf32> to vector<32x168xf32>
    %cst_14 = arith.constant dense<0.000000e+00> : vector<32x168xf32>
    %20 = tpu.matmul %1, %19, %cst_14 {dimension_numbers = #tpu.dot_dimension_numbers<[1], [0], [0], [1], [0, 0, 1, 1], [], []>} : vector<32x32xf32>, vector<32x168xf32>, vector<32x168xf32> -> vector<32x168xf32>
    %21 = vector.extract_strided_slice %20 {offsets = [3, 0], sizes = [28, 168], strides = [1, 1]} : vector<32x168xf32> to vector<28x168xf32>
    %22 = arith.addf %17, %21 : vector<28x168xf32>
    %c4 = arith.constant 4 : index
    %c0_15 = arith.constant 0 : index
    %c0_16 = arith.constant 0 : index
    %23 = vector.load %arg2[%c4, %c0_15, %c0_16] : memref<5x32x168xf32, #tpu.memory_space<vmem>>, vector<1x32x168xf32>
    %24 = vector.shape_cast %23 : vector<1x32x168xf32> to vector<32x168xf32>
    %cst_17 = arith.constant dense<0.000000e+00> : vector<32x168xf32>
    %25 = tpu.matmul %1, %24, %cst_17 {dimension_numbers = #tpu.dot_dimension_numbers<[1], [0], [0], [1], [0, 0, 1, 1], [], []>} : vector<32x32xf32>, vector<32x168xf32>, vector<32x168xf32> -> vector<32x168xf32>
    %26 = vector.extract_strided_slice %25 {offsets = [4, 0], sizes = [28, 168], strides = [1, 1]} : vector<32x168xf32> to vector<28x168xf32>
    %27 = arith.addf %22, %26 : vector<28x168xf32>
    %c0_18 = arith.constant 0 : index
    %c0_19 = arith.constant 0 : index
    %28 = vector.load %arg3[%c0_18, %c0_19] : memref<1x168xf32, #tpu.memory_space<vmem>>, vector<1x168xf32>
    %29 = vector.broadcast %28 : vector<1x168xf32> to vector<28x168xf32>
    %30 = arith.addf %27, %29 : vector<28x168xf32>
    %31 = math.tanh %30 : vector<28x168xf32>
    %c0_20 = arith.constant 0 : index
    %c0_21 = arith.constant 0 : index
    %32 = vector.load %arg4[%c0_20, %c0_21] : memref<14x28xf32, #tpu.memory_space<vmem>>, vector<14x28xf32>
    %cst_22 = arith.constant dense<0.000000e+00> : vector<14x168xf32>
    %33 = tpu.matmul %32, %31, %cst_22 {dimension_numbers = #tpu.dot_dimension_numbers<[1], [0], [0], [1], [0, 0, 1, 1], [], []>} : vector<14x28xf32>, vector<28x168xf32>, vector<14x168xf32> -> vector<14x168xf32>
    %c0_23 = arith.constant 0 : index
    %c0_24 = arith.constant 0 : index
    %34 = vector.load %arg5[%c0_23, %c0_24] : memref<168x84xf32, #tpu.memory_space<vmem>>, vector<168x84xf32>
    %cst_25 = arith.constant dense<0.000000e+00> : vector<14x84xf32>
    %35 = tpu.matmul %33, %34, %cst_25 {dimension_numbers = #tpu.dot_dimension_numbers<[1], [0], [0], [1], [0, 0, 1, 1], [], []>} : vector<14x168xf32>, vector<168x84xf32>, vector<14x84xf32> -> vector<14x84xf32>
    %cst_26 = arith.constant 0.000000e+00 : f32
    %36 = vector.broadcast %cst_26 : f32 to vector<10x160xf32>
    %c0_27 = arith.constant 0 : index
    %c0_28 = arith.constant 0 : index
    %c0_29 = arith.constant 0 : index
    %37 = vector.load %arg6[%c0_27, %c0_28, %c0_29] : memref<5x84x160xf32, #tpu.memory_space<vmem>>, vector<1x84x160xf32>
    %38 = vector.shape_cast %37 : vector<1x84x160xf32> to vector<84x160xf32>
    %cst_30 = arith.constant dense<0.000000e+00> : vector<14x160xf32>
    %39 = tpu.matmul %35, %38, %cst_30 {dimension_numbers = #tpu.dot_dimension_numbers<[1], [0], [0], [1], [0, 0, 1, 1], [], []>} : vector<14x84xf32>, vector<84x160xf32>, vector<14x160xf32> -> vector<14x160xf32>
    %40 = vector.extract_strided_slice %39 {offsets = [0, 0], sizes = [10, 160], strides = [1, 1]} : vector<14x160xf32> to vector<10x160xf32>
    %41 = arith.addf %36, %40 : vector<10x160xf32>
    %c1_31 = arith.constant 1 : index
    %c0_32 = arith.constant 0 : index
    %c0_33 = arith.constant 0 : index
    %42 = vector.load %arg6[%c1_31, %c0_32, %c0_33] : memref<5x84x160xf32, #tpu.memory_space<vmem>>, vector<1x84x160xf32>
    %43 = vector.shape_cast %42 : vector<1x84x160xf32> to vector<84x160xf32>
    %cst_34 = arith.constant dense<0.000000e+00> : vector<14x160xf32>
    %44 = tpu.matmul %35, %43, %cst_34 {dimension_numbers = #tpu.dot_dimension_numbers<[1], [0], [0], [1], [0, 0, 1, 1], [], []>} : vector<14x84xf32>, vector<84x160xf32>, vector<14x160xf32> -> vector<14x160xf32>
    %45 = vector.extract_strided_slice %44 {offsets = [1, 0], sizes = [10, 160], strides = [1, 1]} : vector<14x160xf32> to vector<10x160xf32>
    %46 = arith.addf %41, %45 : vector<10x160xf32>
    %c2_35 = arith.constant 2 : index
    %c0_36 = arith.constant 0 : index
    %c0_37 = arith.constant 0 : index
    %47 = vector.load %arg6[%c2_35, %c0_36, %c0_37] : memref<5x84x160xf32, #tpu.memory_space<vmem>>, vector<1x84x160xf32>
    %48 = vector.shape_cast %47 : vector<1x84x160xf32> to vector<84x160xf32>
    %cst_38 = arith.constant dense<0.000000e+00> : vector<14x160xf32>
    %49 = tpu.matmul %35, %48, %cst_38 {dimension_numbers = #tpu.dot_dimension_numbers<[1], [0], [0], [1], [0, 0, 1, 1], [], []>} : vector<14x84xf32>, vector<84x160xf32>, vector<14x160xf32> -> vector<14x160xf32>
    %50 = vector.extract_strided_slice %49 {offsets = [2, 0], sizes = [10, 160], strides = [1, 1]} : vector<14x160xf32> to vector<10x160xf32>
    %51 = arith.addf %46, %50 : vector<10x160xf32>
    %c3_39 = arith.constant 3 : index
    %c0_40 = arith.constant 0 : index
    %c0_41 = arith.constant 0 : index
    %52 = vector.load %arg6[%c3_39, %c0_40, %c0_41] : memref<5x84x160xf32, #tpu.memory_space<vmem>>, vector<1x84x160xf32>
    %53 = vector.shape_cast %52 : vector<1x84x160xf32> to vector<84x160xf32>
    %cst_42 = arith.constant dense<0.000000e+00> : vector<14x160xf32>
    %54 = tpu.matmul %35, %53, %cst_42 {dimension_numbers = #tpu.dot_dimension_numbers<[1], [0], [0], [1], [0, 0, 1, 1], [], []>} : vector<14x84xf32>, vector<84x160xf32>, vector<14x160xf32> -> vector<14x160xf32>
    %55 = vector.extract_strided_slice %54 {offsets = [3, 0], sizes = [10, 160], strides = [1, 1]} : vector<14x160xf32> to vector<10x160xf32>
    %56 = arith.addf %51, %55 : vector<10x160xf32>
    %c4_43 = arith.constant 4 : index
    %c0_44 = arith.constant 0 : index
    %c0_45 = arith.constant 0 : index
    %57 = vector.load %arg6[%c4_43, %c0_44, %c0_45] : memref<5x84x160xf32, #tpu.memory_space<vmem>>, vector<1x84x160xf32>
    %58 = vector.shape_cast %57 : vector<1x84x160xf32> to vector<84x160xf32>
    %cst_46 = arith.constant dense<0.000000e+00> : vector<14x160xf32>
    %59 = tpu.matmul %35, %58, %cst_46 {dimension_numbers = #tpu.dot_dimension_numbers<[1], [0], [0], [1], [0, 0, 1, 1], [], []>} : vector<14x84xf32>, vector<84x160xf32>, vector<14x160xf32> -> vector<14x160xf32>
    %60 = vector.extract_strided_slice %59 {offsets = [4, 0], sizes = [10, 160], strides = [1, 1]} : vector<14x160xf32> to vector<10x160xf32>
    %61 = arith.addf %56, %60 : vector<10x160xf32>
    %c0_47 = arith.constant 0 : index
    %c0_48 = arith.constant 0 : index
    %62 = vector.load %arg7[%c0_47, %c0_48] : memref<1x160xf32, #tpu.memory_space<vmem>>, vector<1x160xf32>
    %63 = vector.broadcast %62 : vector<1x160xf32> to vector<10x160xf32>
    %64 = arith.addf %61, %63 : vector<10x160xf32>
    %65 = math.tanh %64 : vector<10x160xf32>
    %c0_49 = arith.constant 0 : index
    %c0_50 = arith.constant 0 : index
    %66 = vector.load %arg8[%c0_49, %c0_50] : memref<5x10xf32, #tpu.memory_space<vmem>>, vector<5x10xf32>
    %cst_51 = arith.constant dense<0.000000e+00> : vector<5x160xf32>
    %67 = tpu.matmul %66, %65, %cst_51 {dimension_numbers = #tpu.dot_dimension_numbers<[1], [0], [0], [1], [0, 0, 1, 1], [], []>} : vector<5x10xf32>, vector<10x160xf32>, vector<5x160xf32> -> vector<5x160xf32>
    %c0_52 = arith.constant 0 : index
    %c0_53 = arith.constant 0 : index
    %68 = vector.load %arg9[%c0_52, %c0_53] : memref<160x80xf32, #tpu.memory_space<vmem>>, vector<160x80xf32>
    %cst_54 = arith.constant dense<0.000000e+00> : vector<5x80xf32>
    %69 = tpu.matmul %67, %68, %cst_54 {dimension_numbers = #tpu.dot_dimension_numbers<[1], [0], [0], [1], [0, 0, 1, 1], [], []>} : vector<5x160xf32>, vector<160x80xf32>, vector<5x80xf32> -> vector<5x80xf32>
    %cst_55 = arith.constant 0.000000e+00 : f32
    %70 = vector.broadcast %cst_55 : f32 to vector<1x120xf32>
    %71 = vector.extract_strided_slice %69 {offsets = [0, 0], sizes = [1, 80], strides = [1, 1]} : vector<5x80xf32> to vector<1x80xf32>
    %c0_56 = arith.constant 0 : index
    %c0_57 = arith.constant 0 : index
    %c0_58 = arith.constant 0 : index
    %72 = vector.load %arg10[%c0_56, %c0_57, %c0_58] : memref<5x80x120xf32, #tpu.memory_space<vmem>>, vector<1x80x120xf32>
    %73 = vector.shape_cast %72 : vector<1x80x120xf32> to vector<80x120xf32>
    %cst_59 = arith.constant dense<0.000000e+00> : vector<1x120xf32>
    %74 = tpu.matmul %71, %73, %cst_59 {dimension_numbers = #tpu.dot_dimension_numbers<[1], [0], [0], [1], [0, 0, 1, 1], [], []>} : vector<1x80xf32>, vector<80x120xf32>, vector<1x120xf32> -> vector<1x120xf32>
    %75 = arith.addf %70, %74 : vector<1x120xf32>
    %76 = vector.extract_strided_slice %69 {offsets = [1, 0], sizes = [1, 80], strides = [1, 1]} : vector<5x80xf32> to vector<1x80xf32>
    %c1_60 = arith.constant 1 : index
    %c0_61 = arith.constant 0 : index
    %c0_62 = arith.constant 0 : index
    %77 = vector.load %arg10[%c1_60, %c0_61, %c0_62] : memref<5x80x120xf32, #tpu.memory_space<vmem>>, vector<1x80x120xf32>
    %78 = vector.shape_cast %77 : vector<1x80x120xf32> to vector<80x120xf32>
    %cst_63 = arith.constant dense<0.000000e+00> : vector<1x120xf32>
    %79 = tpu.matmul %76, %78, %cst_63 {dimension_numbers = #tpu.dot_dimension_numbers<[1], [0], [0], [1], [0, 0, 1, 1], [], []>} : vector<1x80xf32>, vector<80x120xf32>, vector<1x120xf32> -> vector<1x120xf32>
    %80 = arith.addf %75, %79 : vector<1x120xf32>
    %81 = vector.extract_strided_slice %69 {offsets = [2, 0], sizes = [1, 80], strides = [1, 1]} : vector<5x80xf32> to vector<1x80xf32>
    %c2_64 = arith.constant 2 : index
    %c0_65 = arith.constant 0 : index
    %c0_66 = arith.constant 0 : index
    %82 = vector.load %arg10[%c2_64, %c0_65, %c0_66] : memref<5x80x120xf32, #tpu.memory_space<vmem>>, vector<1x80x120xf32>
    %83 = vector.shape_cast %82 : vector<1x80x120xf32> to vector<80x120xf32>
    %cst_67 = arith.constant dense<0.000000e+00> : vector<1x120xf32>
    %84 = tpu.matmul %81, %83, %cst_67 {dimension_numbers = #tpu.dot_dimension_numbers<[1], [0], [0], [1], [0, 0, 1, 1], [], []>} : vector<1x80xf32>, vector<80x120xf32>, vector<1x120xf32> -> vector<1x120xf32>
    %85 = arith.addf %80, %84 : vector<1x120xf32>
    %86 = vector.extract_strided_slice %69 {offsets = [3, 0], sizes = [1, 80], strides = [1, 1]} : vector<5x80xf32> to vector<1x80xf32>
    %c3_68 = arith.constant 3 : index
    %c0_69 = arith.constant 0 : index
    %c0_70 = arith.constant 0 : index
    %87 = vector.load %arg10[%c3_68, %c0_69, %c0_70] : memref<5x80x120xf32, #tpu.memory_space<vmem>>, vector<1x80x120xf32>
    %88 = vector.shape_cast %87 : vector<1x80x120xf32> to vector<80x120xf32>
    %cst_71 = arith.constant dense<0.000000e+00> : vector<1x120xf32>
    %89 = tpu.matmul %86, %88, %cst_71 {dimension_numbers = #tpu.dot_dimension_numbers<[1], [0], [0], [1], [0, 0, 1, 1], [], []>} : vector<1x80xf32>, vector<80x120xf32>, vector<1x120xf32> -> vector<1x120xf32>
    %90 = arith.addf %85, %89 : vector<1x120xf32>
    %91 = vector.extract_strided_slice %69 {offsets = [4, 0], sizes = [1, 80], strides = [1, 1]} : vector<5x80xf32> to vector<1x80xf32>
    %c4_72 = arith.constant 4 : index
    %c0_73 = arith.constant 0 : index
    %c0_74 = arith.constant 0 : index
    %92 = vector.load %arg10[%c4_72, %c0_73, %c0_74] : memref<5x80x120xf32, #tpu.memory_space<vmem>>, vector<1x80x120xf32>
    %93 = vector.shape_cast %92 : vector<1x80x120xf32> to vector<80x120xf32>
    %cst_75 = arith.constant dense<0.000000e+00> : vector<1x120xf32>
    %94 = tpu.matmul %91, %93, %cst_75 {dimension_numbers = #tpu.dot_dimension_numbers<[1], [0], [0], [1], [0, 0, 1, 1], [], []>} : vector<1x80xf32>, vector<80x120xf32>, vector<1x120xf32> -> vector<1x120xf32>
    %95 = arith.addf %90, %94 : vector<1x120xf32>
    %c0_76 = arith.constant 0 : index
    %c0_77 = arith.constant 0 : index
    %96 = vector.load %arg11[%c0_76, %c0_77] : memref<1x120xf32, #tpu.memory_space<vmem>>, vector<1x120xf32>
    %97 = arith.addf %95, %96 : vector<1x120xf32>
    %98 = math.tanh %97 : vector<1x120xf32>
    %c0_78 = arith.constant 0 : index
    %c0_79 = arith.constant 0 : index
    %99 = vector.load %arg12[%c0_78, %c0_79] : memref<120x84xf32, #tpu.memory_space<vmem>>, vector<120x84xf32>
    %cst_80 = arith.constant dense<0.000000e+00> : vector<1x84xf32>
    %100 = tpu.matmul %98, %99, %cst_80 {dimension_numbers = #tpu.dot_dimension_numbers<[1], [0], [0], [1], [0, 0, 1, 1], [], []>} : vector<1x120xf32>, vector<120x84xf32>, vector<1x84xf32> -> vector<1x84xf32>
    %c0_81 = arith.constant 0 : index
    %c0_82 = arith.constant 0 : index
    %101 = vector.load %arg13[%c0_81, %c0_82] : memref<1x84xf32, #tpu.memory_space<vmem>>, vector<1x84xf32>
    %102 = arith.addf %100, %101 : vector<1x84xf32>
    %103 = math.tanh %102 : vector<1x84xf32>
    %c0_83 = arith.constant 0 : index
    %c0_84 = arith.constant 0 : index
    %104 = vector.load %arg14[%c0_83, %c0_84] : memref<84x10xf32, #tpu.memory_space<vmem>>, vector<84x10xf32>
    %cst_85 = arith.constant dense<0.000000e+00> : vector<1x10xf32>
    %105 = tpu.matmul %103, %104, %cst_85 {dimension_numbers = #tpu.dot_dimension_numbers<[1], [0], [0], [1], [0, 0, 1, 1], [], []>} : vector<1x84xf32>, vector<84x10xf32>, vector<1x10xf32> -> vector<1x10xf32>
    %c0_86 = arith.constant 0 : index
    %c0_87 = arith.constant 0 : index
    %106 = vector.load %arg15[%c0_86, %c0_87] : memref<1x10xf32, #tpu.memory_space<vmem>>, vector<1x10xf32>
    %107 = arith.addf %105, %106 : vector<1x10xf32>
    %108 = math.tanh %107 : vector<1x10xf32>
    %cst_88 = arith.constant dense<0xFF800000> : vector<1xf32>
    %109 = vector.multi_reduction <maximumf>, %108, %cst_88 [1] : vector<1x10xf32> to vector<1xf32>
    %110 = vector.shape_cast %109 : vector<1xf32> to vector<1x1xf32>
    %111 = vector.broadcast %110 : vector<1x1xf32> to vector<1x10xf32>
    %112 = arith.subf %108, %111 : vector<1x10xf32>
    %113 = math.exp %112 : vector<1x10xf32>
    %cst_89 = arith.constant dense<0.000000e+00> : vector<1xf32>
    %114 = vector.multi_reduction <add>, %113, %cst_89 [1] : vector<1x10xf32> to vector<1xf32>
    %115 = vector.shape_cast %114 : vector<1xf32> to vector<1x1xf32>
    %116 = tpu.reciprocal %115 {approx = true} : vector<1x1xf32> -> vector<1x1xf32>
    %117 = vector.broadcast %116 : vector<1x1xf32> to vector<1x10xf32>
    %118 = arith.mulf %113, %117 : vector<1x10xf32>
    %c0_90 = arith.constant 0 : index
    %c0_91 = arith.constant 0 : index
    %c0_92 = arith.constant 0 : index
    %119 = vector.load %arg16[%c0_90, %c0_91, %c0_92] : memref<1x1x10xf32, #tpu.memory_space<vmem>>, vector<1x1x10xf32>
    %120 = vector.shape_cast %119 : vector<1x1x10xf32> to vector<1x10xf32>
    %121 = vector.shape_cast %118 : vector<1x10xf32> to vector<1x1x10xf32>
    tpu.vector_store %arg16[%c0_90, %c0_91, %c0_92], %121 {strides = array<i32>} : memref<1x1x10xf32, #tpu.memory_space<vmem>>, vector<1x1x10xf32>,
    return
  }
  func.func @transform_0(%arg0: i32) -> (i32, i32, i32) {
    %c0_i32 = arith.constant 0 : i32
    %c0_i32_0 = arith.constant 0 : i32
    %c0_i32_1 = arith.constant 0 : i32
    return %arg0, %c0_i32, %c0_i32_0 : i32, i32, i32
  }
  func.func @transform_1(%arg0: i32) -> (i32, i32, i32) {
    %c0_i32 = arith.constant 0 : i32
    %c0_i32_0 = arith.constant 0 : i32
    %c0_i32_1 = arith.constant 0 : i32
    %c0_i32_2 = arith.constant 0 : i32
    return %c0_i32, %c0_i32_0, %c0_i32_1 : i32, i32, i32
  }
  func.func @transform_2(%arg0: i32) -> (i32, i32) {
    %c0_i32 = arith.constant 0 : i32
    %c0_i32_0 = arith.constant 0 : i32
    %c0_i32_1 = arith.constant 0 : i32
    return %c0_i32, %c0_i32_0 : i32, i32
  }
  func.func @transform_3(%arg0: i32) -> (i32, i32) {
    %c0_i32 = arith.constant 0 : i32
    %c0_i32_0 = arith.constant 0 : i32
    %c0_i32_1 = arith.constant 0 : i32
    return %c0_i32, %c0_i32_0 : i32, i32
  }
  func.func @transform_4(%arg0: i32) -> (i32, i32) {
    %c0_i32 = arith.constant 0 : i32
    %c0_i32_0 = arith.constant 0 : i32
    %c0_i32_1 = arith.constant 0 : i32
    return %c0_i32, %c0_i32_0 : i32, i32
  }
  func.func @transform_5(%arg0: i32) -> (i32, i32, i32) {
    %c0_i32 = arith.constant 0 : i32
    %c0_i32_0 = arith.constant 0 : i32
    %c0_i32_1 = arith.constant 0 : i32
    %c0_i32_2 = arith.constant 0 : i32
    return %c0_i32, %c0_i32_0, %c0_i32_1 : i32, i32, i32
  }
  func.func @transform_6(%arg0: i32) -> (i32, i32) {
    %c0_i32 = arith.constant 0 : i32
    %c0_i32_0 = arith.constant 0 : i32
    %c0_i32_1 = arith.constant 0 : i32
    return %c0_i32, %c0_i32_0 : i32, i32
  }
  func.func @transform_7(%arg0: i32) -> (i32, i32) {
    %c0_i32 = arith.constant 0 : i32
    %c0_i32_0 = arith.constant 0 : i32
    %c0_i32_1 = arith.constant 0 : i32
    return %c0_i32, %c0_i32_0 : i32, i32
  }
  func.func @transform_8(%arg0: i32) -> (i32, i32) {
    %c0_i32 = arith.constant 0 : i32
    %c0_i32_0 = arith.constant 0 : i32
    %c0_i32_1 = arith.constant 0 : i32
    return %c0_i32, %c0_i32_0 : i32, i32
  }
  func.func @transform_9(%arg0: i32) -> (i32, i32, i32) {
    %c0_i32 = arith.constant 0 : i32
    %c0_i32_0 = arith.constant 0 : i32
    %c0_i32_1 = arith.constant 0 : i32
    %c0_i32_2 = arith.constant 0 : i32
    return %c0_i32, %c0_i32_0, %c0_i32_1 : i32, i32, i32
  }
  func.func @transform_10(%arg0: i32) -> (i32, i32) {
    %c0_i32 = arith.constant 0 : i32
    %c0_i32_0 = arith.constant 0 : i32
    %c0_i32_1 = arith.constant 0 : i32
    return %c0_i32, %c0_i32_0 : i32, i32
  }
  func.func @transform_11(%arg0: i32) -> (i32, i32) {
    %c0_i32 = arith.constant 0 : i32
    %c0_i32_0 = arith.constant 0 : i32
    %c0_i32_1 = arith.constant 0 : i32
    return %c0_i32, %c0_i32_0 : i32, i32
  }
  func.func @transform_12(%arg0: i32) -> (i32, i32) {
    %c0_i32 = arith.constant 0 : i32
    %c0_i32_0 = arith.constant 0 : i32
    %c0_i32_1 = arith.constant 0 : i32
    return %c0_i32, %c0_i32_0 : i32, i32
  }
  func.func @transform_13(%arg0: i32) -> (i32, i32) {
    %c0_i32 = arith.constant 0 : i32
    %c0_i32_0 = arith.constant 0 : i32
    %c0_i32_1 = arith.constant 0 : i32
    return %c0_i32, %c0_i32_0 : i32, i32
  }
  func.func @transform_14(%arg0: i32) -> (i32, i32) {
    %c0_i32 = arith.constant 0 : i32
    %c0_i32_0 = arith.constant 0 : i32
    %c0_i32_1 = arith.constant 0 : i32
    return %c0_i32, %c0_i32_0 : i32, i32
  }
  func.func @transform_15(%arg0: i32) -> (i32, i32, i32) {
    %c0_i32 = arith.constant 0 : i32
    %c0_i32_0 = arith.constant 0 : i32
    %c0_i32_1 = arith.constant 0 : i32
    return %arg0, %c0_i32, %c0_i32_0 : i32, i32, i32
  }
}

</mosaic_0001>

<llo_original>
// kernel: lenet5_forward.1
$region0: #{lenet5_forward.1}
  #allocation0 [shape = 'u32[]', space=smem, size = 0x4, offset = 0x4, fixed_abs, tag = 'smem constant byte address 0x4 - core index']
  #allocation1 [shape = 'u32[144,128]{1,0:T(1,128)}', space=vmem, size = 0x12000, scoped, tag = 'internal scratch']
  %s0 = inlined_call_operand.vmem [shape: f32[2,32,32], index: 0, kind: input, shape index: {}]
  %s1 = inlined_call_operand.vmem [shape: f32[5,32,168], index: 1, kind: input, shape index: {}]
  %s2 = inlined_call_operand.vmem [shape: f32[1,168], index: 2, kind: input, shape index: {}]
  %s3 = inlined_call_operand.vmem [shape: f32[14,28], index: 3, kind: input, shape index: {}]
  %s4 = inlined_call_operand.vmem [shape: f32[168,84], index: 4, kind: input, shape index: {}]
  %s5 = inlined_call_operand.vmem [shape: f32[5,84,160], index: 5, kind: input, shape index: {}]
  %s6 = inlined_call_operand.vmem [shape: f32[1,160], index: 6, kind: input, shape index: {}]
  %s7 = inlined_call_operand.vmem [shape: f32[5,10], index: 7, kind: input, shape index: {}]
  %s8 = inlined_call_operand.vmem [shape: f32[160,80], index: 8, kind: input, shape index: {}]
  %s9 = inlined_call_operand.vmem [shape: f32[5,80,120], index: 9, kind: input, shape index: {}]
  %s10 = inlined_call_operand.vmem [shape: f32[1,120], index: 10, kind: input, shape index: {}]
  %s11 = inlined_call_operand.vmem [shape: f32[120,84], index: 11, kind: input, shape index: {}]
  %s12 = inlined_call_operand.vmem [shape: f32[1,84], index: 12, kind: input, shape index: {}]
  %s13 = inlined_call_operand.vmem [shape: f32[84,10], index: 13, kind: input, shape index: {}]
  %s14 = inlined_call_operand.vmem [shape: f32[1,10], index: 14, kind: input, shape index: {}]
  %s15 = inlined_call_operand.hbm [shape: f32[2,1,10], index: 15, kind: output, shape index: {}]
  %s16 = sld [smem:[#allocation0]]
  $region93: #{lenet5_forward.1} parent=0
    _
  %s18 = ssub.s32 1, %s16
  %s19 = scalar_select 0, %s18, %s16
  $region1: #{lenet5_forward.1} parent=0
    #allocation2 [shape = 'u8[1024]{0}', space=vmem, size = 0x400, scoped, tag = 'output window, operand 0']
    #allocation3 [shape = 's32[2]{0}', space=sflag, size = 0x8, scoped, tag = 'scoped memory for lenet5_forward.1']
    %20 = vsyncpa [#allocation3], 0
    %s21 = scalar_lea.sflag [#allocation3], 1
    %22 = vsyncpa %s21, 0
    loop: start=0, step=1, limit=4
    $region2: #{lenet5_forward.1} parent=1 // loop_pre_header
      _
    $region3: #{lenet5_forward.1} parent=1 // loop_header
      %s24 = sphi 0, %s28
      %p25 = scmp.ge.s32.totalorder %s24, 4
      %s34 = sphi 0, %s36
      %s37 = sphi 0, %s34
      %s38 = sphi 0, %s37
      %s54 = sphi 0, %s38
      %s58 = sphi 0, %s58
      %s60 = sphi 0, %s58
      %s61 = sphi 0, %s60
      %s75 = sphi 0, %s61
      %s79 = sphi 0, %s79
      %s81 = sphi 0, %s79
      %s82 = sphi 0, %s81
      %s96 = sphi 0, %s82
      %s100 = sphi 0, %s100
      %s102 = sphi 0, %s100
      %s103 = sphi 0, %s102
      %s117 = sphi 0, %s103
      %s121 = sphi 0, %s121
      %s123 = sphi 0, %s121
      %s124 = sphi 0, %s123
      %s138 = sphi 0, %s124
      %s142 = sphi 0, %s142
      %s144 = sphi 0, %s142
      %s145 = sphi 0, %s144
      %s159 = sphi 0, %s145
      %s163 = sphi 0, %s163
      %s165 = sphi 0, %s163
      %s166 = sphi 0, %s165
      %s180 = sphi 0, %s166
      %s184 = sphi 0, %s184
      %s186 = sphi 0, %s184
      %s187 = sphi 0, %s186
      %s201 = sphi 0, %s187
      %s205 = sphi 0, %s205
      %s207 = sphi 0, %s205
      %s208 = sphi 0, %s207
      %s222 = sphi 0, %s208
      %s226 = sphi 0, %s226
      %s228 = sphi 0, %s226
      %s229 = sphi 0, %s228
      %s243 = sphi 0, %s229
      %s247 = sphi 0, %s247
      %s249 = sphi 0, %s247
      %s250 = sphi 0, %s249
      %s264 = sphi 0, %s250
      %s268 = sphi 0, %s268
      %s270 = sphi 0, %s268
      %s271 = sphi 0, %s270
      %s285 = sphi 0, %s271
      %s289 = sphi 0, %s289
      %s291 = sphi 0, %s289
      %s292 = sphi 0, %s291
      %s306 = sphi 0, %s292
      %s310 = sphi 0, %s310
      %s312 = sphi 0, %s310
      %s313 = sphi 0, %s312
      %s327 = sphi 0, %s313
      %s331 = sphi 0, %s331
      %s333 = sphi 0, %s331
      %s334 = sphi 0, %s333
      %s348 = sphi 0, %s334
      %s354 = sphi 0, %s356
      %s357 = sphi 0, %s354
      %s358 = sphi 0, %s357
      %s374 = sphi 0, %s358
    $region4: #{lenet5_forward.1} parent=1 // loop_header_branch
      %27 = sbr.rel (%p25) target = $region8
    $region5: #{lenet5_forward.1} parent=1 // loop_body
      %s29 = ssub.s32 %s24, 1
      %s30 = ssub.s32 %s24, 2
      %s31 = sadd.s32 %s24, 1
      %s32 = ssub.s32 %s24, %s31
      %p33 = scmp.eq.s32.totalorder %s32, 0
      %s35 = sadd.s32 %s34, 1
      %s36 = scalar_select %p33, %s34, %s35
      %p39 = pneg %p33
      %p40 = scmp.eq.s32.totalorder %s24, 1
      %p41 = por %p39, %p40
      %p42 = scmp.ne.s32.totalorder %s34, %s37
      %p43 = scmp.eq.s32.totalorder %s24, 0
      %p44 = por %p42, %p43
      %p45 = scmp.ne.s32.totalorder %s34, %s37
      %p46 = scmp.eq.s32.totalorder %s29, 1
      %p47 = por %p45, %p46
      %p48 = scmp.ne.s32.totalorder %s37, %s38
      %p49 = scmp.eq.s32.totalorder %s29, 0
      %p50 = por %p48, %p49
      %p51 = scmp.ne.s32.totalorder %s37, %s38
      %p52 = scmp.eq.s32.totalorder %s30, 1
      %p53 = por %p51, %p52
      %p55 = scmp.ne.s32.totalorder %s38, %s54
      %p56 = scmp.eq.s32.totalorder %s30, 0
      %p57 = por %p55, %p56
      %s59 = sadd.s32 %s58, 1
      %p62 = scmp.eq.s32.totalorder %s24, 1
      %p63 = scmp.ne.s32.totalorder %s58, %s60
      %p64 = scmp.eq.s32.totalorder %s24, 0
      %p65 = por %p63, %p64
      %p66 = scmp.ne.s32.totalorder %s58, %s60
      %p67 = scmp.eq.s32.totalorder %s29, 1
      %p68 = por %p66, %p67
      %p69 = scmp.ne.s32.totalorder %s60, %s61
      %p70 = scmp.eq.s32.totalorder %s29, 0
      %p71 = por %p69, %p70
      %p72 = scmp.ne.s32.totalorder %s60, %s61
      %p73 = scmp.eq.s32.totalorder %s30, 1
      %p74 = por %p72, %p73
      %p76 = scmp.ne.s32.totalorder %s61, %s75
      %p77 = scmp.eq.s32.totalorder %s30, 0
      %p78 = por %p76, %p77
      %s80 = sadd.s32 %s79, 1
      %p83 = scmp.eq.s32.totalorder %s24, 1
      %p84 = scmp.ne.s32.totalorder %s79, %s81
      %p85 = scmp.eq.s32.totalorder %s24, 0
      %p86 = por %p84, %p85
      %p87 = scmp.ne.s32.totalorder %s79, %s81
      %p88 = scmp.eq.s32.totalorder %s29, 1
      %p89 = por %p87, %p88
      %p90 = scmp.ne.s32.totalorder %s81, %s82
      %p91 = scmp.eq.s32.totalorder %s29, 0
      %p92 = por %p90, %p91
      %p93 = scmp.ne.s32.totalorder %s81, %s82
      %p94 = scmp.eq.s32.totalorder %s30, 1
      %p95 = por %p93, %p94
      %p97 = scmp.ne.s32.totalorder %s82, %s96
      %p98 = scmp.eq.s32.totalorder %s30, 0
      %p99 = por %p97, %p98
      %s101 = sadd.s32 %s100, 1
      %p104 = scmp.eq.s32.totalorder %s24, 1
      %p105 = scmp.ne.s32.totalorder %s100, %s102
      %p106 = scmp.eq.s32.totalorder %s24, 0
      %p107 = por %p105, %p106
      %p108 = scmp.ne.s32.totalorder %s100, %s102
      %p109 = scmp.eq.s32.totalorder %s29, 1
      %p110 = por %p108, %p109
      %p111 = scmp.ne.s32.totalorder %s102, %s103
      %p112 = scmp.eq.s32.totalorder %s29, 0
      %p113 = por %p111, %p112
      %p114 = scmp.ne.s32.totalorder %s102, %s103
      %p115 = scmp.eq.s32.totalorder %s30, 1
      %p116 = por %p114, %p115
      %p118 = scmp.ne.s32.totalorder %s103, %s117
      %p119 = scmp.eq.s32.totalorder %s30, 0
      %p120 = por %p118, %p119
      %s122 = sadd.s32 %s121, 1
      %p125 = scmp.eq.s32.totalorder %s24, 1
      %p126 = scmp.ne.s32.totalorder %s121, %s123
      %p127 = scmp.eq.s32.totalorder %s24, 0
      %p128 = por %p126, %p127
      %p129 = scmp.ne.s32.totalorder %s121, %s123
      %p130 = scmp.eq.s32.totalorder %s29, 1
      %p131 = por %p129, %p130
      %p132 = scmp.ne.s32.totalorder %s123, %s124
      %p133 = scmp.eq.s32.totalorder %s29, 0
      %p134 = por %p132, %p133
      %p135 = scmp.ne.s32.totalorder %s123, %s124
      %p136 = scmp.eq.s32.totalorder %s30, 1
      %p137 = por %p135, %p136
      %p139 = scmp.ne.s32.totalorder %s124, %s138
      %p140 = scmp.eq.s32.totalorder %s30, 0
      %p141 = por %p139, %p140
      %s143 = sadd.s32 %s142, 1
      %p146 = scmp.eq.s32.totalorder %s24, 1
      %p147 = scmp.ne.s32.totalorder %s142, %s144
      %p148 = scmp.eq.s32.totalorder %s24, 0
      %p149 = por %p147, %p148
      %p150 = scmp.ne.s32.totalorder %s142, %s144
      %p151 = scmp.eq.s32.totalorder %s29, 1
      %p152 = por %p150, %p151
      %p153 = scmp.ne.s32.totalorder %s144, %s145
      %p154 = scmp.eq.s32.totalorder %s29, 0
      %p155 = por %p153, %p154
      %p156 = scmp.ne.s32.totalorder %s144, %s145
      %p157 = scmp.eq.s32.totalorder %s30, 1
      %p158 = por %p156, %p157
      %p160 = scmp.ne.s32.totalorder %s145, %s159
      %p161 = scmp.eq.s32.totalorder %s30, 0
      %p162 = por %p160, %p161
      %s164 = sadd.s32 %s163, 1
      %p167 = scmp.eq.s32.totalorder %s24, 1
      %p168 = scmp.ne.s32.totalorder %s163, %s165
      %p169 = scmp.eq.s32.totalorder %s24, 0
      %p170 = por %p168, %p169
      %p171 = scmp.ne.s32.totalorder %s163, %s165
      %p172 = scmp.eq.s32.totalorder %s29, 1
      %p173 = por %p171, %p172
      %p174 = scmp.ne.s32.totalorder %s165, %s166
      %p175 = scmp.eq.s32.totalorder %s29, 0
      %p176 = por %p174, %p175
      %p177 = scmp.ne.s32.totalorder %s165, %s166
      %p178 = scmp.eq.s32.totalorder %s30, 1
      %p179 = por %p177, %p178
      %p181 = scmp.ne.s32.totalorder %s166, %s180
      %p182 = scmp.eq.s32.totalorder %s30, 0
      %p183 = por %p181, %p182
      %s185 = sadd.s32 %s184, 1
      %p188 = scmp.eq.s32.totalorder %s24, 1
      %p189 = scmp.ne.s32.totalorder %s184, %s186
      %p190 = scmp.eq.s32.totalorder %s24, 0
      %p191 = por %p189, %p190
      %p192 = scmp.ne.s32.totalorder %s184, %s186
      %p193 = scmp.eq.s32.totalorder %s29, 1
      %p194 = por %p192, %p193
      %p195 = scmp.ne.s32.totalorder %s186, %s187
      %p196 = scmp.eq.s32.totalorder %s29, 0
      %p197 = por %p195, %p196
      %p198 = scmp.ne.s32.totalorder %s186, %s187
      %p199 = scmp.eq.s32.totalorder %s30, 1
      %p200 = por %p198, %p199
      %p202 = scmp.ne.s32.totalorder %s187, %s201
      %p203 = scmp.eq.s32.totalorder %s30, 0
      %p204 = por %p202, %p203
      %s206 = sadd.s32 %s205, 1
      %p209 = scmp.eq.s32.totalorder %s24, 1
      %p210 = scmp.ne.s32.totalorder %s205, %s207
      %p211 = scmp.eq.s32.totalorder %s24, 0
      %p212 = por %p210, %p211
      %p213 = scmp.ne.s32.totalorder %s205, %s207
      %p214 = scmp.eq.s32.totalorder %s29, 1
      %p215 = por %p213, %p214
      %p216 = scmp.ne.s32.totalorder %s207, %s208
      %p217 = scmp.eq.s32.totalorder %s29, 0
      %p218 = por %p216, %p217
      %p219 = scmp.ne.s32.totalorder %s207, %s208
      %p220 = scmp.eq.s32.totalorder %s30, 1
      %p221 = por %p219, %p220
      %p223 = scmp.ne.s32.totalorder %s208, %s222
      %p224 = scmp.eq.s32.totalorder %s30, 0
      %p225 = por %p223, %p224
      %s227 = sadd.s32 %s226, 1
      %p230 = scmp.eq.s32.totalorder %s24, 1
      %p231 = scmp.ne.s32.totalorder %s226, %s228
      %p232 = scmp.eq.s32.totalorder %s24, 0
      %p233 = por %p231, %p232
      %p234 = scmp.ne.s32.totalorder %s226, %s228
      %p235 = scmp.eq.s32.totalorder %s29, 1
      %p236 = por %p234, %p235
      %p237 = scmp.ne.s32.totalorder %s228, %s229
      %p238 = scmp.eq.s32.totalorder %s29, 0
      %p239 = por %p237, %p238
      %p240 = scmp.ne.s32.totalorder %s228, %s229
      %p241 = scmp.eq.s32.totalorder %s30, 1
      %p242 = por %p240, %p241
      %p244 = scmp.ne.s32.totalorder %s229, %s243
      %p245 = scmp.eq.s32.totalorder %s30, 0
      %p246 = por %p244, %p245
      %s248 = sadd.s32 %s247, 1
      %p251 = scmp.eq.s32.totalorder %s24, 1
      %p252 = scmp.ne.s32.totalorder %s247, %s249
      %p253 = scmp.eq.s32.totalorder %s24, 0
      %p254 = por %p252, %p253
      %p255 = scmp.ne.s32.totalorder %s247, %s249
      %p256 = scmp.eq.s32.totalorder %s29, 1
      %p257 = por %p255, %p256
      %p258 = scmp.ne.s32.totalorder %s249, %s250
      %p259 = scmp.eq.s32.totalorder %s29, 0
      %p260 = por %p258, %p259
      %p261 = scmp.ne.s32.totalorder %s249, %s250
      %p262 = scmp.eq.s32.totalorder %s30, 1
      %p263 = por %p261, %p262
      %p265 = scmp.ne.s32.totalorder %s250, %s264
      %p266 = scmp.eq.s32.totalorder %s30, 0
      %p267 = por %p265, %p266
      %s269 = sadd.s32 %s268, 1
      %p272 = scmp.eq.s32.totalorder %s24, 1
      %p273 = scmp.ne.s32.totalorder %s268, %s270
      %p274 = scmp.eq.s32.totalorder %s24, 0
      %p275 = por %p273, %p274
      %p276 = scmp.ne.s32.totalorder %s268, %s270
      %p277 = scmp.eq.s32.totalorder %s29, 1
      %p278 = por %p276, %p277
      %p279 = scmp.ne.s32.totalorder %s270, %s271
      %p280 = scmp.eq.s32.totalorder %s29, 0
      %p281 = por %p279, %p280
      %p282 = scmp.ne.s32.totalorder %s270, %s271
      %p283 = scmp.eq.s32.totalorder %s30, 1
      %p284 = por %p282, %p283
      %p286 = scmp.ne.s32.totalorder %s271, %s285
      %p287 = scmp.eq.s32.totalorder %s30, 0
      %p288 = por %p286, %p287
      %s290 = sadd.s32 %s289, 1
      %p293 = scmp.eq.s32.totalorder %s24, 1
      %p294 = scmp.ne.s32.totalorder %s289, %s291
      %p295 = scmp.eq.s32.totalorder %s24, 0
      %p296 = por %p294, %p295
      %p297 = scmp.ne.s32.totalorder %s289, %s291
      %p298 = scmp.eq.s32.totalorder %s29, 1
      %p299 = por %p297, %p298
      %p300 = scmp.ne.s32.totalorder %s291, %s292
      %p301 = scmp.eq.s32.totalorder %s29, 0
      %p302 = por %p300, %p301
      %p303 = scmp.ne.s32.totalorder %s291, %s292
      %p304 = scmp.eq.s32.totalorder %s30, 1
      %p305 = por %p303, %p304
      %p307 = scmp.ne.s32.totalorder %s292, %s306
      %p308 = scmp.eq.s32.totalorder %s30, 0
      %p309 = por %p307, %p308
      %s311 = sadd.s32 %s310, 1
      %p314 = scmp.eq.s32.totalorder %s24, 1
      %p315 = scmp.ne.s32.totalorder %s310, %s312
      %p316 = scmp.eq.s32.totalorder %s24, 0
      %p317 = por %p315, %p316
      %p318 = scmp.ne.s32.totalorder %s310, %s312
      %p319 = scmp.eq.s32.totalorder %s29, 1
      %p320 = por %p318, %p319
      %p321 = scmp.ne.s32.totalorder %s312, %s313
      %p322 = scmp.eq.s32.totalorder %s29, 0
      %p323 = por %p321, %p322
      %p324 = scmp.ne.s32.totalorder %s312, %s313
      %p325 = scmp.eq.s32.totalorder %s30, 1
      %p326 = por %p324, %p325
      %p328 = scmp.ne.s32.totalorder %s313, %s327
      %p329 = scmp.eq.s32.totalorder %s30, 0
      %p330 = por %p328, %p329
      %s332 = sadd.s32 %s331, 1
      %p335 = scmp.eq.s32.totalorder %s24, 1
      %p336 = scmp.ne.s32.totalorder %s331, %s333
      %p337 = scmp.eq.s32.totalorder %s24, 0
      %p338 = por %p336, %p337
      %p339 = scmp.ne.s32.totalorder %s331, %s333
      %p340 = scmp.eq.s32.totalorder %s29, 1
      %p341 = por %p339, %p340
      %p342 = scmp.ne.s32.totalorder %s333, %s334
      %p343 = scmp.eq.s32.totalorder %s29, 0
      %p344 = por %p342, %p343
      %p345 = scmp.ne.s32.totalorder %s333, %s334
      %p346 = scmp.eq.s32.totalorder %s30, 1
      %p347 = por %p345, %p346
      %p349 = scmp.ne.s32.totalorder %s334, %s348
      %p350 = scmp.eq.s32.totalorder %s30, 0
      %p351 = por %p349, %p350
      %s352 = ssub.s32 %s24, %s31
      %p353 = scmp.eq.s32.totalorder %s352, 0
      %s355 = sadd.s32 %s354, 1
      %s356 = scalar_select %p353, %s354, %s355
      %p359 = pneg %p353
      %p360 = scmp.eq.s32.totalorder %s24, 1
      %p361 = por %p359, %p360
      %p362 = scmp.ne.s32.totalorder %s354, %s357
      %p363 = scmp.eq.s32.totalorder %s24, 0
      %p364 = por %p362, %p363
      %p365 = scmp.ne.s32.totalorder %s354, %s357
      %p366 = scmp.eq.s32.totalorder %s29, 1
      %p367 = por %p365, %p366
      %p368 = scmp.ne.s32.totalorder %s357, %s358
      %p369 = scmp.eq.s32.totalorder %s29, 0
      %p370 = por %p368, %p369
      %p371 = scmp.ne.s32.totalorder %s357, %s358
      %p372 = scmp.eq.s32.totalorder %s30, 1
      %p373 = por %p371, %p372
      %p375 = scmp.ne.s32.totalorder %s358, %s374
      %p376 = scmp.eq.s32.totalorder %s30, 0
      %p377 = por %p375, %p376
      %p378 = scmp.le.s32.totalorder 1, %s24
      %p379 = scmp.lt.s32.totalorder %s24, 3
      %p380 = pnand %p378, %p379
      %p381 = pneg %p380
      // Predicated region
      $region9: #{lenet5_forward.1} parent=5 // pred_check
        _
      $region10: #{lenet5_forward.1} parent=5 // pred_check_branch
        %383 = sbr.rel (%p380) target = $region12
      $region11: #{lenet5_forward.1} parent=5 // pred_region
        %s384 = ssub.s32 %s24, 1
        // Predicated region
        $region13: #{lenet5_forward.1} parent=11 // pred_check
          %p385 = pneg %p71
        $region14: #{lenet5_forward.1} parent=11 // pred_check_branch
          %387 = sbr.rel (%p385) target = $region16
        $region15: #{lenet5_forward.1} parent=11 // pred_region
          _
        $region16: #{lenet5_forward.1} parent=11 // pred_fallthru
          _
        // Predicated region
        $region17: #{lenet5_forward.1} parent=11 // pred_check
          %p388 = pneg %p92
        $region18: #{lenet5_forward.1} parent=11 // pred_check_branch
          %390 = sbr.rel (%p388) target = $region20
        $region19: #{lenet5_forward.1} parent=11 // pred_region
          _
        $region20: #{lenet5_forward.1} parent=11 // pred_fallthru
          _
        // Predicated region
        $region21: #{lenet5_forward.1} parent=11 // pred_check
          %p391 = pneg %p113
        $region22: #{lenet5_forward.1} parent=11 // pred_check_branch
          %393 = sbr.rel (%p391) target = $region24
        $region23: #{lenet5_forward.1} parent=11 // pred_region
          _
        $region24: #{lenet5_forward.1} parent=11 // pred_fallthru
          _
        // Predicated region
        $region25: #{lenet5_forward.1} parent=11 // pred_check
          %p394 = pneg %p134
        $region26: #{lenet5_forward.1} parent=11 // pred_check_branch
          %396 = sbr.rel (%p394) target = $region28
        $region27: #{lenet5_forward.1} parent=11 // pred_region
          _
        $region28: #{lenet5_forward.1} parent=11 // pred_fallthru
          _
        // Predicated region
        $region29: #{lenet5_forward.1} parent=11 // pred_check
          %p397 = pneg %p155
        $region30: #{lenet5_forward.1} parent=11 // pred_check_branch
          %399 = sbr.rel (%p397) target = $region32
        $region31: #{lenet5_forward.1} parent=11 // pred_region
          _
        $region32: #{lenet5_forward.1} parent=11 // pred_fallthru
          _
        // Predicated region
        $region33: #{lenet5_forward.1} parent=11 // pred_check
          %p400 = pneg %p176
        $region34: #{lenet5_forward.1} parent=11 // pred_check_branch
          %402 = sbr.rel (%p400) target = $region36
        $region35: #{lenet5_forward.1} parent=11 // pred_region
          _
        $region36: #{lenet5_forward.1} parent=11 // pred_fallthru
          _
        // Predicated region
        $region37: #{lenet5_forward.1} parent=11 // pred_check
          %p403 = pneg %p197
        $region38: #{lenet5_forward.1} parent=11 // pred_check_branch
          %405 = sbr.rel (%p403) target = $region40
        $region39: #{lenet5_forward.1} parent=11 // pred_region
          _
        $region40: #{lenet5_forward.1} parent=11 // pred_fallthru
          _
        // Predicated region
        $region41: #{lenet5_forward.1} parent=11 // pred_check
          %p406 = pneg %p218
        $region42: #{lenet5_forward.1} parent=11 // pred_check_branch
          %408 = sbr.rel (%p406) target = $region44
        $region43: #{lenet5_forward.1} parent=11 // pred_region
          _
        $region44: #{lenet5_forward.1} parent=11 // pred_fallthru
          _
        // Predicated region
        $region45: #{lenet5_forward.1} parent=11 // pred_check
          %p409 = pneg %p239
        $region46: #{lenet5_forward.1} parent=11 // pred_check_branch
          %411 = sbr.rel (%p409) target = $region48
        $region47: #{lenet5_forward.1} parent=11 // pred_region
          _
        $region48: #{lenet5_forward.1} parent=11 // pred_fallthru
          _
        // Predicated region
        $region49: #{lenet5_forward.1} parent=11 // pred_check
          %p412 = pneg %p260
        $region50: #{lenet5_forward.1} parent=11 // pred_check_branch
          %414 = sbr.rel (%p412) target = $region52
        $region51: #{lenet5_forward.1} parent=11 // pred_region
          _
        $region52: #{lenet5_forward.1} parent=11 // pred_fallthru
          _
        // Predicated region
        $region53: #{lenet5_forward.1} parent=11 // pred_check
          %p415 = pneg %p281
        $region54: #{lenet5_forward.1} parent=11 // pred_check_branch
          %417 = sbr.rel (%p415) target = $region56
        $region55: #{lenet5_forward.1} parent=11 // pred_region
          _
        $region56: #{lenet5_forward.1} parent=11 // pred_fallthru
          _
        // Predicated region
        $region57: #{lenet5_forward.1} parent=11 // pred_check
          %p418 = pneg %p302
        $region58: #{lenet5_forward.1} parent=11 // pred_check_branch
          %420 = sbr.rel (%p418) target = $region60
        $region59: #{lenet5_forward.1} parent=11 // pred_region
          _
        $region60: #{lenet5_forward.1} parent=11 // pred_fallthru
          _
        // Predicated region
        $region61: #{lenet5_forward.1} parent=11 // pred_check
          %p421 = pneg %p323
        $region62: #{lenet5_forward.1} parent=11 // pred_check_branch
          %423 = sbr.rel (%p421) target = $region64
        $region63: #{lenet5_forward.1} parent=11 // pred_region
          _
        $region64: #{lenet5_forward.1} parent=11 // pred_fallthru
          _
        // Predicated region
        $region65: #{lenet5_forward.1} parent=11 // pred_check
          %p424 = pneg %p344
        $region66: #{lenet5_forward.1} parent=11 // pred_check_branch
          %426 = sbr.rel (%p424) target = $region68
        $region67: #{lenet5_forward.1} parent=11 // pred_region
          _
        $region68: #{lenet5_forward.1} parent=11 // pred_fallthru
          _
      $region12: #{lenet5_forward.1} parent=5 // pred_fallthru
        _
      %p427 = scmp.lt.s32.totalorder %s24, 2
      // Predicated region
      $region69: #{lenet5_forward.1} parent=5 // pred_check
        %p428 = pneg %p427
      $region70: #{lenet5_forward.1} parent=5 // pred_check_branch
        %430 = sbr.rel (%p428) target = $region72
      $region71: #{lenet5_forward.1} parent=5 // pred_region
        // Predicated region
        $region73: #{lenet5_forward.1} parent=71 // pred_check
          %p431 = pneg %p44
        $region74: #{lenet5_forward.1} parent=71 // pred_check_branch
          %433 = sbr.rel (%p431) target = $region76
        $region75: #{lenet5_forward.1} parent=71 // pred_region
          %p434 = scmp.lt.s32.totalorder %s24, 1
          %s435 = scalar_select %p434, %s24, 1
          %s436 = smul.addr %s435, 4
          %s437 = smul.addr %s436, 8
          %s438 = scalar_lea.vmem %s0, %s437
        $region76: #{lenet5_forward.1} parent=71 // pred_fallthru
          _
      $region72: #{lenet5_forward.1} parent=5 // pred_fallthru
        _
      %p439 = scmp.le.s32.totalorder 1, %s24
      %p440 = scmp.lt.s32.totalorder %s24, 3
      %p441 = pnand %p439, %p440
      %p442 = pneg %p441
      // Predicated region
      $region77: #{lenet5_forward.1} parent=5 // pred_check
        _
      $region78: #{lenet5_forward.1} parent=5 // pred_check_branch
        %444 = sbr.rel (%p441) target = $region80
      $region79: #{lenet5_forward.1} parent=5 // pred_region
        %s445 = ssub.s32 %s24, 1
        %p446 = scmp.lt.s32.totalorder %s29, 1
        %s447 = scalar_select %p446, %s29, 1
        %s448 = smul.addr %s447, 4
        %s449 = smul.addr %s448, 8
        %s450 = scalar_lea.vmem %s0, %s449
        %p451 = pneg %p50
        %p452 = pneg %p47
        %p453 = pneg %p71
        %p454 = pneg %p68
        %p455 = pneg %p92
        %p456 = pneg %p89
        %p457 = pneg %p113
        %p458 = pneg %p110
        %p459 = pneg %p134
        %p460 = pneg %p131
        %p461 = pneg %p155
        %p462 = pneg %p152
        %p463 = pneg %p176
        %p464 = pneg %p173
        %p465 = pneg %p197
        %p466 = pneg %p194
        %p467 = pneg %p218
        %p468 = pneg %p215
        %p469 = pneg %p239
        %p470 = pneg %p236
        %p471 = pneg %p260
        %p472 = pneg %p257
        %p473 = pneg %p281
        %p474 = pneg %p278
        %p475 = pneg %p302
        %p476 = pneg %p299
        %p477 = pneg %p323
        %p478 = pneg %p320
        %p479 = pneg %p344
        %p480 = pneg %p341
        %p481 = pneg %p370
        %p482 = pneg %p367
        %s483 = sand.u32 %s357, 1
        %s484 = scalar_lea.sflag [#allocation3], %s483
        %s485 = sand.u32 %s357, 1
        %s486 = scalar_lea.vmem [#allocation2], %s485
        %p487 = scmp.lt.s32.totalorder %s29, 1
        %s488 = scalar_select %p487, %s29, 1
        %s489 = smul.addr %s488, 4
        %s490 = smul.addr %s489, 8
        %s491 = scalar_lea.vmem %s0, %s490
        %v492 = vld [vmem:[%s491] sm:$0xff]
        %v493 = vld [vmem:[%s491 + $0x8] sm:$0xff]
        %v494 = vld [vmem:[%s491 + $0x10] sm:$0xff]
        %v495 = vld [vmem:[%s491 + $0x18] sm:$0xff]
        %v496 = vld [vmem:[%s1] sm:$0xff]
        %v497 = vld [vmem:[%s1 + $0x8] sm:$0xff]
        %v498 = vld [vmem:[%s1 + $0x10] sm:$0xff]
        %v499 = vld [vmem:[%s1 + $0x18] sm:$0xff]
        %v500 = vld [vmem:[%s1 + $0x20] sm:$0xff]
        %v501 = vld [vmem:[%s1 + $0x28] sm:$0xff]
        %v502 = vld [vmem:[%s1 + $0x30] sm:$0xff]
        %v503 = vld [vmem:[%s1 + $0x38] sm:$0xff]
        %vm504 = vcmask 261120
        %v506 = vsel %vm504, %v492, 0
        %v509 = vsel %vm504, %v493, 0
        %v512 = vsel %vm504, %v494, 0
        %v515 = vsel %vm504, %v495, 0
        %517 = vmatprep.subr.mxu0 0.0
        %518 = vmatpush1.msra.mxu0 0.0
        %519 = vmatprep.subr.mxu0 0.0
        %520 = vmatpush1.msra.mxu0 0.0
        %521 = vmatprep.subr.mxu0 0.0
        %522 = vmatpush1.msra.mxu0 0.0
        %523 = vmatprep.subr.mxu0 0.0
        %524 = vmatpush1.msra.mxu0 0.0
        %525 = vmatprep.subr.mxu0 0.0
        %526 = vmatpush1.msra.mxu0 0.0
        %527 = vmatprep.subr.mxu0 0.0
        %528 = vmatpush1.msra.mxu0 0.0
        %529 = vmatprep.subr.mxu0 0.0
        %530 = vmatpush1.msra.mxu0 0.0
        %531 = vmatprep.subr.mxu0 0.0
        %532 = vmatpush1.msra.mxu0 0.0
        %533 = vmatprep.subr.mxu0 0.0
        %534 = vmatpush1.msra.mxu0 0.0
        %535 = vmatprep.subr.mxu0 0.0
        %536 = vmatpush1.msra.mxu0 0.0
        %537 = vmatprep.subr.mxu0 0.0
        %538 = vmatpush1.msra.mxu0 0.0
        %539 = vmatprep.subr.mxu0 0.0
        %540 = vmatpush1.msra.mxu0 0.0
        %541 = vmatprep.subr.mxu0 %v503
        %542 = vmatpush1.msra.mxu0 %v502
        %543 = vmatprep.subr.mxu0 %v501
        %544 = vmatpush1.msra.mxu0 %v500
        %545 = vmatprep.subr.mxu0 %v499
        %546 = vmatpush1.msra.mxu0 %v498
        %547 = vmatprep.subr.mxu0 %v497
        %548 = vmatpush1.msra.mxu0 %v496
        %549 = vmatprep.subr.mxu0 0.0
        %550 = vmatpush2.msra.mxu0 0.0
        %551 = vmatprep.subr.mxu0 0.0
        %552 = vmatpush2.msra.mxu0 0.0
        %553 = vmatprep.subr.mxu0 0.0
        %554 = vmatpush2.msra.mxu0 0.0
        %555 = vmatprep.subr.mxu0 0.0
        %556 = vmatpush2.msra.mxu0 0.0
        %557 = vmatprep.subr.mxu0 0.0
        %558 = vmatpush2.msra.mxu0 0.0
        %559 = vmatprep.subr.mxu0 0.0
        %560 = vmatpush2.msra.mxu0 0.0
        %561 = vmatprep.subr.mxu0 0.0
        %562 = vmatpush2.msra.mxu0 0.0
        %563 = vmatprep.subr.mxu0 0.0
        %564 = vmatpush2.msra.mxu0 0.0
        %565 = vmatprep.subr.mxu0 0.0
        %566 = vmatpush2.msra.mxu0 0.0
        %567 = vmatprep.subr.mxu0 0.0
        %568 = vmatpush2.msra.mxu0 0.0
        %569 = vmatprep.subr.mxu0 0.0
        %570 = vmatpush2.msra.mxu0 0.0
        %571 = vmatprep.subr.mxu0 0.0
        %572 = vmatpush2.msra.mxu0 0.0
        %573 = vmatprep.subr.mxu0 0.0
        %574 = vmatpush2.msra.mxu0 0.0
        %575 = vmatprep.subr.mxu0 0.0
        %576 = vmatpush2.msra.mxu0 0.0
        %577 = vmatprep.subr.mxu0 0.0
        %578 = vmatpush2.msra.mxu0 0.0
        %579 = vmatprep.subr.mxu0 0.0
        %580 = vmatpush2.msra.mxu0 0.0
        %581 = vmatprep.mubr.f32.mxu0 0.0
        %582 = vmatmul.mubr.f32.gmra.mxu0 %v506
        %v583 = vpop.f32.mrf.mxu0
        %v584 = vadd.f32 0.0, %v583
        %v585 = vpop.f32.mrf.mxu0
        %v586 = vadd.f32 0.0, %v585
        %587 = vmatprep.mubr.f32.mxu0 0.0
        %588 = vmatmul.mubr.f32.gmra.mxu0 %v509
        %v589 = vpop.f32.mrf.mxu0
        %v590 = vadd.f32 0.0, %v589
        %v591 = vpop.f32.mrf.mxu0
        %v592 = vadd.f32 0.0, %v591
        %593 = vmatprep.mubr.f32.mxu0 0.0
        %594 = vmatmul.mubr.f32.gmra.mxu0 %v512
        %v595 = vpop.f32.mrf.mxu0
        %v596 = vadd.f32 0.0, %v595
        %v597 = vpop.f32.mrf.mxu0
        %v598 = vadd.f32 0.0, %v597
        %599 = vmatprep.mubr.f32.mxu0 0.0
        %600 = vmatmul.mubr.f32.gmra.mxu0 %v515
        %v601 = vpop.f32.mrf.mxu0
        %v602 = vadd.f32 0.0, %v601
        %v603 = vpop.f32.mrf.mxu0
        %v604 = vadd.f32 0.0, %v603
        %605 = vdwg.mxu0
        %v606 = vadd.f32 %v584, 0.0
        %v607 = vadd.f32 %v586, 0.0
        %v608 = vadd.f32 %v590, 0.0
        %v609 = vadd.f32 %v592, 0.0
        %v610 = vadd.f32 %v596, 0.0
        %v611 = vadd.f32 %v598, 0.0
        %v612 = vadd.f32 %v602, 0.0
        %v613 = vadd.f32 %v604, 0.0
        %s614 = scalar_lea.vmem %s1, 64
        %v615 = vld [vmem:[%s614] sm:$0xff]
        %v616 = vld [vmem:[%s614 + $0x8] sm:$0xff]
        %v617 = vld [vmem:[%s614 + $0x10] sm:$0xff]
        %v618 = vld [vmem:[%s614 + $0x18] sm:$0xff]
        %v619 = vld [vmem:[%s614 + $0x20] sm:$0xff]
        %v620 = vld [vmem:[%s614 + $0x28] sm:$0xff]
        %v621 = vld [vmem:[%s614 + $0x30] sm:$0xff]
        %v622 = vld [vmem:[%s614 + $0x38] sm:$0xff]
        %623 = vmatprep.subr.mxu0 0.0
        %624 = vmatpush1.msra.mxu0 0.0
        %625 = vmatprep.subr.mxu0 0.0
        %626 = vmatpush1.msra.mxu0 0.0
        %627 = vmatprep.subr.mxu0 0.0
        %628 = vmatpush1.msra.mxu0 0.0
        %629 = vmatprep.subr.mxu0 0.0
        %630 = vmatpush1.msra.mxu0 0.0
        %631 = vmatprep.subr.mxu0 0.0
        %632 = vmatpush1.msra.mxu0 0.0
        %633 = vmatprep.subr.mxu0 0.0
        %634 = vmatpush1.msra.mxu0 0.0
        %635 = vmatprep.subr.mxu0 0.0
        %636 = vmatpush1.msra.mxu0 0.0
        %637 = vmatprep.subr.mxu0 0.0
        %638 = vmatpush1.msra.mxu0 0.0
        %639 = vmatprep.subr.mxu0 0.0
        %640 = vmatpush1.msra.mxu0 0.0
        %641 = vmatprep.subr.mxu0 0.0
        %642 = vmatpush1.msra.mxu0 0.0
        %643 = vmatprep.subr.mxu0 0.0
        %644 = vmatpush1.msra.mxu0 0.0
        %645 = vmatprep.subr.mxu0 0.0
        %646 = vmatpush1.msra.mxu0 0.0
        %647 = vmatprep.subr.mxu0 %v622
        %648 = vmatpush1.msra.mxu0 %v621
        %649 = vmatprep.subr.mxu0 %v620
        %650 = vmatpush1.msra.mxu0 %v619
        %651 = vmatprep.subr.mxu0 %v618
        %652 = vmatpush1.msra.mxu0 %v617
        %653 = vmatprep.subr.mxu0 %v616
        %654 = vmatpush1.msra.mxu0 %v615
        %655 = vmatprep.subr.mxu0 0.0
        %656 = vmatpush2.msra.mxu0 0.0
        %657 = vmatprep.subr.mxu0 0.0
        %658 = vmatpush2.msra.mxu0 0.0
        %659 = vmatprep.subr.mxu0 0.0
        %660 = vmatpush2.msra.mxu0 0.0
        %661 = vmatprep.subr.mxu0 0.0
        %662 = vmatpush2.msra.mxu0 0.0
        %663 = vmatprep.subr.mxu0 0.0
        %664 = vmatpush2.msra.mxu0 0.0
        %665 = vmatprep.subr.mxu0 0.0
        %666 = vmatpush2.msra.mxu0 0.0
        %667 = vmatprep.subr.mxu0 0.0
        %668 = vmatpush2.msra.mxu0 0.0
        %669 = vmatprep.subr.mxu0 0.0
        %670 = vmatpush2.msra.mxu0 0.0
        %671 = vmatprep.subr.mxu0 0.0
        %672 = vmatpush2.msra.mxu0 0.0
        %673 = vmatprep.subr.mxu0 0.0
        %674 = vmatpush2.msra.mxu0 0.0
        %675 = vmatprep.subr.mxu0 0.0
        %676 = vmatpush2.msra.mxu0 0.0
        %677 = vmatprep.subr.mxu0 0.0
        %678 = vmatpush2.msra.mxu0 0.0
        %679 = vmatprep.subr.mxu0 0.0
        %680 = vmatpush2.msra.mxu0 0.0
        %681 = vmatprep.subr.mxu0 0.0
        %682 = vmatpush2.msra.mxu0 0.0
        %683 = vmatprep.subr.mxu0 0.0
        %684 = vmatpush2.msra.mxu0 0.0
        %685 = vmatprep.subr.mxu0 0.0
        %686 = vmatpush2.msra.mxu0 0.0
        %687 = vmatprep.mubr.f32.mxu0 0.0
        %688 = vmatmul.mubr.f32.gmra.mxu0 %v506
        %v689 = vpop.f32.mrf.mxu0
        %v690 = vadd.f32 0.0, %v689
        %v691 = vpop.f32.mrf.mxu0
        %v692 = vadd.f32 0.0, %v691
        %693 = vmatprep.mubr.f32.mxu0 0.0
        %694 = vmatmul.mubr.f32.gmra.mxu0 %v509
        %v695 = vpop.f32.mrf.mxu0
        %v696 = vadd.f32 0.0, %v695
        %v697 = vpop.f32.mrf.mxu0
        %v698 = vadd.f32 0.0, %v697
        %699 = vmatprep.mubr.f32.mxu0 0.0
        %700 = vmatmul.mubr.f32.gmra.mxu0 %v512
        %v701 = vpop.f32.mrf.mxu0
        %v702 = vadd.f32 0.0, %v701
        %v703 = vpop.f32.mrf.mxu0
        %v704 = vadd.f32 0.0, %v703
        %705 = vmatprep.mubr.f32.mxu0 0.0
        %706 = vmatmul.mubr.f32.gmra.mxu0 %v515
        %v707 = vpop.f32.mrf.mxu0
        %v708 = vadd.f32 0.0, %v707
        %v709 = vpop.f32.mrf.mxu0
        %v710 = vadd.f32 0.0, %v709
        %711 = vdwg.mxu0
        %vm720 = vcmask 1046528
        %v721 = vrot.slane %v690, 1
        %v722 = vrot.slane %v696, 1
        %v723 = vsel %vm720, %v721, %v722
        %v724 = vrot.slane %v692, 1
        %v725 = vrot.slane %v698, 1
        %v726 = vsel %vm720, %v724, %v725
        %v727 = vrot.slane %v702, 1
        %v728 = vsel %vm720, %v722, %v727
        %v729 = vrot.slane %v704, 1
        %v730 = vsel %vm720, %v725, %v729
        %v731 = vrot.slane %v708, 1
        %v732 = vsel %vm720, %v727, %v731
        %v733 = vrot.slane %v710, 1
        %v734 = vsel %vm720, %v729, %v733
        %v743 = vadd.f32 %v606, %v723
        %v744 = vadd.f32 %v607, %v726
        %v745 = vadd.f32 %v608, %v728
        %v746 = vadd.f32 %v609, %v730
        %v747 = vadd.f32 %v610, %v732
        %v748 = vadd.f32 %v611, %v734
        %v749 = vadd.f32 %v612, %v731
        %v750 = vadd.f32 %v613, %v733
        %s751 = scalar_lea.vmem %s1, 128
        %v752 = vld [vmem:[%s751] sm:$0xff]
        %v753 = vld [vmem:[%s751 + $0x8] sm:$0xff]
        %v754 = vld [vmem:[%s751 + $0x10] sm:$0xff]
        %v755 = vld [vmem:[%s751 + $0x18] sm:$0xff]
        %v756 = vld [vmem:[%s751 + $0x20] sm:$0xff]
        %v757 = vld [vmem:[%s751 + $0x28] sm:$0xff]
        %v758 = vld [vmem:[%s751 + $0x30] sm:$0xff]
        %v759 = vld [vmem:[%s751 + $0x38] sm:$0xff]
        %760 = vmatprep.subr.mxu0 0.0
        %761 = vmatpush1.msra.mxu0 0.0
        %762 = vmatprep.subr.mxu0 0.0
        %763 = vmatpush1.msra.mxu0 0.0
        %764 = vmatprep.subr.mxu0 0.0
        %765 = vmatpush1.msra.mxu0 0.0
        %766 = vmatprep.subr.mxu0 0.0
        %767 = vmatpush1.msra.mxu0 0.0
        %768 = vmatprep.subr.mxu0 0.0
        %769 = vmatpush1.msra.mxu0 0.0
        %770 = vmatprep.subr.mxu0 0.0
        %771 = vmatpush1.msra.mxu0 0.0
        %772 = vmatprep.subr.mxu0 0.0
        %773 = vmatpush1.msra.mxu0 0.0
        %774 = vmatprep.subr.mxu0 0.0
        %775 = vmatpush1.msra.mxu0 0.0
        %776 = vmatprep.subr.mxu0 0.0
        %777 = vmatpush1.msra.mxu0 0.0
        %778 = vmatprep.subr.mxu0 0.0
        %779 = vmatpush1.msra.mxu0 0.0
        %780 = vmatprep.subr.mxu0 0.0
        %781 = vmatpush1.msra.mxu0 0.0
        %782 = vmatprep.subr.mxu0 0.0
        %783 = vmatpush1.msra.mxu0 0.0
        %784 = vmatprep.subr.mxu0 %v759
        %785 = vmatpush1.msra.mxu0 %v758
        %786 = vmatprep.subr.mxu0 %v757
        %787 = vmatpush1.msra.mxu0 %v756
        %788 = vmatprep.subr.mxu0 %v755
        %789 = vmatpush1.msra.mxu0 %v754
        %790 = vmatprep.subr.mxu0 %v753
        %791 = vmatpush1.msra.mxu0 %v752
        %792 = vmatprep.subr.mxu0 0.0
        %793 = vmatpush2.msra.mxu0 0.0
        %794 = vmatprep.subr.mxu0 0.0
        %795 = vmatpush2.msra.mxu0 0.0
        %796 = vmatprep.subr.mxu0 0.0
        %797 = vmatpush2.msra.mxu0 0.0
        %798 = vmatprep.subr.mxu0 0.0
        %799 = vmatpush2.msra.mxu0 0.0
        %800 = vmatprep.subr.mxu0 0.0
        %801 = vmatpush2.msra.mxu0 0.0
        %802 = vmatprep.subr.mxu0 0.0
        %803 = vmatpush2.msra.mxu0 0.0
        %804 = vmatprep.subr.mxu0 0.0
        %805 = vmatpush2.msra.mxu0 0.0
        %806 = vmatprep.subr.mxu0 0.0
        %807 = vmatpush2.msra.mxu0 0.0
        %808 = vmatprep.subr.mxu0 0.0
        %809 = vmatpush2.msra.mxu0 0.0
        %810 = vmatprep.subr.mxu0 0.0
        %811 = vmatpush2.msra.mxu0 0.0
        %812 = vmatprep.subr.mxu0 0.0
        %813 = vmatpush2.msra.mxu0 0.0
        %814 = vmatprep.subr.mxu0 0.0
        %815 = vmatpush2.msra.mxu0 0.0
        %816 = vmatprep.subr.mxu0 0.0
        %817 = vmatpush2.msra.mxu0 0.0
        %818 = vmatprep.subr.mxu0 0.0
        %819 = vmatpush2.msra.mxu0 0.0
        %820 = vmatprep.subr.mxu0 0.0
        %821 = vmatpush2.msra.mxu0 0.0
        %822 = vmatprep.subr.mxu0 0.0
        %823 = vmatpush2.msra.mxu0 0.0
        %824 = vmatprep.mubr.f32.mxu0 0.0
        %825 = vmatmul.mubr.f32.gmra.mxu0 %v506
        %v826 = vpop.f32.mrf.mxu0
        %v827 = vadd.f32 0.0, %v826
        %v828 = vpop.f32.mrf.mxu0
        %v829 = vadd.f32 0.0, %v828
        %830 = vmatprep.mubr.f32.mxu0 0.0
        %831 = vmatmul.mubr.f32.gmra.mxu0 %v509
        %v832 = vpop.f32.mrf.mxu0
        %v833 = vadd.f32 0.0, %v832
        %v834 = vpop.f32.mrf.mxu0
        %v835 = vadd.f32 0.0, %v834
        %836 = vmatprep.mubr.f32.mxu0 0.0
        %837 = vmatmul.mubr.f32.gmra.mxu0 %v512
        %v838 = vpop.f32.mrf.mxu0
        %v839 = vadd.f32 0.0, %v838
        %v840 = vpop.f32.mrf.mxu0
        %v841 = vadd.f32 0.0, %v840
        %842 = vmatprep.mubr.f32.mxu0 0.0
        %843 = vmatmul.mubr.f32.gmra.mxu0 %v515
        %v844 = vpop.f32.mrf.mxu0
        %v845 = vadd.f32 0.0, %v844
        %v846 = vpop.f32.mrf.mxu0
        %v847 = vadd.f32 0.0, %v846
        %848 = vdwg.mxu0
        %vm857 = vcmask 1045504
        %v858 = vrot.slane %v827, 2
        %v859 = vrot.slane %v833, 2
        %v860 = vsel %vm857, %v858, %v859
        %v861 = vrot.slane %v829, 2
        %v862 = vrot.slane %v835, 2
        %v863 = vsel %vm857, %v861, %v862
        %v864 = vrot.slane %v839, 2
        %v865 = vsel %vm857, %v859, %v864
        %v866 = vrot.slane %v841, 2
        %v867 = vsel %vm857, %v862, %v866
        %v868 = vrot.slane %v845, 2
        %v869 = vsel %vm857, %v864, %v868
        %v870 = vrot.slane %v847, 2
        %v871 = vsel %vm857, %v866, %v870
        %v880 = vadd.f32 %v743, %v860
        %v881 = vadd.f32 %v744, %v863
        %v882 = vadd.f32 %v745, %v865
        %v883 = vadd.f32 %v746, %v867
        %v884 = vadd.f32 %v747, %v869
        %v885 = vadd.f32 %v748, %v871
        %v886 = vadd.f32 %v749, %v868
        %v887 = vadd.f32 %v750, %v870
        %s888 = scalar_lea.vmem %s1, 192
        %v889 = vld [vmem:[%s888] sm:$0xff]
        %v890 = vld [vmem:[%s888 + $0x8] sm:$0xff]
        %v891 = vld [vmem:[%s888 + $0x10] sm:$0xff]
        %v892 = vld [vmem:[%s888 + $0x18] sm:$0xff]
        %v893 = vld [vmem:[%s888 + $0x20] sm:$0xff]
        %v894 = vld [vmem:[%s888 + $0x28] sm:$0xff]
        %v895 = vld [vmem:[%s888 + $0x30] sm:$0xff]
        %v896 = vld [vmem:[%s888 + $0x38] sm:$0xff]
        %897 = vmatprep.subr.mxu0 0.0
        %898 = vmatpush1.msra.mxu0 0.0
        %899 = vmatprep.subr.mxu0 0.0
        %900 = vmatpush1.msra.mxu0 0.0
        %901 = vmatprep.subr.mxu0 0.0
        %902 = vmatpush1.msra.mxu0 0.0
        %903 = vmatprep.subr.mxu0 0.0
        %904 = vmatpush1.msra.mxu0 0.0
        %905 = vmatprep.subr.mxu0 0.0
        %906 = vmatpush1.msra.mxu0 0.0
        %907 = vmatprep.subr.mxu0 0.0
        %908 = vmatpush1.msra.mxu0 0.0
        %909 = vmatprep.subr.mxu0 0.0
        %910 = vmatpush1.msra.mxu0 0.0
        %911 = vmatprep.subr.mxu0 0.0
        %912 = vmatpush1.msra.mxu0 0.0
        %913 = vmatprep.subr.mxu0 0.0
        %914 = vmatpush1.msra.mxu0 0.0
        %915 = vmatprep.subr.mxu0 0.0
        %916 = vmatpush1.msra.mxu0 0.0
        %917 = vmatprep.subr.mxu0 0.0
        %918 = vmatpush1.msra.mxu0 0.0
        %919 = vmatprep.subr.mxu0 0.0
        %920 = vmatpush1.msra.mxu0 0.0
        %921 = vmatprep.subr.mxu0 %v896
        %922 = vmatpush1.msra.mxu0 %v895
        %923 = vmatprep.subr.mxu0 %v894
        %924 = vmatpush1.msra.mxu0 %v893
        %925 = vmatprep.subr.mxu0 %v892
        %926 = vmatpush1.msra.mxu0 %v891
        %927 = vmatprep.subr.mxu0 %v890
        %928 = vmatpush1.msra.mxu0 %v889
        %929 = vmatprep.subr.mxu0 0.0
        %930 = vmatpush2.msra.mxu0 0.0
        %931 = vmatprep.subr.mxu0 0.0
        %932 = vmatpush2.msra.mxu0 0.0
        %933 = vmatprep.subr.mxu0 0.0
        %934 = vmatpush2.msra.mxu0 0.0
        %935 = vmatprep.subr.mxu0 0.0
        %936 = vmatpush2.msra.mxu0 0.0
        %937 = vmatprep.subr.mxu0 0.0
        %938 = vmatpush2.msra.mxu0 0.0
        %939 = vmatprep.subr.mxu0 0.0
        %940 = vmatpush2.msra.mxu0 0.0
        %941 = vmatprep.subr.mxu0 0.0
        %942 = vmatpush2.msra.mxu0 0.0
        %943 = vmatprep.subr.mxu0 0.0
        %944 = vmatpush2.msra.mxu0 0.0
        %945 = vmatprep.subr.mxu0 0.0
        %946 = vmatpush2.msra.mxu0 0.0
        %947 = vmatprep.subr.mxu0 0.0
        %948 = vmatpush2.msra.mxu0 0.0
        %949 = vmatprep.subr.mxu0 0.0
        %950 = vmatpush2.msra.mxu0 0.0
        %951 = vmatprep.subr.mxu0 0.0
        %952 = vmatpush2.msra.mxu0 0.0
        %953 = vmatprep.subr.mxu0 0.0
        %954 = vmatpush2.msra.mxu0 0.0
        %955 = vmatprep.subr.mxu0 0.0
        %956 = vmatpush2.msra.mxu0 0.0
        %957 = vmatprep.subr.mxu0 0.0
        %958 = vmatpush2.msra.mxu0 0.0
        %959 = vmatprep.subr.mxu0 0.0
        %960 = vmatpush2.msra.mxu0 0.0
        %961 = vmatprep.mubr.f32.mxu0 0.0
        %962 = vmatmul.mubr.f32.gmra.mxu0 %v506
        %v963 = vpop.f32.mrf.mxu0
        %v964 = vadd.f32 0.0, %v963
        %v965 = vpop.f32.mrf.mxu0
        %v966 = vadd.f32 0.0, %v965
        %967 = vmatprep.mubr.f32.mxu0 0.0
        %968 = vmatmul.mubr.f32.gmra.mxu0 %v509
        %v969 = vpop.f32.mrf.mxu0
        %v970 = vadd.f32 0.0, %v969
        %v971 = vpop.f32.mrf.mxu0
        %v972 = vadd.f32 0.0, %v971
        %973 = vmatprep.mubr.f32.mxu0 0.0
        %974 = vmatmul.mubr.f32.gmra.mxu0 %v512
        %v975 = vpop.f32.mrf.mxu0
        %v976 = vadd.f32 0.0, %v975
        %v977 = vpop.f32.mrf.mxu0
        %v978 = vadd.f32 0.0, %v977
        %979 = vmatprep.mubr.f32.mxu0 0.0
        %980 = vmatmul.mubr.f32.gmra.mxu0 %v515
        %v981 = vpop.f32.mrf.mxu0
        %v982 = vadd.f32 0.0, %v981
        %v983 = vpop.f32.mrf.mxu0
        %v984 = vadd.f32 0.0, %v983
        %985 = vdwg.mxu0
        %vm994 = vcmask 1044480
        %v995 = vrot.slane %v964, 3
        %v996 = vrot.slane %v970, 3
        %v997 = vsel %vm994, %v995, %v996
        %v998 = vrot.slane %v966, 3
        %v999 = vrot.slane %v972, 3
        %v1000 = vsel %vm994, %v998, %v999
        %v1001 = vrot.slane %v976, 3
        %v1002 = vsel %vm994, %v996, %v1001
        %v1003 = vrot.slane %v978, 3
        %v1004 = vsel %vm994, %v999, %v1003
        %v1005 = vrot.slane %v982, 3
        %v1006 = vsel %vm994, %v1001, %v1005
        %v1007 = vrot.slane %v984, 3
        %v1008 = vsel %vm994, %v1003, %v1007
        %v1017 = vadd.f32 %v880, %v997
        %v1018 = vadd.f32 %v881, %v1000
        %v1019 = vadd.f32 %v882, %v1002
        %v1020 = vadd.f32 %v883, %v1004
        %v1021 = vadd.f32 %v884, %v1006
        %v1022 = vadd.f32 %v885, %v1008
        %v1023 = vadd.f32 %v886, %v1005
        %v1024 = vadd.f32 %v887, %v1007
        %s1025 = scalar_lea.vmem %s1, 256
        %v1026 = vld [vmem:[%s1025] sm:$0xff]
        %v1027 = vld [vmem:[%s1025 + $0x8] sm:$0xff]
        %v1028 = vld [vmem:[%s1025 + $0x10] sm:$0xff]
        %v1029 = vld [vmem:[%s1025 + $0x18] sm:$0xff]
        %v1030 = vld [vmem:[%s1025 + $0x20] sm:$0xff]
        %v1031 = vld [vmem:[%s1025 + $0x28] sm:$0xff]
        %v1032 = vld [vmem:[%s1025 + $0x30] sm:$0xff]
        %v1033 = vld [vmem:[%s1025 + $0x38] sm:$0xff]
        %1034 = vmatprep.subr.mxu0 0.0
        %1035 = vmatpush1.msra.mxu0 0.0
        %1036 = vmatprep.subr.mxu0 0.0
        %1037 = vmatpush1.msra.mxu0 0.0
        %1038 = vmatprep.subr.mxu0 0.0
        %1039 = vmatpush1.msra.mxu0 0.0
        %1040 = vmatprep.subr.mxu0 0.0
        %1041 = vmatpush1.msra.mxu0 0.0
        %1042 = vmatprep.subr.mxu0 0.0
        %1043 = vmatpush1.msra.mxu0 0.0
        %1044 = vmatprep.subr.mxu0 0.0
        %1045 = vmatpush1.msra.mxu0 0.0
        %1046 = vmatprep.subr.mxu0 0.0
        %1047 = vmatpush1.msra.mxu0 0.0
        %1048 = vmatprep.subr.mxu0 0.0
        %1049 = vmatpush1.msra.mxu0 0.0
        %1050 = vmatprep.subr.mxu0 0.0
        %1051 = vmatpush1.msra.mxu0 0.0
        %1052 = vmatprep.subr.mxu0 0.0
        %1053 = vmatpush1.msra.mxu0 0.0
        %1054 = vmatprep.subr.mxu0 0.0
        %1055 = vmatpush1.msra.mxu0 0.0
        %1056 = vmatprep.subr.mxu0 0.0
        %1057 = vmatpush1.msra.mxu0 0.0
        %1058 = vmatprep.subr.mxu0 %v1033
        %1059 = vmatpush1.msra.mxu0 %v1032
        %1060 = vmatprep.subr.mxu0 %v1031
        %1061 = vmatpush1.msra.mxu0 %v1030
        %1062 = vmatprep.subr.mxu0 %v1029
        %1063 = vmatpush1.msra.mxu0 %v1028
        %1064 = vmatprep.subr.mxu0 %v1027
        %1065 = vmatpush1.msra.mxu0 %v1026
        %1066 = vmatprep.subr.mxu0 0.0
        %1067 = vmatpush2.msra.mxu0 0.0
        %1068 = vmatprep.subr.mxu0 0.0
        %1069 = vmatpush2.msra.mxu0 0.0
        %1070 = vmatprep.subr.mxu0 0.0
        %1071 = vmatpush2.msra.mxu0 0.0
        %1072 = vmatprep.subr.mxu0 0.0
        %1073 = vmatpush2.msra.mxu0 0.0
        %1074 = vmatprep.subr.mxu0 0.0
        %1075 = vmatpush2.msra.mxu0 0.0
        %1076 = vmatprep.subr.mxu0 0.0
        %1077 = vmatpush2.msra.mxu0 0.0
        %1078 = vmatprep.subr.mxu0 0.0
        %1079 = vmatpush2.msra.mxu0 0.0
        %1080 = vmatprep.subr.mxu0 0.0
        %1081 = vmatpush2.msra.mxu0 0.0
        %1082 = vmatprep.subr.mxu0 0.0
        %1083 = vmatpush2.msra.mxu0 0.0
        %1084 = vmatprep.subr.mxu0 0.0
        %1085 = vmatpush2.msra.mxu0 0.0
        %1086 = vmatprep.subr.mxu0 0.0
        %1087 = vmatpush2.msra.mxu0 0.0
        %1088 = vmatprep.subr.mxu0 0.0
        %1089 = vmatpush2.msra.mxu0 0.0
        %1090 = vmatprep.subr.mxu0 0.0
        %1091 = vmatpush2.msra.mxu0 0.0
        %1092 = vmatprep.subr.mxu0 0.0
        %1093 = vmatpush2.msra.mxu0 0.0
        %1094 = vmatprep.subr.mxu0 0.0
        %1095 = vmatpush2.msra.mxu0 0.0
        %1096 = vmatprep.subr.mxu0 0.0
        %1097 = vmatpush2.msra.mxu0 0.0
        %1098 = vmatprep.mubr.f32.mxu0 0.0
        %1099 = vmatmul.mubr.f32.gmra.mxu0 %v506
        %v1100 = vpop.f32.mrf.mxu0
        %v1101 = vadd.f32 0.0, %v1100
        %v1102 = vpop.f32.mrf.mxu0
        %v1103 = vadd.f32 0.0, %v1102
        %1104 = vmatprep.mubr.f32.mxu0 0.0
        %1105 = vmatmul.mubr.f32.gmra.mxu0 %v509
        %v1106 = vpop.f32.mrf.mxu0
        %v1107 = vadd.f32 0.0, %v1106
        %v1108 = vpop.f32.mrf.mxu0
        %v1109 = vadd.f32 0.0, %v1108
        %1110 = vmatprep.mubr.f32.mxu0 0.0
        %1111 = vmatmul.mubr.f32.gmra.mxu0 %v512
        %v1112 = vpop.f32.mrf.mxu0
        %v1113 = vadd.f32 0.0, %v1112
        %v1114 = vpop.f32.mrf.mxu0
        %v1115 = vadd.f32 0.0, %v1114
        %1116 = vmatprep.mubr.f32.mxu0 0.0
        %1117 = vmatmul.mubr.f32.gmra.mxu0 %v515
        %v1118 = vpop.f32.mrf.mxu0
        %v1119 = vadd.f32 0.0, %v1118
        %v1120 = vpop.f32.mrf.mxu0
        %v1121 = vadd.f32 0.0, %v1120
        %1122 = vdwg.mxu0
        %vm1131 = vcmask 1043456
        %v1132 = vrot.slane %v1101, 4
        %v1133 = vrot.slane %v1107, 4
        %v1134 = vsel %vm1131, %v1132, %v1133
        %v1135 = vrot.slane %v1103, 4
        %v1136 = vrot.slane %v1109, 4
        %v1137 = vsel %vm1131, %v1135, %v1136
        %v1138 = vrot.slane %v1113, 4
        %v1139 = vsel %vm1131, %v1133, %v1138
        %v1140 = vrot.slane %v1115, 4
        %v1141 = vsel %vm1131, %v1136, %v1140
        %v1142 = vrot.slane %v1119, 4
        %v1143 = vsel %vm1131, %v1138, %v1142
        %v1144 = vrot.slane %v1121, 4
        %v1145 = vsel %vm1131, %v1140, %v1144
        %v1154 = vadd.f32 %v1017, %v1134
        %v1155 = vadd.f32 %v1018, %v1137
        %v1156 = vadd.f32 %v1019, %v1139
        %v1157 = vadd.f32 %v1020, %v1141
        %v1158 = vadd.f32 %v1021, %v1143
        %v1159 = vadd.f32 %v1022, %v1145
        %v1160 = vadd.f32 %v1023, %v1142
        %v1161 = vadd.f32 %v1024, %v1144
        %v1162 = vld [vmem:[%s2] sm:$0x3]
        %v1164 = vlaneseq
        %v1165 = vshrl.u32 %v1164, 7
        %v1166 = vsub.s32 0, %v1165
        %v1167 = vrot.slane %v1162, %v1166
        %v1168 = vlaneseq
        %v1169 = vshrl.u32 %v1168, 7
        %v1170 = vsub.s32 1, %v1169
        %v1171 = vrot.slane %v1162, %v1170
        %v1174 = vadd.f32 %v1154, %v1167
        %v1175 = vadd.f32 %v1155, %v1171
        %v1176 = vadd.f32 %v1156, %v1167
        %v1177 = vadd.f32 %v1157, %v1171
        %v1178 = vadd.f32 %v1158, %v1167
        %v1179 = vadd.f32 %v1159, %v1171
        %v1180 = vadd.f32 %v1160, %v1167
        %v1181 = vadd.f32 %v1161, %v1171
        %v1182 = vtanh.pop %v1174
        %v1183 = vtanh.pop %v1175
        %v1184 = vtanh.pop %v1176
        %v1185 = vtanh.pop %v1177
        %v1186 = vtanh.pop %v1178
        %v1187 = vtanh.pop %v1179
        %v1188 = vtanh.pop %v1180
        %v1189 = vtanh.pop %v1181
        %v1190 = vld [vmem:[%s3] sm:$0xff]
        %v1191 = vld [vmem:[%s3 + $0x8] sm:$0x3f]
        %vm1192 = vcmask 228352
        %v1194 = vsel %vm1192, %v1190, 0
        %v1197 = vsel %vm1192, %v1191, 0
        %v1200 = vsel %vm1131, %v1188, 0
        %v1203 = vsel %vm1131, %v1189, 0
        %1205 = vmatprep.subr.mxu0 0.0
        %1206 = vmatpush1.msra.mxu0 0.0
        %1207 = vmatprep.subr.mxu0 0.0
        %1208 = vmatpush1.msra.mxu0 0.0
        %1209 = vmatprep.subr.mxu0 0.0
        %1210 = vmatpush1.msra.mxu0 0.0
        %1211 = vmatprep.subr.mxu0 0.0
        %1212 = vmatpush1.msra.mxu0 0.0
        %1213 = vmatprep.subr.mxu0 0.0
        %1214 = vmatpush1.msra.mxu0 0.0
        %1215 = vmatprep.subr.mxu0 0.0
        %1216 = vmatpush1.msra.mxu0 0.0
        %1217 = vmatprep.subr.mxu0 0.0
        %1218 = vmatpush1.msra.mxu0 0.0
        %1219 = vmatprep.subr.mxu0 0.0
        %1220 = vmatpush1.msra.mxu0 0.0
        %1221 = vmatprep.subr.mxu0 0.0
        %1222 = vmatpush1.msra.mxu0 0.0
        %1223 = vmatprep.subr.mxu0 0.0
        %1224 = vmatpush1.msra.mxu0 0.0
        %1225 = vmatprep.subr.mxu0 0.0
        %1226 = vmatpush1.msra.mxu0 0.0
        %1227 = vmatprep.subr.mxu0 0.0
        %1228 = vmatpush1.msra.mxu0 0.0
        %1229 = vmatprep.subr.mxu0 %v1203
        %1230 = vmatpush1.msra.mxu0 %v1200
        %1231 = vmatprep.subr.mxu0 %v1187
        %1232 = vmatpush1.msra.mxu0 %v1186
        %1233 = vmatprep.subr.mxu0 %v1185
        %1234 = vmatpush1.msra.mxu0 %v1184
        %1235 = vmatprep.subr.mxu0 %v1183
        %1236 = vmatpush1.msra.mxu0 %v1182
        %1237 = vmatprep.subr.mxu0 0.0
        %1238 = vmatpush2.msra.mxu0 0.0
        %1239 = vmatprep.subr.mxu0 0.0
        %1240 = vmatpush2.msra.mxu0 0.0
        %1241 = vmatprep.subr.mxu0 0.0
        %1242 = vmatpush2.msra.mxu0 0.0
        %1243 = vmatprep.subr.mxu0 0.0
        %1244 = vmatpush2.msra.mxu0 0.0
        %1245 = vmatprep.subr.mxu0 0.0
        %1246 = vmatpush2.msra.mxu0 0.0
        %1247 = vmatprep.subr.mxu0 0.0
        %1248 = vmatpush2.msra.mxu0 0.0
        %1249 = vmatprep.subr.mxu0 0.0
        %1250 = vmatpush2.msra.mxu0 0.0
        %1251 = vmatprep.subr.mxu0 0.0
        %1252 = vmatpush2.msra.mxu0 0.0
        %1253 = vmatprep.subr.mxu0 0.0
        %1254 = vmatpush2.msra.mxu0 0.0
        %1255 = vmatprep.subr.mxu0 0.0
        %1256 = vmatpush2.msra.mxu0 0.0
        %1257 = vmatprep.subr.mxu0 0.0
        %1258 = vmatpush2.msra.mxu0 0.0
        %1259 = vmatprep.subr.mxu0 0.0
        %1260 = vmatpush2.msra.mxu0 0.0
        %1261 = vmatprep.subr.mxu0 0.0
        %1262 = vmatpush2.msra.mxu0 0.0
        %1263 = vmatprep.subr.mxu0 0.0
        %1264 = vmatpush2.msra.mxu0 0.0
        %1265 = vmatprep.subr.mxu0 0.0
        %1266 = vmatpush2.msra.mxu0 0.0
        %1267 = vmatprep.subr.mxu0 0.0
        %1268 = vmatpush2.msra.mxu0 0.0
        %1269 = vmatprep.mubr.f32.mxu0 0.0
        %1270 = vmatmul.mubr.f32.gmra.mxu0 %v1194
        %v1271 = vpop.f32.mrf.mxu0
        %v1272 = vadd.f32 0.0, %v1271
        %v1273 = vpop.f32.mrf.mxu0
        %v1274 = vadd.f32 0.0, %v1273
        %1275 = vmatprep.mubr.f32.mxu0 0.0
        %1276 = vmatmul.mubr.f32.gmra.mxu0 %v1197
        %v1277 = vpop.f32.mrf.mxu0
        %v1278 = vadd.f32 0.0, %v1277
        %v1279 = vpop.f32.mrf.mxu0
        %v1280 = vadd.f32 0.0, %v1279
        %1281 = vdwg.mxu0
        %v1282 = vld [vmem:[%s4] sm:$0xff]
        %v1283 = vld [vmem:[%s4 + $0x8] sm:$0xff]
        %v1284 = vld [vmem:[%s4 + $0x10] sm:$0xff]
        %v1285 = vld [vmem:[%s4 + $0x18] sm:$0xff]
        %v1286 = vld [vmem:[%s4 + $0x20] sm:$0xff]
        %v1287 = vld [vmem:[%s4 + $0x28] sm:$0xff]
        %v1288 = vld [vmem:[%s4 + $0x30] sm:$0xff]
        %v1289 = vld [vmem:[%s4 + $0x38] sm:$0xff]
        %v1290 = vld [vmem:[%s4 + $0x40] sm:$0xff]
        %v1291 = vld [vmem:[%s4 + $0x48] sm:$0xff]
        %v1292 = vld [vmem:[%s4 + $0x50] sm:$0xff]
        %v1293 = vld [vmem:[%s4 + $0x58] sm:$0xff]
        %v1294 = vld [vmem:[%s4 + $0x60] sm:$0xff]
        %v1295 = vld [vmem:[%s4 + $0x68] sm:$0xff]
        %v1296 = vld [vmem:[%s4 + $0x70] sm:$0xff]
        %v1297 = vld [vmem:[%s4 + $0x78] sm:$0xff]
        %v1298 = vld [vmem:[%s4 + $0x80] sm:$0xff]
        %v1299 = vld [vmem:[%s4 + $0x88] sm:$0xff]
        %v1300 = vld [vmem:[%s4 + $0x90] sm:$0xff]
        %v1301 = vld [vmem:[%s4 + $0x98] sm:$0xff]
        %v1302 = vld [vmem:[%s4 + $0xa0] sm:$0xff]
        %vm1303 = vcmask 326656
        %v1305 = vsel %vm1303, %v1274, 0
        %v1308 = vsel %vm1303, %v1280, 0
        %1310 = vmatprep.subr.mxu0 0.0
        %1311 = vmatpush1.msra.mxu0 %v1297
        %1312 = vmatprep.subr.mxu0 0.0
        %1313 = vmatpush1.msra.mxu0 %v1296
        %1314 = vmatprep.subr.mxu0 0.0
        %1315 = vmatpush1.msra.mxu0 %v1295
        %1316 = vmatprep.subr.mxu0 0.0
        %1317 = vmatpush1.msra.mxu0 %v1294
        %1318 = vmatprep.subr.mxu0 0.0
        %1319 = vmatpush1.msra.mxu0 %v1293
        %1320 = vmatprep.subr.mxu0 0.0
        %1321 = vmatpush1.msra.mxu0 %v1292
        %1322 = vmatprep.subr.mxu0 0.0
        %1323 = vmatpush1.msra.mxu0 %v1291
        %1324 = vmatprep.subr.mxu0 0.0
        %1325 = vmatpush1.msra.mxu0 %v1290
        %1326 = vmatprep.subr.mxu0 0.0
        %1327 = vmatpush1.msra.mxu0 %v1289
        %1328 = vmatprep.subr.mxu0 0.0
        %1329 = vmatpush1.msra.mxu0 %v1288
        %1330 = vmatprep.subr.mxu0 0.0
        %1331 = vmatpush1.msra.mxu0 %v1287
        %1332 = vmatprep.subr.mxu0 0.0
        %1333 = vmatpush1.msra.mxu0 %v1286
        %1334 = vmatprep.subr.mxu0 0.0
        %1335 = vmatpush1.msra.mxu0 %v1285
        %1336 = vmatprep.subr.mxu0 0.0
        %1337 = vmatpush1.msra.mxu0 %v1284
        %1338 = vmatprep.subr.mxu0 0.0
        %1339 = vmatpush1.msra.mxu0 %v1283
        %1340 = vmatprep.subr.mxu0 0.0
        %1341 = vmatpush1.msra.mxu0 %v1282
        %1342 = vmatprep.subr.mxu0 0.0
        %1343 = vmatpush2.msra.mxu0 0.0
        %1344 = vmatprep.subr.mxu0 0.0
        %1345 = vmatpush2.msra.mxu0 0.0
        %1346 = vmatprep.subr.mxu0 0.0
        %1347 = vmatpush2.msra.mxu0 0.0
        %1348 = vmatprep.subr.mxu0 0.0
        %1349 = vmatpush2.msra.mxu0 0.0
        %1350 = vmatprep.subr.mxu0 0.0
        %1351 = vmatpush2.msra.mxu0 0.0
        %1352 = vmatprep.subr.mxu0 0.0
        %1353 = vmatpush2.msra.mxu0 0.0
        %1354 = vmatprep.subr.mxu0 0.0
        %1355 = vmatpush2.msra.mxu0 0.0
        %1356 = vmatprep.subr.mxu0 0.0
        %1357 = vmatpush2.msra.mxu0 0.0
        %1358 = vmatprep.subr.mxu0 0.0
        %1359 = vmatpush2.msra.mxu0 0.0
        %1360 = vmatprep.subr.mxu0 0.0
        %1361 = vmatpush2.msra.mxu0 0.0
        %1362 = vmatprep.subr.mxu0 0.0
        %1363 = vmatpush2.msra.mxu0 0.0
        %1364 = vmatprep.subr.mxu0 0.0
        %1365 = vmatpush2.msra.mxu0 %v1302
        %1366 = vmatprep.subr.mxu0 0.0
        %1367 = vmatpush2.msra.mxu0 %v1301
        %1368 = vmatprep.subr.mxu0 0.0
        %1369 = vmatpush2.msra.mxu0 %v1300
        %1370 = vmatprep.subr.mxu0 0.0
        %1371 = vmatpush2.msra.mxu0 %v1299
        %1372 = vmatprep.subr.mxu0 0.0
        %1373 = vmatpush2.msra.mxu0 %v1298
        %1374 = vmatprep.mubr.f32.mxu0 %v1305
        %1375 = vmatmul.mubr.f32.gmra.mxu0 %v1272
        %v1376 = vpop.f32.mrf.mxu0
        %v1377 = vadd.f32 0.0, %v1376
        %v1378 = vpop.f32.mrf.mxu0
        %1379 = vmatprep.mubr.f32.mxu0 %v1308
        %1380 = vmatmul.mubr.f32.gmra.mxu0 %v1278
        %v1381 = vpop.f32.mrf.mxu0
        %v1382 = vadd.f32 0.0, %v1381
        %v1383 = vpop.f32.mrf.mxu0
        %1384 = vdwg.mxu0
        %v1385 = vld [vmem:[%s5] sm:$0xff]
        %v1386 = vld [vmem:[%s5 + $0x8] sm:$0xff]
        %v1387 = vld [vmem:[%s5 + $0x10] sm:$0xff]
        %v1388 = vld [vmem:[%s5 + $0x18] sm:$0xff]
        %v1389 = vld [vmem:[%s5 + $0x20] sm:$0xff]
        %v1390 = vld [vmem:[%s5 + $0x28] sm:$0xff]
        %v1391 = vld [vmem:[%s5 + $0x30] sm:$0xff]
        %v1392 = vld [vmem:[%s5 + $0x38] sm:$0xff]
        %v1393 = vld [vmem:[%s5 + $0x40] sm:$0xff]
        %v1394 = vld [vmem:[%s5 + $0x48] sm:$0xff]
        %v1395 = vld [vmem:[%s5 + $0x50] sm:$0xff]
        %v1396 = vld [vmem:[%s5 + $0x58] sm:$0xff]
        %v1397 = vld [vmem:[%s5 + $0x60] sm:$0xff]
        %v1398 = vld [vmem:[%s5 + $0x68] sm:$0xff]
        %v1399 = vld [vmem:[%s5 + $0x70] sm:$0xff]
        %v1400 = vld [vmem:[%s5 + $0x78] sm:$0xff]
        %v1401 = vld [vmem:[%s5 + $0x80] sm:$0xff]
        %v1402 = vld [vmem:[%s5 + $0x88] sm:$0xff]
        %v1403 = vld [vmem:[%s5 + $0x90] sm:$0xff]
        %v1404 = vld [vmem:[%s5 + $0x98] sm:$0xff]
        %v1405 = vld [vmem:[%s5 + $0xa0] sm:$0xf]
        %v1406 = vld [vmem:[%s5 + $0xa8] sm:$0xf]
        %vm1407 = vcmask 687104
        %v1409 = vsel %vm1407, %v1377, 0
        %v1412 = vsel %vm1407, %v1382, 0
        %v1415 = vsel %vm1131, %v1405, 0
        %v1418 = vsel %vm1131, %v1406, 0
        %1420 = vmatprep.subr.mxu0 0.0
        %1421 = vmatpush1.msra.mxu0 0.0
        %1422 = vmatprep.subr.mxu0 0.0
        %1423 = vmatpush1.msra.mxu0 0.0
        %1424 = vmatprep.subr.mxu0 0.0
        %1425 = vmatpush1.msra.mxu0 0.0
        %1426 = vmatprep.subr.mxu0 0.0
        %1427 = vmatpush1.msra.mxu0 0.0
        %1428 = vmatprep.subr.mxu0 0.0
        %1429 = vmatpush1.msra.mxu0 0.0
        %1430 = vmatprep.subr.mxu0 %v1418
        %1431 = vmatpush1.msra.mxu0 %v1415
        %1432 = vmatprep.subr.mxu0 %v1404
        %1433 = vmatpush1.msra.mxu0 %v1403
        %1434 = vmatprep.subr.mxu0 %v1402
        %1435 = vmatpush1.msra.mxu0 %v1401
        %1436 = vmatprep.subr.mxu0 %v1400
        %1437 = vmatpush1.msra.mxu0 %v1399
        %1438 = vmatprep.subr.mxu0 %v1398
        %1439 = vmatpush1.msra.mxu0 %v1397
        %1440 = vmatprep.subr.mxu0 %v1396
        %1441 = vmatpush1.msra.mxu0 %v1395
        %1442 = vmatprep.subr.mxu0 %v1394
        %1443 = vmatpush1.msra.mxu0 %v1393
        %1444 = vmatprep.subr.mxu0 %v1392
        %1445 = vmatpush1.msra.mxu0 %v1391
        %1446 = vmatprep.subr.mxu0 %v1390
        %1447 = vmatpush1.msra.mxu0 %v1389
        %1448 = vmatprep.subr.mxu0 %v1388
        %1449 = vmatpush1.msra.mxu0 %v1387
        %1450 = vmatprep.subr.mxu0 %v1386
        %1451 = vmatpush1.msra.mxu0 %v1385
        %1452 = vmatprep.subr.mxu0 0.0
        %1453 = vmatpush2.msra.mxu0 0.0
        %1454 = vmatprep.subr.mxu0 0.0
        %1455 = vmatpush2.msra.mxu0 0.0
        %1456 = vmatprep.subr.mxu0 0.0
        %1457 = vmatpush2.msra.mxu0 0.0
        %1458 = vmatprep.subr.mxu0 0.0
        %1459 = vmatpush2.msra.mxu0 0.0
        %1460 = vmatprep.subr.mxu0 0.0
        %1461 = vmatpush2.msra.mxu0 0.0
        %1462 = vmatprep.subr.mxu0 0.0
        %1463 = vmatpush2.msra.mxu0 0.0
        %1464 = vmatprep.subr.mxu0 0.0
        %1465 = vmatpush2.msra.mxu0 0.0
        %1466 = vmatprep.subr.mxu0 0.0
        %1467 = vmatpush2.msra.mxu0 0.0
        %1468 = vmatprep.subr.mxu0 0.0
        %1469 = vmatpush2.msra.mxu0 0.0
        %1470 = vmatprep.subr.mxu0 0.0
        %1471 = vmatpush2.msra.mxu0 0.0
        %1472 = vmatprep.subr.mxu0 0.0
        %1473 = vmatpush2.msra.mxu0 0.0
        %1474 = vmatprep.subr.mxu0 0.0
        %1475 = vmatpush2.msra.mxu0 0.0
        %1476 = vmatprep.subr.mxu0 0.0
        %1477 = vmatpush2.msra.mxu0 0.0
        %1478 = vmatprep.subr.mxu0 0.0
        %1479 = vmatpush2.msra.mxu0 0.0
        %1480 = vmatprep.subr.mxu0 0.0
        %1481 = vmatpush2.msra.mxu0 0.0
        %1482 = vmatprep.subr.mxu0 0.0
        %1483 = vmatpush2.msra.mxu0 0.0
        %1484 = vmatprep.mubr.f32.mxu0 0.0
        %1485 = vmatmul.mubr.f32.gmra.mxu0 %v1409
        %v1486 = vpop.f32.mrf.mxu0
        %v1487 = vadd.f32 0.0, %v1486
        %v1488 = vpop.f32.mrf.mxu0
        %v1489 = vadd.f32 0.0, %v1488
        %1490 = vmatprep.mubr.f32.mxu0 0.0
        %1491 = vmatmul.mubr.f32.gmra.mxu0 %v1412
        %v1492 = vpop.f32.mrf.mxu0
        %v1493 = vadd.f32 0.0, %v1492
        %v1494 = vpop.f32.mrf.mxu0
        %v1495 = vadd.f32 0.0, %v1494
        %1496 = vdwg.mxu0
        %v1497 = vadd.f32 %v1487, 0.0
        %v1498 = vadd.f32 %v1489, 0.0
        %v1499 = vadd.f32 %v1493, 0.0
        %v1500 = vadd.f32 %v1495, 0.0
        %s1501 = scalar_lea.vmem %s5, 176
        %v1502 = vld [vmem:[%s1501] sm:$0xff]
        %v1503 = vld [vmem:[%s1501 + $0x8] sm:$0xff]
        %v1504 = vld [vmem:[%s1501 + $0x10] sm:$0xff]
        %v1505 = vld [vmem:[%s1501 + $0x18] sm:$0xff]
        %v1506 = vld [vmem:[%s1501 + $0x20] sm:$0xff]
        %v1507 = vld [vmem:[%s1501 + $0x28] sm:$0xff]
        %v1508 = vld [vmem:[%s1501 + $0x30] sm:$0xff]
        %v1509 = vld [vmem:[%s1501 + $0x38] sm:$0xff]
        %v1510 = vld [vmem:[%s1501 + $0x40] sm:$0xff]
        %v1511 = vld [vmem:[%s1501 + $0x48] sm:$0xff]
        %v1512 = vld [vmem:[%s1501 + $0x50] sm:$0xff]
        %v1513 = vld [vmem:[%s1501 + $0x58] sm:$0xff]
        %v1514 = vld [vmem:[%s1501 + $0x60] sm:$0xff]
        %v1515 = vld [vmem:[%s1501 + $0x68] sm:$0xff]
        %v1516 = vld [vmem:[%s1501 + $0x70] sm:$0xff]
        %v1517 = vld [vmem:[%s1501 + $0x78] sm:$0xff]
        %v1518 = vld [vmem:[%s1501 + $0x80] sm:$0xff]
        %v1519 = vld [vmem:[%s1501 + $0x88] sm:$0xff]
        %v1520 = vld [vmem:[%s1501 + $0x90] sm:$0xff]
        %v1521 = vld [vmem:[%s1501 + $0x98] sm:$0xff]
        %v1522 = vld [vmem:[%s1501 + $0xa0] sm:$0xf]
        %v1523 = vld [vmem:[%s1501 + $0xa8] sm:$0xf]
        %v1525 = vsel %vm1131, %v1522, 0
        %v1528 = vsel %vm1131, %v1523, 0
        %1530 = vmatprep.subr.mxu0 0.0
        %1531 = vmatpush1.msra.mxu0 0.0
        %1532 = vmatprep.subr.mxu0 0.0
        %1533 = vmatpush1.msra.mxu0 0.0
        %1534 = vmatprep.subr.mxu0 0.0
        %1535 = vmatpush1.msra.mxu0 0.0
        %1536 = vmatprep.subr.mxu0 0.0
        %1537 = vmatpush1.msra.mxu0 0.0
        %1538 = vmatprep.subr.mxu0 0.0
        %1539 = vmatpush1.msra.mxu0 0.0
        %1540 = vmatprep.subr.mxu0 %v1528
        %1541 = vmatpush1.msra.mxu0 %v1525
        %1542 = vmatprep.subr.mxu0 %v1521
        %1543 = vmatpush1.msra.mxu0 %v1520
        %1544 = vmatprep.subr.mxu0 %v1519
        %1545 = vmatpush1.msra.mxu0 %v1518
        %1546 = vmatprep.subr.mxu0 %v1517
        %1547 = vmatpush1.msra.mxu0 %v1516
        %1548 = vmatprep.subr.mxu0 %v1515
        %1549 = vmatpush1.msra.mxu0 %v1514
        %1550 = vmatprep.subr.mxu0 %v1513
        %1551 = vmatpush1.msra.mxu0 %v1512
        %1552 = vmatprep.subr.mxu0 %v1511
        %1553 = vmatpush1.msra.mxu0 %v1510
        %1554 = vmatprep.subr.mxu0 %v1509
        %1555 = vmatpush1.msra.mxu0 %v1508
        %1556 = vmatprep.subr.mxu0 %v1507
        %1557 = vmatpush1.msra.mxu0 %v1506
        %1558 = vmatprep.subr.mxu0 %v1505
        %1559 = vmatpush1.msra.mxu0 %v1504
        %1560 = vmatprep.subr.mxu0 %v1503
        %1561 = vmatpush1.msra.mxu0 %v1502
        %1562 = vmatprep.subr.mxu0 0.0
        %1563 = vmatpush2.msra.mxu0 0.0
        %1564 = vmatprep.subr.mxu0 0.0
        %1565 = vmatpush2.msra.mxu0 0.0
        %1566 = vmatprep.subr.mxu0 0.0
        %1567 = vmatpush2.msra.mxu0 0.0
        %1568 = vmatprep.subr.mxu0 0.0
        %1569 = vmatpush2.msra.mxu0 0.0
        %1570 = vmatprep.subr.mxu0 0.0
        %1571 = vmatpush2.msra.mxu0 0.0
        %1572 = vmatprep.subr.mxu0 0.0
        %1573 = vmatpush2.msra.mxu0 0.0
        %1574 = vmatprep.subr.mxu0 0.0
        %1575 = vmatpush2.msra.mxu0 0.0
        %1576 = vmatprep.subr.mxu0 0.0
        %1577 = vmatpush2.msra.mxu0 0.0
        %1578 = vmatprep.subr.mxu0 0.0
        %1579 = vmatpush2.msra.mxu0 0.0
        %1580 = vmatprep.subr.mxu0 0.0
        %1581 = vmatpush2.msra.mxu0 0.0
        %1582 = vmatprep.subr.mxu0 0.0
        %1583 = vmatpush2.msra.mxu0 0.0
        %1584 = vmatprep.subr.mxu0 0.0
        %1585 = vmatpush2.msra.mxu0 0.0
        %1586 = vmatprep.subr.mxu0 0.0
        %1587 = vmatpush2.msra.mxu0 0.0
        %1588 = vmatprep.subr.mxu0 0.0
        %1589 = vmatpush2.msra.mxu0 0.0
        %1590 = vmatprep.subr.mxu0 0.0
        %1591 = vmatpush2.msra.mxu0 0.0
        %1592 = vmatprep.subr.mxu0 0.0
        %1593 = vmatpush2.msra.mxu0 0.0
        %1594 = vmatprep.mubr.f32.mxu0 0.0
        %1595 = vmatmul.mubr.f32.gmra.mxu0 %v1409
        %v1596 = vpop.f32.mrf.mxu0
        %v1597 = vadd.f32 0.0, %v1596
        %v1598 = vpop.f32.mrf.mxu0
        %v1599 = vadd.f32 0.0, %v1598
        %1600 = vmatprep.mubr.f32.mxu0 0.0
        %1601 = vmatmul.mubr.f32.gmra.mxu0 %v1412
        %v1602 = vpop.f32.mrf.mxu0
        %v1603 = vadd.f32 0.0, %v1602
        %v1604 = vpop.f32.mrf.mxu0
        %v1605 = vadd.f32 0.0, %v1604
        %1606 = vdwg.mxu0
        %v1611 = vrot.slane %v1597, 1
        %v1612 = vrot.slane %v1603, 1
        %v1613 = vsel %vm720, %v1611, %v1612
        %v1614 = vrot.slane %v1599, 1
        %v1615 = vrot.slane %v1605, 1
        %v1616 = vsel %vm720, %v1614, %v1615
        %v1621 = vadd.f32 %v1497, %v1613
        %v1622 = vadd.f32 %v1498, %v1616
        %v1623 = vadd.f32 %v1499, %v1612
        %v1624 = vadd.f32 %v1500, %v1615
        %s1625 = scalar_lea.vmem %s5, 352
        %v1626 = vld [vmem:[%s1625] sm:$0xff]
        %v1627 = vld [vmem:[%s1625 + $0x8] sm:$0xff]
        %v1628 = vld [vmem:[%s1625 + $0x10] sm:$0xff]
        %v1629 = vld [vmem:[%s1625 + $0x18] sm:$0xff]
        %v1630 = vld [vmem:[%s1625 + $0x20] sm:$0xff]
        %v1631 = vld [vmem:[%s1625 + $0x28] sm:$0xff]
        %v1632 = vld [vmem:[%s1625 + $0x30] sm:$0xff]
        %v1633 = vld [vmem:[%s1625 + $0x38] sm:$0xff]
        %v1634 = vld [vmem:[%s1625 + $0x40] sm:$0xff]
        %v1635 = vld [vmem:[%s1625 + $0x48] sm:$0xff]
        %v1636 = vld [vmem:[%s1625 + $0x50] sm:$0xff]
        %v1637 = vld [vmem:[%s1625 + $0x58] sm:$0xff]
        %v1638 = vld [vmem:[%s1625 + $0x60] sm:$0xff]
        %v1639 = vld [vmem:[%s1625 + $0x68] sm:$0xff]
        %v1640 = vld [vmem:[%s1625 + $0x70] sm:$0xff]
        %v1641 = vld [vmem:[%s1625 + $0x78] sm:$0xff]
        %v1642 = vld [vmem:[%s1625 + $0x80] sm:$0xff]
        %v1643 = vld [vmem:[%s1625 + $0x88] sm:$0xff]
        %v1644 = vld [vmem:[%s1625 + $0x90] sm:$0xff]
        %v1645 = vld [vmem:[%s1625 + $0x98] sm:$0xff]
        %v1646 = vld [vmem:[%s1625 + $0xa0] sm:$0xf]
        %v1647 = vld [vmem:[%s1625 + $0xa8] sm:$0xf]
        %v1649 = vsel %vm1131, %v1646, 0
        %v1652 = vsel %vm1131, %v1647, 0
        %1654 = vmatprep.subr.mxu0 0.0
        %1655 = vmatpush1.msra.mxu0 0.0
        %1656 = vmatprep.subr.mxu0 0.0
        %1657 = vmatpush1.msra.mxu0 0.0
        %1658 = vmatprep.subr.mxu0 0.0
        %1659 = vmatpush1.msra.mxu0 0.0
        %1660 = vmatprep.subr.mxu0 0.0
        %1661 = vmatpush1.msra.mxu0 0.0
        %1662 = vmatprep.subr.mxu0 0.0
        %1663 = vmatpush1.msra.mxu0 0.0
        %1664 = vmatprep.subr.mxu0 %v1652
        %1665 = vmatpush1.msra.mxu0 %v1649
        %1666 = vmatprep.subr.mxu0 %v1645
        %1667 = vmatpush1.msra.mxu0 %v1644
        %1668 = vmatprep.subr.mxu0 %v1643
        %1669 = vmatpush1.msra.mxu0 %v1642
        %1670 = vmatprep.subr.mxu0 %v1641
        %1671 = vmatpush1.msra.mxu0 %v1640
        %1672 = vmatprep.subr.mxu0 %v1639
        %1673 = vmatpush1.msra.mxu0 %v1638
        %1674 = vmatprep.subr.mxu0 %v1637
        %1675 = vmatpush1.msra.mxu0 %v1636
        %1676 = vmatprep.subr.mxu0 %v1635
        %1677 = vmatpush1.msra.mxu0 %v1634
        %1678 = vmatprep.subr.mxu0 %v1633
        %1679 = vmatpush1.msra.mxu0 %v1632
        %1680 = vmatprep.subr.mxu0 %v1631
        %1681 = vmatpush1.msra.mxu0 %v1630
        %1682 = vmatprep.subr.mxu0 %v1629
        %1683 = vmatpush1.msra.mxu0 %v1628
        %1684 = vmatprep.subr.mxu0 %v1627
        %1685 = vmatpush1.msra.mxu0 %v1626
        %1686 = vmatprep.subr.mxu0 0.0
        %1687 = vmatpush2.msra.mxu0 0.0
        %1688 = vmatprep.subr.mxu0 0.0
        %1689 = vmatpush2.msra.mxu0 0.0
        %1690 = vmatprep.subr.mxu0 0.0
        %1691 = vmatpush2.msra.mxu0 0.0
        %1692 = vmatprep.subr.mxu0 0.0
        %1693 = vmatpush2.msra.mxu0 0.0
        %1694 = vmatprep.subr.mxu0 0.0
        %1695 = vmatpush2.msra.mxu0 0.0
        %1696 = vmatprep.subr.mxu0 0.0
        %1697 = vmatpush2.msra.mxu0 0.0
        %1698 = vmatprep.subr.mxu0 0.0
        %1699 = vmatpush2.msra.mxu0 0.0
        %1700 = vmatprep.subr.mxu0 0.0
        %1701 = vmatpush2.msra.mxu0 0.0
        %1702 = vmatprep.subr.mxu0 0.0
        %1703 = vmatpush2.msra.mxu0 0.0
        %1704 = vmatprep.subr.mxu0 0.0
        %1705 = vmatpush2.msra.mxu0 0.0
        %1706 = vmatprep.subr.mxu0 0.0
        %1707 = vmatpush2.msra.mxu0 0.0
        %1708 = vmatprep.subr.mxu0 0.0
        %1709 = vmatpush2.msra.mxu0 0.0
        %1710 = vmatprep.subr.mxu0 0.0
        %1711 = vmatpush2.msra.mxu0 0.0
        %1712 = vmatprep.subr.mxu0 0.0
        %1713 = vmatpush2.msra.mxu0 0.0
        %1714 = vmatprep.subr.mxu0 0.0
        %1715 = vmatpush2.msra.mxu0 0.0
        %1716 = vmatprep.subr.mxu0 0.0
        %1717 = vmatpush2.msra.mxu0 0.0
        %1718 = vmatprep.mubr.f32.mxu0 0.0
        %1719 = vmatmul.mubr.f32.gmra.mxu0 %v1409
        %v1720 = vpop.f32.mrf.mxu0
        %v1721 = vadd.f32 0.0, %v1720
        %v1722 = vpop.f32.mrf.mxu0
        %v1723 = vadd.f32 0.0, %v1722
        %1724 = vmatprep.mubr.f32.mxu0 0.0
        %1725 = vmatmul.mubr.f32.gmra.mxu0 %v1412
        %v1726 = vpop.f32.mrf.mxu0
        %v1727 = vadd.f32 0.0, %v1726
        %v1728 = vpop.f32.mrf.mxu0
        %v1729 = vadd.f32 0.0, %v1728
        %1730 = vdwg.mxu0
        %v1735 = vrot.slane %v1721, 2
        %v1736 = vrot.slane %v1727, 2
        %v1737 = vsel %vm857, %v1735, %v1736
        %v1738 = vrot.slane %v1723, 2
        %v1739 = vrot.slane %v1729, 2
        %v1740 = vsel %vm857, %v1738, %v1739
        %v1745 = vadd.f32 %v1621, %v1737
        %v1746 = vadd.f32 %v1622, %v1740
        %v1747 = vadd.f32 %v1623, %v1736
        %v1748 = vadd.f32 %v1624, %v1739
        %s1749 = scalar_lea.vmem %s5, 528
        %v1750 = vld [vmem:[%s1749] sm:$0xff]
        %v1751 = vld [vmem:[%s1749 + $0x8] sm:$0xff]
        %v1752 = vld [vmem:[%s1749 + $0x10] sm:$0xff]
        %v1753 = vld [vmem:[%s1749 + $0x18] sm:$0xff]
        %v1754 = vld [vmem:[%s1749 + $0x20] sm:$0xff]
        %v1755 = vld [vmem:[%s1749 + $0x28] sm:$0xff]
        %v1756 = vld [vmem:[%s1749 + $0x30] sm:$0xff]
        %v1757 = vld [vmem:[%s1749 + $0x38] sm:$0xff]
        %v1758 = vld [vmem:[%s1749 + $0x40] sm:$0xff]
        %v1759 = vld [vmem:[%s1749 + $0x48] sm:$0xff]
        %v1760 = vld [vmem:[%s1749 + $0x50] sm:$0xff]
        %v1761 = vld [vmem:[%s1749 + $0x58] sm:$0xff]
        %v1762 = vld [vmem:[%s1749 + $0x60] sm:$0xff]
        %v1763 = vld [vmem:[%s1749 + $0x68] sm:$0xff]
        %v1764 = vld [vmem:[%s1749 + $0x70] sm:$0xff]
        %v1765 = vld [vmem:[%s1749 + $0x78] sm:$0xff]
        %v1766 = vld [vmem:[%s1749 + $0x80] sm:$0xff]
        %v1767 = vld [vmem:[%s1749 + $0x88] sm:$0xff]
        %v1768 = vld [vmem:[%s1749 + $0x90] sm:$0xff]
        %v1769 = vld [vmem:[%s1749 + $0x98] sm:$0xff]
        %v1770 = vld [vmem:[%s1749 + $0xa0] sm:$0xf]
        %v1771 = vld [vmem:[%s1749 + $0xa8] sm:$0xf]
        %v1773 = vsel %vm1131, %v1770, 0
        %v1776 = vsel %vm1131, %v1771, 0
        %1778 = vmatprep.subr.mxu0 0.0
        %1779 = vmatpush1.msra.mxu0 0.0
        %1780 = vmatprep.subr.mxu0 0.0
        %1781 = vmatpush1.msra.mxu0 0.0
        %1782 = vmatprep.subr.mxu0 0.0
        %1783 = vmatpush1.msra.mxu0 0.0
        %1784 = vmatprep.subr.mxu0 0.0
        %1785 = vmatpush1.msra.mxu0 0.0
        %1786 = vmatprep.subr.mxu0 0.0
        %1787 = vmatpush1.msra.mxu0 0.0
        %1788 = vmatprep.subr.mxu0 %v1776
        %1789 = vmatpush1.msra.mxu0 %v1773
        %1790 = vmatprep.subr.mxu0 %v1769
        %1791 = vmatpush1.msra.mxu0 %v1768
        %1792 = vmatprep.subr.mxu0 %v1767
        %1793 = vmatpush1.msra.mxu0 %v1766
        %1794 = vmatprep.subr.mxu0 %v1765
        %1795 = vmatpush1.msra.mxu0 %v1764
        %1796 = vmatprep.subr.mxu0 %v1763
        %1797 = vmatpush1.msra.mxu0 %v1762
        %1798 = vmatprep.subr.mxu0 %v1761
        %1799 = vmatpush1.msra.mxu0 %v1760
        %1800 = vmatprep.subr.mxu0 %v1759
        %1801 = vmatpush1.msra.mxu0 %v1758
        %1802 = vmatprep.subr.mxu0 %v1757
        %1803 = vmatpush1.msra.mxu0 %v1756
        %1804 = vmatprep.subr.mxu0 %v1755
        %1805 = vmatpush1.msra.mxu0 %v1754
        %1806 = vmatprep.subr.mxu0 %v1753
        %1807 = vmatpush1.msra.mxu0 %v1752
        %1808 = vmatprep.subr.mxu0 %v1751
        %1809 = vmatpush1.msra.mxu0 %v1750
        %1810 = vmatprep.subr.mxu0 0.0
        %1811 = vmatpush2.msra.mxu0 0.0
        %1812 = vmatprep.subr.mxu0 0.0
        %1813 = vmatpush2.msra.mxu0 0.0
        %1814 = vmatprep.subr.mxu0 0.0
        %1815 = vmatpush2.msra.mxu0 0.0
        %1816 = vmatprep.subr.mxu0 0.0
        %1817 = vmatpush2.msra.mxu0 0.0
        %1818 = vmatprep.subr.mxu0 0.0
        %1819 = vmatpush2.msra.mxu0 0.0
        %1820 = vmatprep.subr.mxu0 0.0
        %1821 = vmatpush2.msra.mxu0 0.0
        %1822 = vmatprep.subr.mxu0 0.0
        %1823 = vmatpush2.msra.mxu0 0.0
        %1824 = vmatprep.subr.mxu0 0.0
        %1825 = vmatpush2.msra.mxu0 0.0
        %1826 = vmatprep.subr.mxu0 0.0
        %1827 = vmatpush2.msra.mxu0 0.0
        %1828 = vmatprep.subr.mxu0 0.0
        %1829 = vmatpush2.msra.mxu0 0.0
        %1830 = vmatprep.subr.mxu0 0.0
        %1831 = vmatpush2.msra.mxu0 0.0
        %1832 = vmatprep.subr.mxu0 0.0
        %1833 = vmatpush2.msra.mxu0 0.0
        %1834 = vmatprep.subr.mxu0 0.0
        %1835 = vmatpush2.msra.mxu0 0.0
        %1836 = vmatprep.subr.mxu0 0.0
        %1837 = vmatpush2.msra.mxu0 0.0
        %1838 = vmatprep.subr.mxu0 0.0
        %1839 = vmatpush2.msra.mxu0 0.0
        %1840 = vmatprep.subr.mxu0 0.0
        %1841 = vmatpush2.msra.mxu0 0.0
        %1842 = vmatprep.mubr.f32.mxu0 0.0
        %1843 = vmatmul.mubr.f32.gmra.mxu0 %v1409
        %v1844 = vpop.f32.mrf.mxu0
        %v1845 = vadd.f32 0.0, %v1844
        %v1846 = vpop.f32.mrf.mxu0
        %v1847 = vadd.f32 0.0, %v1846
        %1848 = vmatprep.mubr.f32.mxu0 0.0
        %1849 = vmatmul.mubr.f32.gmra.mxu0 %v1412
        %v1850 = vpop.f32.mrf.mxu0
        %v1851 = vadd.f32 0.0, %v1850
        %v1852 = vpop.f32.mrf.mxu0
        %v1853 = vadd.f32 0.0, %v1852
        %1854 = vdwg.mxu0
        %v1859 = vrot.slane %v1845, 3
        %v1860 = vrot.slane %v1851, 3
        %v1861 = vsel %vm994, %v1859, %v1860
        %v1862 = vrot.slane %v1847, 3
        %v1863 = vrot.slane %v1853, 3
        %v1864 = vsel %vm994, %v1862, %v1863
        %v1869 = vadd.f32 %v1745, %v1861
        %v1870 = vadd.f32 %v1746, %v1864
        %v1871 = vadd.f32 %v1747, %v1860
        %v1872 = vadd.f32 %v1748, %v1863
        %s1873 = scalar_lea.vmem %s5, 704
        %v1874 = vld [vmem:[%s1873] sm:$0xff]
        %v1875 = vld [vmem:[%s1873 + $0x8] sm:$0xff]
        %v1876 = vld [vmem:[%s1873 + $0x10] sm:$0xff]
        %v1877 = vld [vmem:[%s1873 + $0x18] sm:$0xff]
        %v1878 = vld [vmem:[%s1873 + $0x20] sm:$0xff]
        %v1879 = vld [vmem:[%s1873 + $0x28] sm:$0xff]
        %v1880 = vld [vmem:[%s1873 + $0x30] sm:$0xff]
        %v1881 = vld [vmem:[%s1873 + $0x38] sm:$0xff]
        %v1882 = vld [vmem:[%s1873 + $0x40] sm:$0xff]
        %v1883 = vld [vmem:[%s1873 + $0x48] sm:$0xff]
        %v1884 = vld [vmem:[%s1873 + $0x50] sm:$0xff]
        %v1885 = vld [vmem:[%s1873 + $0x58] sm:$0xff]
        %v1886 = vld [vmem:[%s1873 + $0x60] sm:$0xff]
        %v1887 = vld [vmem:[%s1873 + $0x68] sm:$0xff]
        %v1888 = vld [vmem:[%s1873 + $0x70] sm:$0xff]
        %v1889 = vld [vmem:[%s1873 + $0x78] sm:$0xff]
        %v1890 = vld [vmem:[%s1873 + $0x80] sm:$0xff]
        %v1891 = vld [vmem:[%s1873 + $0x88] sm:$0xff]
        %v1892 = vld [vmem:[%s1873 + $0x90] sm:$0xff]
        %v1893 = vld [vmem:[%s1873 + $0x98] sm:$0xff]
        %v1894 = vld [vmem:[%s1873 + $0xa0] sm:$0xf]
        %v1895 = vld [vmem:[%s1873 + $0xa8] sm:$0xf]
        %v1897 = vsel %vm1131, %v1894, 0
        %v1900 = vsel %vm1131, %v1895, 0
        %1902 = vmatprep.subr.mxu0 0.0
        %1903 = vmatpush1.msra.mxu0 0.0
        %1904 = vmatprep.subr.mxu0 0.0
        %1905 = vmatpush1.msra.mxu0 0.0
        %1906 = vmatprep.subr.mxu0 0.0
        %1907 = vmatpush1.msra.mxu0 0.0
        %1908 = vmatprep.subr.mxu0 0.0
        %1909 = vmatpush1.msra.mxu0 0.0
        %1910 = vmatprep.subr.mxu0 0.0
        %1911 = vmatpush1.msra.mxu0 0.0
        %1912 = vmatprep.subr.mxu0 %v1900
        %1913 = vmatpush1.msra.mxu0 %v1897
        %1914 = vmatprep.subr.mxu0 %v1893
        %1915 = vmatpush1.msra.mxu0 %v1892
        %1916 = vmatprep.subr.mxu0 %v1891
        %1917 = vmatpush1.msra.mxu0 %v1890
        %1918 = vmatprep.subr.mxu0 %v1889
        %1919 = vmatpush1.msra.mxu0 %v1888
        %1920 = vmatprep.subr.mxu0 %v1887
        %1921 = vmatpush1.msra.mxu0 %v1886
        %1922 = vmatprep.subr.mxu0 %v1885
        %1923 = vmatpush1.msra.mxu0 %v1884
        %1924 = vmatprep.subr.mxu0 %v1883
        %1925 = vmatpush1.msra.mxu0 %v1882
        %1926 = vmatprep.subr.mxu0 %v1881
        %1927 = vmatpush1.msra.mxu0 %v1880
        %1928 = vmatprep.subr.mxu0 %v1879
        %1929 = vmatpush1.msra.mxu0 %v1878
        %1930 = vmatprep.subr.mxu0 %v1877
        %1931 = vmatpush1.msra.mxu0 %v1876
        %1932 = vmatprep.subr.mxu0 %v1875
        %1933 = vmatpush1.msra.mxu0 %v1874
        %1934 = vmatprep.subr.mxu0 0.0
        %1935 = vmatpush2.msra.mxu0 0.0
        %1936 = vmatprep.subr.mxu0 0.0
        %1937 = vmatpush2.msra.mxu0 0.0
        %1938 = vmatprep.subr.mxu0 0.0
        %1939 = vmatpush2.msra.mxu0 0.0
        %1940 = vmatprep.subr.mxu0 0.0
        %1941 = vmatpush2.msra.mxu0 0.0
        %1942 = vmatprep.subr.mxu0 0.0
        %1943 = vmatpush2.msra.mxu0 0.0
        %1944 = vmatprep.subr.mxu0 0.0
        %1945 = vmatpush2.msra.mxu0 0.0
        %1946 = vmatprep.subr.mxu0 0.0
        %1947 = vmatpush2.msra.mxu0 0.0
        %1948 = vmatprep.subr.mxu0 0.0
        %1949 = vmatpush2.msra.mxu0 0.0
        %1950 = vmatprep.subr.mxu0 0.0
        %1951 = vmatpush2.msra.mxu0 0.0
        %1952 = vmatprep.subr.mxu0 0.0
        %1953 = vmatpush2.msra.mxu0 0.0
        %1954 = vmatprep.subr.mxu0 0.0
        %1955 = vmatpush2.msra.mxu0 0.0
        %1956 = vmatprep.subr.mxu0 0.0
        %1957 = vmatpush2.msra.mxu0 0.0
        %1958 = vmatprep.subr.mxu0 0.0
        %1959 = vmatpush2.msra.mxu0 0.0
        %1960 = vmatprep.subr.mxu0 0.0
        %1961 = vmatpush2.msra.mxu0 0.0
        %1962 = vmatprep.subr.mxu0 0.0
        %1963 = vmatpush2.msra.mxu0 0.0
        %1964 = vmatprep.subr.mxu0 0.0
        %1965 = vmatpush2.msra.mxu0 0.0
        %1966 = vmatprep.mubr.f32.mxu0 0.0
        %1967 = vmatmul.mubr.f32.gmra.mxu0 %v1409
        %v1968 = vpop.f32.mrf.mxu0
        %v1969 = vadd.f32 0.0, %v1968
        %v1970 = vpop.f32.mrf.mxu0
        %v1971 = vadd.f32 0.0, %v1970
        %1972 = vmatprep.mubr.f32.mxu0 0.0
        %1973 = vmatmul.mubr.f32.gmra.mxu0 %v1412
        %v1974 = vpop.f32.mrf.mxu0
        %v1975 = vadd.f32 0.0, %v1974
        %v1976 = vpop.f32.mrf.mxu0
        %v1977 = vadd.f32 0.0, %v1976
        %1978 = vdwg.mxu0
        %v1983 = vrot.slane %v1969, 4
        %v1984 = vrot.slane %v1975, 4
        %v1985 = vsel %vm1131, %v1983, %v1984
        %v1986 = vrot.slane %v1971, 4
        %v1987 = vrot.slane %v1977, 4
        %v1988 = vsel %vm1131, %v1986, %v1987
        %v1993 = vadd.f32 %v1869, %v1985
        %v1994 = vadd.f32 %v1870, %v1988
        %v1995 = vadd.f32 %v1871, %v1984
        %v1996 = vadd.f32 %v1872, %v1987
        %v1997 = vld [vmem:[%s6] sm:$0x3]
        %v1999 = vlaneseq
        %v2000 = vshrl.u32 %v1999, 7
        %v2001 = vsub.s32 0, %v2000
        %v2002 = vrot.slane %v1997, %v2001
        %v2003 = vlaneseq
        %v2004 = vshrl.u32 %v2003, 7
        %v2005 = vsub.s32 1, %v2004
        %v2006 = vrot.slane %v1997, %v2005
        %v2009 = vadd.f32 %v1993, %v2002
        %v2010 = vadd.f32 %v1994, %v2006
        %v2011 = vadd.f32 %v1995, %v2002
        %v2012 = vadd.f32 %v1996, %v2006
        %v2013 = vtanh.pop %v2009
        %v2014 = vtanh.pop %v2010
        %v2015 = vtanh.pop %v2011
        %v2016 = vtanh.pop %v2012
        %v2017 = vld [vmem:[%s7] sm:$0x1f]
        %vm2018 = vcmask 80896
        %v2020 = vsel %vm2018, %v2017, 0
        %vm2022 = vcmask 1041408
        %v2024 = vsel %vm2022, %v2015, 0
        %v2027 = vsel %vm2022, %v2016, 0
        %2029 = vmatprep.subr.mxu0 0.0
        %2030 = vmatpush1.msra.mxu0 0.0
        %2031 = vmatprep.subr.mxu0 0.0
        %2032 = vmatpush1.msra.mxu0 0.0
        %2033 = vmatprep.subr.mxu0 0.0
        %2034 = vmatpush1.msra.mxu0 0.0
        %2035 = vmatprep.subr.mxu0 0.0
        %2036 = vmatpush1.msra.mxu0 0.0
        %2037 = vmatprep.subr.mxu0 0.0
        %2038 = vmatpush1.msra.mxu0 0.0
        %2039 = vmatprep.subr.mxu0 0.0
        %2040 = vmatpush1.msra.mxu0 0.0
        %2041 = vmatprep.subr.mxu0 0.0
        %2042 = vmatpush1.msra.mxu0 0.0
        %2043 = vmatprep.subr.mxu0 0.0
        %2044 = vmatpush1.msra.mxu0 0.0
        %2045 = vmatprep.subr.mxu0 0.0
        %2046 = vmatpush1.msra.mxu0 0.0
        %2047 = vmatprep.subr.mxu0 0.0
        %2048 = vmatpush1.msra.mxu0 0.0
        %2049 = vmatprep.subr.mxu0 0.0
        %2050 = vmatpush1.msra.mxu0 0.0
        %2051 = vmatprep.subr.mxu0 0.0
        %2052 = vmatpush1.msra.mxu0 0.0
        %2053 = vmatprep.subr.mxu0 0.0
        %2054 = vmatpush1.msra.mxu0 0.0
        %2055 = vmatprep.subr.mxu0 0.0
        %2056 = vmatpush1.msra.mxu0 0.0
        %2057 = vmatprep.subr.mxu0 %v2027
        %2058 = vmatpush1.msra.mxu0 %v2024
        %2059 = vmatprep.subr.mxu0 %v2014
        %2060 = vmatpush1.msra.mxu0 %v2013
        %2061 = vmatprep.subr.mxu0 0.0
        %2062 = vmatpush2.msra.mxu0 0.0
        %2063 = vmatprep.subr.mxu0 0.0
        %2064 = vmatpush2.msra.mxu0 0.0
        %2065 = vmatprep.subr.mxu0 0.0
        %2066 = vmatpush2.msra.mxu0 0.0
        %2067 = vmatprep.subr.mxu0 0.0
        %2068 = vmatpush2.msra.mxu0 0.0
        %2069 = vmatprep.subr.mxu0 0.0
        %2070 = vmatpush2.msra.mxu0 0.0
        %2071 = vmatprep.subr.mxu0 0.0
        %2072 = vmatpush2.msra.mxu0 0.0
        %2073 = vmatprep.subr.mxu0 0.0
        %2074 = vmatpush2.msra.mxu0 0.0
        %2075 = vmatprep.subr.mxu0 0.0
        %2076 = vmatpush2.msra.mxu0 0.0
        %2077 = vmatprep.subr.mxu0 0.0
        %2078 = vmatpush2.msra.mxu0 0.0
        %2079 = vmatprep.subr.mxu0 0.0
        %2080 = vmatpush2.msra.mxu0 0.0
        %2081 = vmatprep.subr.mxu0 0.0
        %2082 = vmatpush2.msra.mxu0 0.0
        %2083 = vmatprep.subr.mxu0 0.0
        %2084 = vmatpush2.msra.mxu0 0.0
        %2085 = vmatprep.subr.mxu0 0.0
        %2086 = vmatpush2.msra.mxu0 0.0
        %2087 = vmatprep.subr.mxu0 0.0
        %2088 = vmatpush2.msra.mxu0 0.0
        %2089 = vmatprep.subr.mxu0 0.0
        %2090 = vmatpush2.msra.mxu0 0.0
        %2091 = vmatprep.subr.mxu0 0.0
        %2092 = vmatpush2.msra.mxu0 0.0
        %2093 = vmatprep.mubr.f32.mxu0 0.0
        %2094 = vmatmul.mubr.f32.gmra.mxu0 %v2020
        %v2095 = vpop.f32.mrf.mxu0
        %v2096 = vadd.f32 0.0, %v2095
        %v2097 = vpop.f32.mrf.mxu0
        %v2098 = vadd.f32 0.0, %v2097
        %2099 = vdwg.mxu0
        %v2100 = vld [vmem:[%s8] sm:$0xff]
        %v2101 = vld [vmem:[%s8 + $0x8] sm:$0xff]
        %v2102 = vld [vmem:[%s8 + $0x10] sm:$0xff]
        %v2103 = vld [vmem:[%s8 + $0x18] sm:$0xff]
        %v2104 = vld [vmem:[%s8 + $0x20] sm:$0xff]
        %v2105 = vld [vmem:[%s8 + $0x28] sm:$0xff]
        %v2106 = vld [vmem:[%s8 + $0x30] sm:$0xff]
        %v2107 = vld [vmem:[%s8 + $0x38] sm:$0xff]
        %v2108 = vld [vmem:[%s8 + $0x40] sm:$0xff]
        %v2109 = vld [vmem:[%s8 + $0x48] sm:$0xff]
        %v2110 = vld [vmem:[%s8 + $0x50] sm:$0xff]
        %v2111 = vld [vmem:[%s8 + $0x58] sm:$0xff]
        %v2112 = vld [vmem:[%s8 + $0x60] sm:$0xff]
        %v2113 = vld [vmem:[%s8 + $0x68] sm:$0xff]
        %v2114 = vld [vmem:[%s8 + $0x70] sm:$0xff]
        %v2115 = vld [vmem:[%s8 + $0x78] sm:$0xff]
        %v2116 = vld [vmem:[%s8 + $0x80] sm:$0xff]
        %v2117 = vld [vmem:[%s8 + $0x88] sm:$0xff]
        %v2118 = vld [vmem:[%s8 + $0x90] sm:$0xff]
        %v2119 = vld [vmem:[%s8 + $0x98] sm:$0xff]
        %v2121 = vsel %vm504, %v2098, 0
        %2123 = vmatprep.subr.mxu0 0.0
        %2124 = vmatpush1.msra.mxu0 %v2115
        %2125 = vmatprep.subr.mxu0 0.0
        %2126 = vmatpush1.msra.mxu0 %v2114
        %2127 = vmatprep.subr.mxu0 0.0
        %2128 = vmatpush1.msra.mxu0 %v2113
        %2129 = vmatprep.subr.mxu0 0.0
        %2130 = vmatpush1.msra.mxu0 %v2112
        %2131 = vmatprep.subr.mxu0 0.0
        %2132 = vmatpush1.msra.mxu0 %v2111
        %2133 = vmatprep.subr.mxu0 0.0
        %2134 = vmatpush1.msra.mxu0 %v2110
        %2135 = vmatprep.subr.mxu0 0.0
        %2136 = vmatpush1.msra.mxu0 %v2109
        %2137 = vmatprep.subr.mxu0 0.0
        %2138 = vmatpush1.msra.mxu0 %v2108
        %2139 = vmatprep.subr.mxu0 0.0
        %2140 = vmatpush1.msra.mxu0 %v2107
        %2141 = vmatprep.subr.mxu0 0.0
        %2142 = vmatpush1.msra.mxu0 %v2106
        %2143 = vmatprep.subr.mxu0 0.0
        %2144 = vmatpush1.msra.mxu0 %v2105
        %2145 = vmatprep.subr.mxu0 0.0
        %2146 = vmatpush1.msra.mxu0 %v2104
        %2147 = vmatprep.subr.mxu0 0.0
        %2148 = vmatpush1.msra.mxu0 %v2103
        %2149 = vmatprep.subr.mxu0 0.0
        %2150 = vmatpush1.msra.mxu0 %v2102
        %2151 = vmatprep.subr.mxu0 0.0
        %2152 = vmatpush1.msra.mxu0 %v2101
        %2153 = vmatprep.subr.mxu0 0.0
        %2154 = vmatpush1.msra.mxu0 %v2100
        %2155 = vmatprep.subr.mxu0 0.0
        %2156 = vmatpush2.msra.mxu0 0.0
        %2157 = vmatprep.subr.mxu0 0.0
        %2158 = vmatpush2.msra.mxu0 0.0
        %2159 = vmatprep.subr.mxu0 0.0
        %2160 = vmatpush2.msra.mxu0 0.0
        %2161 = vmatprep.subr.mxu0 0.0
        %2162 = vmatpush2.msra.mxu0 0.0
        %2163 = vmatprep.subr.mxu0 0.0
        %2164 = vmatpush2.msra.mxu0 0.0
        %2165 = vmatprep.subr.mxu0 0.0
        %2166 = vmatpush2.msra.mxu0 0.0
        %2167 = vmatprep.subr.mxu0 0.0
        %2168 = vmatpush2.msra.mxu0 0.0
        %2169 = vmatprep.subr.mxu0 0.0
        %2170 = vmatpush2.msra.mxu0 0.0
        %2171 = vmatprep.subr.mxu0 0.0
        %2172 = vmatpush2.msra.mxu0 0.0
        %2173 = vmatprep.subr.mxu0 0.0
        %2174 = vmatpush2.msra.mxu0 0.0
        %2175 = vmatprep.subr.mxu0 0.0
        %2176 = vmatpush2.msra.mxu0 0.0
        %2177 = vmatprep.subr.mxu0 0.0
        %2178 = vmatpush2.msra.mxu0 0.0
        %2179 = vmatprep.subr.mxu0 0.0
        %2180 = vmatpush2.msra.mxu0 %v2119
        %2181 = vmatprep.subr.mxu0 0.0
        %2182 = vmatpush2.msra.mxu0 %v2118
        %2183 = vmatprep.subr.mxu0 0.0
        %2184 = vmatpush2.msra.mxu0 %v2117
        %2185 = vmatprep.subr.mxu0 0.0
        %2186 = vmatpush2.msra.mxu0 %v2116
        %2187 = vmatprep.mubr.f32.mxu0 %v2121
        %2188 = vmatmul.mubr.f32.gmra.mxu0 %v2096
        %v2189 = vpop.f32.mrf.mxu0
        %v2190 = vadd.f32 0.0, %v2189
        %v2191 = vpop.f32.mrf.mxu0
        %2192 = vdwg.mxu0
        %v2193 = vld [vmem:[%s9] sm:$0xff]
        %v2194 = vld [vmem:[%s9 + $0x8] sm:$0xff]
        %v2195 = vld [vmem:[%s9 + $0x10] sm:$0xff]
        %v2196 = vld [vmem:[%s9 + $0x18] sm:$0xff]
        %v2197 = vld [vmem:[%s9 + $0x20] sm:$0xff]
        %v2198 = vld [vmem:[%s9 + $0x28] sm:$0xff]
        %v2199 = vld [vmem:[%s9 + $0x30] sm:$0xff]
        %v2200 = vld [vmem:[%s9 + $0x38] sm:$0xff]
        %v2201 = vld [vmem:[%s9 + $0x40] sm:$0xff]
        %v2202 = vld [vmem:[%s9 + $0x48] sm:$0xff]
        %s2203 = scalar_lea.vmem %s9, 80
        %v2204 = vld [vmem:[%s2203] sm:$0xff]
        %v2205 = vld [vmem:[%s2203 + $0x8] sm:$0xff]
        %v2206 = vld [vmem:[%s2203 + $0x10] sm:$0xff]
        %v2207 = vld [vmem:[%s2203 + $0x18] sm:$0xff]
        %v2208 = vld [vmem:[%s2203 + $0x20] sm:$0xff]
        %v2209 = vld [vmem:[%s2203 + $0x28] sm:$0xff]
        %v2210 = vld [vmem:[%s2203 + $0x30] sm:$0xff]
        %v2211 = vld [vmem:[%s2203 + $0x38] sm:$0xff]
        %v2212 = vld [vmem:[%s2203 + $0x40] sm:$0xff]
        %v2213 = vld [vmem:[%s2203 + $0x48] sm:$0xff]
        %v2215 = vrot.slane %v2190, 1
        %vm2216 = vcmask 654336
        %v2217 = vsel %vm2216, %v2215, 0
        %2219 = vmatprep.subr.mxu0 0.0
        %2220 = vmatpush1.msra.mxu0 0.0
        %2221 = vmatprep.subr.mxu0 0.0
        %2222 = vmatpush1.msra.mxu0 0.0
        %2223 = vmatprep.subr.mxu0 0.0
        %2224 = vmatpush1.msra.mxu0 0.0
        %2225 = vmatprep.subr.mxu0 0.0
        %2226 = vmatpush1.msra.mxu0 0.0
        %2227 = vmatprep.subr.mxu0 0.0
        %2228 = vmatpush1.msra.mxu0 0.0
        %2229 = vmatprep.subr.mxu0 0.0
        %2230 = vmatpush1.msra.mxu0 0.0
        %2231 = vmatprep.subr.mxu0 0.0
        %2232 = vmatpush1.msra.mxu0 %v2213
        %2233 = vmatprep.subr.mxu0 0.0
        %2234 = vmatpush1.msra.mxu0 %v2212
        %2235 = vmatprep.subr.mxu0 0.0
        %2236 = vmatpush1.msra.mxu0 %v2211
        %2237 = vmatprep.subr.mxu0 0.0
        %2238 = vmatpush1.msra.mxu0 %v2210
        %2239 = vmatprep.subr.mxu0 0.0
        %2240 = vmatpush1.msra.mxu0 %v2209
        %2241 = vmatprep.subr.mxu0 0.0
        %2242 = vmatpush1.msra.mxu0 %v2208
        %2243 = vmatprep.subr.mxu0 0.0
        %2244 = vmatpush1.msra.mxu0 %v2207
        %2245 = vmatprep.subr.mxu0 0.0
        %2246 = vmatpush1.msra.mxu0 %v2206
        %2247 = vmatprep.subr.mxu0 0.0
        %2248 = vmatpush1.msra.mxu0 %v2205
        %2249 = vmatprep.subr.mxu0 0.0
        %2250 = vmatpush1.msra.mxu0 %v2204
        %2251 = vmatprep.subr.mxu0 0.0
        %2252 = vmatpush2.msra.mxu0 0.0
        %2253 = vmatprep.subr.mxu0 0.0
        %2254 = vmatpush2.msra.mxu0 0.0
        %2255 = vmatprep.subr.mxu0 0.0
        %2256 = vmatpush2.msra.mxu0 0.0
        %2257 = vmatprep.subr.mxu0 0.0
        %2258 = vmatpush2.msra.mxu0 0.0
        %2259 = vmatprep.subr.mxu0 0.0
        %2260 = vmatpush2.msra.mxu0 0.0
        %2261 = vmatprep.subr.mxu0 0.0
        %2262 = vmatpush2.msra.mxu0 0.0
        %2263 = vmatprep.subr.mxu0 0.0
        %2264 = vmatpush2.msra.mxu0 0.0
        %2265 = vmatprep.subr.mxu0 0.0
        %2266 = vmatpush2.msra.mxu0 0.0
        %2267 = vmatprep.subr.mxu0 0.0
        %2268 = vmatpush2.msra.mxu0 0.0
        %2269 = vmatprep.subr.mxu0 0.0
        %2270 = vmatpush2.msra.mxu0 0.0
        %2271 = vmatprep.subr.mxu0 0.0
        %2272 = vmatpush2.msra.mxu0 0.0
        %2273 = vmatprep.subr.mxu0 0.0
        %2274 = vmatpush2.msra.mxu0 0.0
        %2275 = vmatprep.subr.mxu0 0.0
        %2276 = vmatpush2.msra.mxu0 0.0
        %2277 = vmatprep.subr.mxu0 0.0
        %2278 = vmatpush2.msra.mxu0 0.0
        %2279 = vmatprep.subr.mxu0 0.0
        %2280 = vmatpush2.msra.mxu0 0.0
        %2281 = vmatprep.subr.mxu0 0.0
        %2282 = vmatpush2.msra.mxu0 0.0
        %2283 = vmatprep.mubr.f32.mxu0 0.0
        %2284 = vmatmul.mubr.f32.gmra.mxu0 %v2217
        %v2285 = vpop.f32.mrf.mxu0
        %v2286 = vadd.f32 0.0, %v2285
        %v2287 = vpop.f32.mrf.mxu0
        %2288 = vdwg.mxu0
        %v2289 = vsel %vm2216, %v2190, 0
        %2291 = vmatprep.subr.mxu0 0.0
        %2292 = vmatpush1.msra.mxu0 0.0
        %2293 = vmatprep.subr.mxu0 0.0
        %2294 = vmatpush1.msra.mxu0 0.0
        %2295 = vmatprep.subr.mxu0 0.0
        %2296 = vmatpush1.msra.mxu0 0.0
        %2297 = vmatprep.subr.mxu0 0.0
        %2298 = vmatpush1.msra.mxu0 0.0
        %2299 = vmatprep.subr.mxu0 0.0
        %2300 = vmatpush1.msra.mxu0 0.0
        %2301 = vmatprep.subr.mxu0 0.0
        %2302 = vmatpush1.msra.mxu0 0.0
        %2303 = vmatprep.subr.mxu0 0.0
        %2304 = vmatpush1.msra.mxu0 %v2202
        %2305 = vmatprep.subr.mxu0 0.0
        %2306 = vmatpush1.msra.mxu0 %v2201
        %2307 = vmatprep.subr.mxu0 0.0
        %2308 = vmatpush1.msra.mxu0 %v2200
        %2309 = vmatprep.subr.mxu0 0.0
        %2310 = vmatpush1.msra.mxu0 %v2199
        %2311 = vmatprep.subr.mxu0 0.0
        %2312 = vmatpush1.msra.mxu0 %v2198
        %2313 = vmatprep.subr.mxu0 0.0
        %2314 = vmatpush1.msra.mxu0 %v2197
        %2315 = vmatprep.subr.mxu0 0.0
        %2316 = vmatpush1.msra.mxu0 %v2196
        %2317 = vmatprep.subr.mxu0 0.0
        %2318 = vmatpush1.msra.mxu0 %v2195
        %2319 = vmatprep.subr.mxu0 0.0
        %2320 = vmatpush1.msra.mxu0 %v2194
        %2321 = vmatprep.subr.mxu0 0.0
        %2322 = vmatpush1.msra.mxu0 %v2193
        %2323 = vmatprep.subr.mxu0 0.0
        %2324 = vmatpush2.msra.mxu0 0.0
        %2325 = vmatprep.subr.mxu0 0.0
        %2326 = vmatpush2.msra.mxu0 0.0
        %2327 = vmatprep.subr.mxu0 0.0
        %2328 = vmatpush2.msra.mxu0 0.0
        %2329 = vmatprep.subr.mxu0 0.0
        %2330 = vmatpush2.msra.mxu0 0.0
        %2331 = vmatprep.subr.mxu0 0.0
        %2332 = vmatpush2.msra.mxu0 0.0
        %2333 = vmatprep.subr.mxu0 0.0
        %2334 = vmatpush2.msra.mxu0 0.0
        %2335 = vmatprep.subr.mxu0 0.0
        %2336 = vmatpush2.msra.mxu0 0.0
        %2337 = vmatprep.subr.mxu0 0.0
        %2338 = vmatpush2.msra.mxu0 0.0
        %2339 = vmatprep.subr.mxu0 0.0
        %2340 = vmatpush2.msra.mxu0 0.0
        %2341 = vmatprep.subr.mxu0 0.0
        %2342 = vmatpush2.msra.mxu0 0.0
        %2343 = vmatprep.subr.mxu0 0.0
        %2344 = vmatpush2.msra.mxu0 0.0
        %2345 = vmatprep.subr.mxu0 0.0
        %2346 = vmatpush2.msra.mxu0 0.0
        %2347 = vmatprep.subr.mxu0 0.0
        %2348 = vmatpush2.msra.mxu0 0.0
        %2349 = vmatprep.subr.mxu0 0.0
        %2350 = vmatpush2.msra.mxu0 0.0
        %2351 = vmatprep.subr.mxu0 0.0
        %2352 = vmatpush2.msra.mxu0 0.0
        %2353 = vmatprep.subr.mxu0 0.0
        %2354 = vmatpush2.msra.mxu0 0.0
        %2355 = vmatprep.mubr.f32.mxu0 0.0
        %2356 = vmatmul.mubr.f32.gmra.mxu0 %v2289
        %v2357 = vpop.f32.mrf.mxu0
        %v2358 = vadd.f32 %v2286, %v2357
        %v2359 = vpop.f32.mrf.mxu0
        %2360 = vdwg.mxu0
        %s2361 = scalar_lea.vmem %s9, 160
        %v2362 = vld [vmem:[%s2361] sm:$0xff]
        %v2363 = vld [vmem:[%s2361 + $0x8] sm:$0xff]
        %v2364 = vld [vmem:[%s2361 + $0x10] sm:$0xff]
        %v2365 = vld [vmem:[%s2361 + $0x18] sm:$0xff]
        %v2366 = vld [vmem:[%s2361 + $0x20] sm:$0xff]
        %v2367 = vld [vmem:[%s2361 + $0x28] sm:$0xff]
        %v2368 = vld [vmem:[%s2361 + $0x30] sm:$0xff]
        %v2369 = vld [vmem:[%s2361 + $0x38] sm:$0xff]
        %v2370 = vld [vmem:[%s2361 + $0x40] sm:$0xff]
        %v2371 = vld [vmem:[%s2361 + $0x48] sm:$0xff]
        %v2372 = vrot.slane %v2190, 2
        %v2373 = vsel %vm2216, %v2372, 0
        %2375 = vmatprep.subr.mxu0 0.0
        %2376 = vmatpush1.msra.mxu0 0.0
        %2377 = vmatprep.subr.mxu0 0.0
        %2378 = vmatpush1.msra.mxu0 0.0
        %2379 = vmatprep.subr.mxu0 0.0
        %2380 = vmatpush1.msra.mxu0 0.0
        %2381 = vmatprep.subr.mxu0 0.0
        %2382 = vmatpush1.msra.mxu0 0.0
        %2383 = vmatprep.subr.mxu0 0.0
        %2384 = vmatpush1.msra.mxu0 0.0
        %2385 = vmatprep.subr.mxu0 0.0
        %2386 = vmatpush1.msra.mxu0 0.0
        %2387 = vmatprep.subr.mxu0 0.0
        %2388 = vmatpush1.msra.mxu0 %v2371
        %2389 = vmatprep.subr.mxu0 0.0
        %2390 = vmatpush1.msra.mxu0 %v2370
        %2391 = vmatprep.subr.mxu0 0.0
        %2392 = vmatpush1.msra.mxu0 %v2369
        %2393 = vmatprep.subr.mxu0 0.0
        %2394 = vmatpush1.msra.mxu0 %v2368
        %2395 = vmatprep.subr.mxu0 0.0
        %2396 = vmatpush1.msra.mxu0 %v2367
        %2397 = vmatprep.subr.mxu0 0.0
        %2398 = vmatpush1.msra.mxu0 %v2366
        %2399 = vmatprep.subr.mxu0 0.0
        %2400 = vmatpush1.msra.mxu0 %v2365
        %2401 = vmatprep.subr.mxu0 0.0
        %2402 = vmatpush1.msra.mxu0 %v2364
        %2403 = vmatprep.subr.mxu0 0.0
        %2404 = vmatpush1.msra.mxu0 %v2363
        %2405 = vmatprep.subr.mxu0 0.0
        %2406 = vmatpush1.msra.mxu0 %v2362
        %2407 = vmatprep.subr.mxu0 0.0
        %2408 = vmatpush2.msra.mxu0 0.0
        %2409 = vmatprep.subr.mxu0 0.0
        %2410 = vmatpush2.msra.mxu0 0.0
        %2411 = vmatprep.subr.mxu0 0.0
        %2412 = vmatpush2.msra.mxu0 0.0
        %2413 = vmatprep.subr.mxu0 0.0
        %2414 = vmatpush2.msra.mxu0 0.0
        %2415 = vmatprep.subr.mxu0 0.0
        %2416 = vmatpush2.msra.mxu0 0.0
        %2417 = vmatprep.subr.mxu0 0.0
        %2418 = vmatpush2.msra.mxu0 0.0
        %2419 = vmatprep.subr.mxu0 0.0
        %2420 = vmatpush2.msra.mxu0 0.0
        %2421 = vmatprep.subr.mxu0 0.0
        %2422 = vmatpush2.msra.mxu0 0.0
        %2423 = vmatprep.subr.mxu0 0.0
        %2424 = vmatpush2.msra.mxu0 0.0
        %2425 = vmatprep.subr.mxu0 0.0
        %2426 = vmatpush2.msra.mxu0 0.0
        %2427 = vmatprep.subr.mxu0 0.0
        %2428 = vmatpush2.msra.mxu0 0.0
        %2429 = vmatprep.subr.mxu0 0.0
        %2430 = vmatpush2.msra.mxu0 0.0
        %2431 = vmatprep.subr.mxu0 0.0
        %2432 = vmatpush2.msra.mxu0 0.0
        %2433 = vmatprep.subr.mxu0 0.0
        %2434 = vmatpush2.msra.mxu0 0.0
        %2435 = vmatprep.subr.mxu0 0.0
        %2436 = vmatpush2.msra.mxu0 0.0
        %2437 = vmatprep.subr.mxu0 0.0
        %2438 = vmatpush2.msra.mxu0 0.0
        %2439 = vmatprep.mubr.f32.mxu0 0.0
        %2440 = vmatmul.mubr.f32.gmra.mxu0 %v2373
        %v2441 = vpop.f32.mrf.mxu0
        %v2442 = vadd.f32 0.0, %v2441
        %v2443 = vpop.f32.mrf.mxu0
        %2444 = vdwg.mxu0
        %v2445 = vadd.f32 %v2358, %v2442
        %s2446 = scalar_lea.vmem %s9, 240
        %v2447 = vld [vmem:[%s2446] sm:$0xff]
        %v2448 = vld [vmem:[%s2446 + $0x8] sm:$0xff]
        %v2449 = vld [vmem:[%s2446 + $0x10] sm:$0xff]
        %v2450 = vld [vmem:[%s2446 + $0x18] sm:$0xff]
        %v2451 = vld [vmem:[%s2446 + $0x20] sm:$0xff]
        %v2452 = vld [vmem:[%s2446 + $0x28] sm:$0xff]
        %v2453 = vld [vmem:[%s2446 + $0x30] sm:$0xff]
        %v2454 = vld [vmem:[%s2446 + $0x38] sm:$0xff]
        %v2455 = vld [vmem:[%s2446 + $0x40] sm:$0xff]
        %v2456 = vld [vmem:[%s2446 + $0x48] sm:$0xff]
        %v2457 = vrot.slane %v2190, 3
        %v2458 = vsel %vm2216, %v2457, 0
        %2460 = vmatprep.subr.mxu0 0.0
        %2461 = vmatpush1.msra.mxu0 0.0
        %2462 = vmatprep.subr.mxu0 0.0
        %2463 = vmatpush1.msra.mxu0 0.0
        %2464 = vmatprep.subr.mxu0 0.0
        %2465 = vmatpush1.msra.mxu0 0.0
        %2466 = vmatprep.subr.mxu0 0.0
        %2467 = vmatpush1.msra.mxu0 0.0
        %2468 = vmatprep.subr.mxu0 0.0
        %2469 = vmatpush1.msra.mxu0 0.0
        %2470 = vmatprep.subr.mxu0 0.0
        %2471 = vmatpush1.msra.mxu0 0.0
        %2472 = vmatprep.subr.mxu0 0.0
        %2473 = vmatpush1.msra.mxu0 %v2456
        %2474 = vmatprep.subr.mxu0 0.0
        %2475 = vmatpush1.msra.mxu0 %v2455
        %2476 = vmatprep.subr.mxu0 0.0
        %2477 = vmatpush1.msra.mxu0 %v2454
        %2478 = vmatprep.subr.mxu0 0.0
        %2479 = vmatpush1.msra.mxu0 %v2453
        %2480 = vmatprep.subr.mxu0 0.0
        %2481 = vmatpush1.msra.mxu0 %v2452
        %2482 = vmatprep.subr.mxu0 0.0
        %2483 = vmatpush1.msra.mxu0 %v2451
        %2484 = vmatprep.subr.mxu0 0.0
        %2485 = vmatpush1.msra.mxu0 %v2450
        %2486 = vmatprep.subr.mxu0 0.0
        %2487 = vmatpush1.msra.mxu0 %v2449
        %2488 = vmatprep.subr.mxu0 0.0
        %2489 = vmatpush1.msra.mxu0 %v2448
        %2490 = vmatprep.subr.mxu0 0.0
        %2491 = vmatpush1.msra.mxu0 %v2447
        %2492 = vmatprep.subr.mxu0 0.0
        %2493 = vmatpush2.msra.mxu0 0.0
        %2494 = vmatprep.subr.mxu0 0.0
        %2495 = vmatpush2.msra.mxu0 0.0
        %2496 = vmatprep.subr.mxu0 0.0
        %2497 = vmatpush2.msra.mxu0 0.0
        %2498 = vmatprep.subr.mxu0 0.0
        %2499 = vmatpush2.msra.mxu0 0.0
        %2500 = vmatprep.subr.mxu0 0.0
        %2501 = vmatpush2.msra.mxu0 0.0
        %2502 = vmatprep.subr.mxu0 0.0
        %2503 = vmatpush2.msra.mxu0 0.0
        %2504 = vmatprep.subr.mxu0 0.0
        %2505 = vmatpush2.msra.mxu0 0.0
        %2506 = vmatprep.subr.mxu0 0.0
        %2507 = vmatpush2.msra.mxu0 0.0
        %2508 = vmatprep.subr.mxu0 0.0
        %2509 = vmatpush2.msra.mxu0 0.0
        %2510 = vmatprep.subr.mxu0 0.0
        %2511 = vmatpush2.msra.mxu0 0.0
        %2512 = vmatprep.subr.mxu0 0.0
        %2513 = vmatpush2.msra.mxu0 0.0
        %2514 = vmatprep.subr.mxu0 0.0
        %2515 = vmatpush2.msra.mxu0 0.0
        %2516 = vmatprep.subr.mxu0 0.0
        %2517 = vmatpush2.msra.mxu0 0.0
        %2518 = vmatprep.subr.mxu0 0.0
        %2519 = vmatpush2.msra.mxu0 0.0
        %2520 = vmatprep.subr.mxu0 0.0
        %2521 = vmatpush2.msra.mxu0 0.0
        %2522 = vmatprep.subr.mxu0 0.0
        %2523 = vmatpush2.msra.mxu0 0.0
        %2524 = vmatprep.mubr.f32.mxu0 0.0
        %2525 = vmatmul.mubr.f32.gmra.mxu0 %v2458
        %v2526 = vpop.f32.mrf.mxu0
        %v2527 = vadd.f32 0.0, %v2526
        %v2528 = vpop.f32.mrf.mxu0
        %2529 = vdwg.mxu0
        %v2530 = vadd.f32 %v2445, %v2527
        %s2531 = scalar_lea.vmem %s9, 320
        %v2532 = vld [vmem:[%s2531] sm:$0xff]
        %v2533 = vld [vmem:[%s2531 + $0x8] sm:$0xff]
        %v2534 = vld [vmem:[%s2531 + $0x10] sm:$0xff]
        %v2535 = vld [vmem:[%s2531 + $0x18] sm:$0xff]
        %v2536 = vld [vmem:[%s2531 + $0x20] sm:$0xff]
        %v2537 = vld [vmem:[%s2531 + $0x28] sm:$0xff]
        %v2538 = vld [vmem:[%s2531 + $0x30] sm:$0xff]
        %v2539 = vld [vmem:[%s2531 + $0x38] sm:$0xff]
        %v2540 = vld [vmem:[%s2531 + $0x40] sm:$0xff]
        %v2541 = vld [vmem:[%s2531 + $0x48] sm:$0xff]
        %v2542 = vrot.slane %v2190, 4
        %v2543 = vsel %vm2216, %v2542, 0
        %2545 = vmatprep.subr.mxu0 0.0
        %2546 = vmatpush1.msra.mxu0 0.0
        %2547 = vmatprep.subr.mxu0 0.0
        %2548 = vmatpush1.msra.mxu0 0.0
        %2549 = vmatprep.subr.mxu0 0.0
        %2550 = vmatpush1.msra.mxu0 0.0
        %2551 = vmatprep.subr.mxu0 0.0
        %2552 = vmatpush1.msra.mxu0 0.0
        %2553 = vmatprep.subr.mxu0 0.0
        %2554 = vmatpush1.msra.mxu0 0.0
        %2555 = vmatprep.subr.mxu0 0.0
        %2556 = vmatpush1.msra.mxu0 0.0
        %2557 = vmatprep.subr.mxu0 0.0
        %2558 = vmatpush1.msra.mxu0 %v2541
        %2559 = vmatprep.subr.mxu0 0.0
        %2560 = vmatpush1.msra.mxu0 %v2540
        %2561 = vmatprep.subr.mxu0 0.0
        %2562 = vmatpush1.msra.mxu0 %v2539
        %2563 = vmatprep.subr.mxu0 0.0
        %2564 = vmatpush1.msra.mxu0 %v2538
        %2565 = vmatprep.subr.mxu0 0.0
        %2566 = vmatpush1.msra.mxu0 %v2537
        %2567 = vmatprep.subr.mxu0 0.0
        %2568 = vmatpush1.msra.mxu0 %v2536
        %2569 = vmatprep.subr.mxu0 0.0
        %2570 = vmatpush1.msra.mxu0 %v2535
        %2571 = vmatprep.subr.mxu0 0.0
        %2572 = vmatpush1.msra.mxu0 %v2534
        %2573 = vmatprep.subr.mxu0 0.0
        %2574 = vmatpush1.msra.mxu0 %v2533
        %2575 = vmatprep.subr.mxu0 0.0
        %2576 = vmatpush1.msra.mxu0 %v2532
        %2577 = vmatprep.subr.mxu0 0.0
        %2578 = vmatpush2.msra.mxu0 0.0
        %2579 = vmatprep.subr.mxu0 0.0
        %2580 = vmatpush2.msra.mxu0 0.0
        %2581 = vmatprep.subr.mxu0 0.0
        %2582 = vmatpush2.msra.mxu0 0.0
        %2583 = vmatprep.subr.mxu0 0.0
        %2584 = vmatpush2.msra.mxu0 0.0
        %2585 = vmatprep.subr.mxu0 0.0
        %2586 = vmatpush2.msra.mxu0 0.0
        %2587 = vmatprep.subr.mxu0 0.0
        %2588 = vmatpush2.msra.mxu0 0.0
        %2589 = vmatprep.subr.mxu0 0.0
        %2590 = vmatpush2.msra.mxu0 0.0
        %2591 = vmatprep.subr.mxu0 0.0
        %2592 = vmatpush2.msra.mxu0 0.0
        %2593 = vmatprep.subr.mxu0 0.0
        %2594 = vmatpush2.msra.mxu0 0.0
        %2595 = vmatprep.subr.mxu0 0.0
        %2596 = vmatpush2.msra.mxu0 0.0
        %2597 = vmatprep.subr.mxu0 0.0
        %2598 = vmatpush2.msra.mxu0 0.0
        %2599 = vmatprep.subr.mxu0 0.0
        %2600 = vmatpush2.msra.mxu0 0.0
        %2601 = vmatprep.subr.mxu0 0.0
        %2602 = vmatpush2.msra.mxu0 0.0
        %2603 = vmatprep.subr.mxu0 0.0
        %2604 = vmatpush2.msra.mxu0 0.0
        %2605 = vmatprep.subr.mxu0 0.0
        %2606 = vmatpush2.msra.mxu0 0.0
        %2607 = vmatprep.subr.mxu0 0.0
        %2608 = vmatpush2.msra.mxu0 0.0
        %2609 = vmatprep.mubr.f32.mxu0 0.0
        %2610 = vmatmul.mubr.f32.gmra.mxu0 %v2543
        %v2611 = vpop.f32.mrf.mxu0
        %v2612 = vadd.f32 0.0, %v2611
        %v2613 = vpop.f32.mrf.mxu0
        %2614 = vdwg.mxu0
        %v2615 = vadd.f32 %v2530, %v2612
        %v2616 = vld [vmem:[%s10] sm:$0x1]
        %v2617 = vadd.f32 %v2615, %v2616
        %v2618 = vtanh.pop %v2617
        %v2619 = vld [vmem:[%s11] sm:$0xff]
        %v2620 = vld [vmem:[%s11 + $0x8] sm:$0xff]
        %v2621 = vld [vmem:[%s11 + $0x10] sm:$0xff]
        %v2622 = vld [vmem:[%s11 + $0x18] sm:$0xff]
        %v2623 = vld [vmem:[%s11 + $0x20] sm:$0xff]
        %v2624 = vld [vmem:[%s11 + $0x28] sm:$0xff]
        %v2625 = vld [vmem:[%s11 + $0x30] sm:$0xff]
        %v2626 = vld [vmem:[%s11 + $0x38] sm:$0xff]
        %v2627 = vld [vmem:[%s11 + $0x40] sm:$0xff]
        %v2628 = vld [vmem:[%s11 + $0x48] sm:$0xff]
        %v2629 = vld [vmem:[%s11 + $0x50] sm:$0xff]
        %v2630 = vld [vmem:[%s11 + $0x58] sm:$0xff]
        %v2631 = vld [vmem:[%s11 + $0x60] sm:$0xff]
        %v2632 = vld [vmem:[%s11 + $0x68] sm:$0xff]
        %v2633 = vld [vmem:[%s11 + $0x70] sm:$0xff]
        %v2634 = vld [vmem:[%s12] sm:$0x1]
        %vm2635 = vcmask 982016
        %v2637 = vsel %vm2635, %v2618, 0
        %2639 = vmatprep.subr.mxu0 0.0
        %2640 = vmatpush1.msra.mxu0 0.0
        %2641 = vmatprep.subr.mxu0 0.0
        %2642 = vmatpush1.msra.mxu0 %v2633
        %2643 = vmatprep.subr.mxu0 0.0
        %2644 = vmatpush1.msra.mxu0 %v2632
        %2645 = vmatprep.subr.mxu0 0.0
        %2646 = vmatpush1.msra.mxu0 %v2631
        %2647 = vmatprep.subr.mxu0 0.0
        %2648 = vmatpush1.msra.mxu0 %v2630
        %2649 = vmatprep.subr.mxu0 0.0
        %2650 = vmatpush1.msra.mxu0 %v2629
        %2651 = vmatprep.subr.mxu0 0.0
        %2652 = vmatpush1.msra.mxu0 %v2628
        %2653 = vmatprep.subr.mxu0 0.0
        %2654 = vmatpush1.msra.mxu0 %v2627
        %2655 = vmatprep.subr.mxu0 0.0
        %2656 = vmatpush1.msra.mxu0 %v2626
        %2657 = vmatprep.subr.mxu0 0.0
        %2658 = vmatpush1.msra.mxu0 %v2625
        %2659 = vmatprep.subr.mxu0 0.0
        %2660 = vmatpush1.msra.mxu0 %v2624
        %2661 = vmatprep.subr.mxu0 0.0
        %2662 = vmatpush1.msra.mxu0 %v2623
        %2663 = vmatprep.subr.mxu0 0.0
        %2664 = vmatpush1.msra.mxu0 %v2622
        %2665 = vmatprep.subr.mxu0 0.0
        %2666 = vmatpush1.msra.mxu0 %v2621
        %2667 = vmatprep.subr.mxu0 0.0
        %2668 = vmatpush1.msra.mxu0 %v2620
        %2669 = vmatprep.subr.mxu0 0.0
        %2670 = vmatpush1.msra.mxu0 %v2619
        %2671 = vmatprep.subr.mxu0 0.0
        %2672 = vmatpush2.msra.mxu0 0.0
        %2673 = vmatprep.subr.mxu0 0.0
        %2674 = vmatpush2.msra.mxu0 0.0
        %2675 = vmatprep.subr.mxu0 0.0
        %2676 = vmatpush2.msra.mxu0 0.0
        %2677 = vmatprep.subr.mxu0 0.0
        %2678 = vmatpush2.msra.mxu0 0.0
        %2679 = vmatprep.subr.mxu0 0.0
        %2680 = vmatpush2.msra.mxu0 0.0
        %2681 = vmatprep.subr.mxu0 0.0
        %2682 = vmatpush2.msra.mxu0 0.0
        %2683 = vmatprep.subr.mxu0 0.0
        %2684 = vmatpush2.msra.mxu0 0.0
        %2685 = vmatprep.subr.mxu0 0.0
        %2686 = vmatpush2.msra.mxu0 0.0
        %2687 = vmatprep.subr.mxu0 0.0
        %2688 = vmatpush2.msra.mxu0 0.0
        %2689 = vmatprep.subr.mxu0 0.0
        %2690 = vmatpush2.msra.mxu0 0.0
        %2691 = vmatprep.subr.mxu0 0.0
        %2692 = vmatpush2.msra.mxu0 0.0
        %2693 = vmatprep.subr.mxu0 0.0
        %2694 = vmatpush2.msra.mxu0 0.0
        %2695 = vmatprep.subr.mxu0 0.0
        %2696 = vmatpush2.msra.mxu0 0.0
        %2697 = vmatprep.subr.mxu0 0.0
        %2698 = vmatpush2.msra.mxu0 0.0
        %2699 = vmatprep.subr.mxu0 0.0
        %2700 = vmatpush2.msra.mxu0 0.0
        %2701 = vmatprep.subr.mxu0 0.0
        %2702 = vmatpush2.msra.mxu0 0.0
        %2703 = vmatprep.mubr.f32.mxu0 0.0
        %2704 = vmatmul.mubr.f32.gmra.mxu0 %v2637
        %v2705 = vpop.f32.mrf.mxu0
        %v2706 = vadd.f32 %v2634, %v2705
        %v2707 = vpop.f32.mrf.mxu0
        %2708 = vdwg.mxu0
        %v2709 = vtanh.pop %v2706
        %v2710 = vld [vmem:[%s13] sm:$0xff]
        %v2711 = vld [vmem:[%s13 + $0x8] sm:$0xff]
        %v2712 = vld [vmem:[%s13 + $0x10] sm:$0xff]
        %v2713 = vld [vmem:[%s13 + $0x18] sm:$0xff]
        %v2714 = vld [vmem:[%s13 + $0x20] sm:$0xff]
        %v2715 = vld [vmem:[%s13 + $0x28] sm:$0xff]
        %v2716 = vld [vmem:[%s13 + $0x30] sm:$0xff]
        %v2717 = vld [vmem:[%s13 + $0x38] sm:$0xff]
        %v2718 = vld [vmem:[%s13 + $0x40] sm:$0xff]
        %v2719 = vld [vmem:[%s13 + $0x48] sm:$0xff]
        %v2720 = vld [vmem:[%s13 + $0x50] sm:$0xf]
        %v2721 = vld [vmem:[%s14] sm:$0x1]
        %v2723 = vsel %vm1407, %v2709, 0
        %v2726 = vsel %vm1131, %v2720, 0
        %2728 = vmatprep.subr.mxu0 0.0
        %2729 = vmatpush1.msra.mxu0 0.0
        %2730 = vmatprep.subr.mxu0 0.0
        %2731 = vmatpush1.msra.mxu0 0.0
        %2732 = vmatprep.subr.mxu0 0.0
        %2733 = vmatpush1.msra.mxu0 0.0
        %2734 = vmatprep.subr.mxu0 0.0
        %2735 = vmatpush1.msra.mxu0 0.0
        %2736 = vmatprep.subr.mxu0 0.0
        %2737 = vmatpush1.msra.mxu0 0.0
        %2738 = vmatprep.subr.mxu0 0.0
        %2739 = vmatpush1.msra.mxu0 %v2726
        %2740 = vmatprep.subr.mxu0 0.0
        %2741 = vmatpush1.msra.mxu0 %v2719
        %2742 = vmatprep.subr.mxu0 0.0
        %2743 = vmatpush1.msra.mxu0 %v2718
        %2744 = vmatprep.subr.mxu0 0.0
        %2745 = vmatpush1.msra.mxu0 %v2717
        %2746 = vmatprep.subr.mxu0 0.0
        %2747 = vmatpush1.msra.mxu0 %v2716
        %2748 = vmatprep.subr.mxu0 0.0
        %2749 = vmatpush1.msra.mxu0 %v2715
        %2750 = vmatprep.subr.mxu0 0.0
        %2751 = vmatpush1.msra.mxu0 %v2714
        %2752 = vmatprep.subr.mxu0 0.0
        %2753 = vmatpush1.msra.mxu0 %v2713
        %2754 = vmatprep.subr.mxu0 0.0
        %2755 = vmatpush1.msra.mxu0 %v2712
        %2756 = vmatprep.subr.mxu0 0.0
        %2757 = vmatpush1.msra.mxu0 %v2711
        %2758 = vmatprep.subr.mxu0 0.0
        %2759 = vmatpush1.msra.mxu0 %v2710
        %2760 = vmatprep.subr.mxu0 0.0
        %2761 = vmatpush2.msra.mxu0 0.0
        %2762 = vmatprep.subr.mxu0 0.0
        %2763 = vmatpush2.msra.mxu0 0.0
        %2764 = vmatprep.subr.mxu0 0.0
        %2765 = vmatpush2.msra.mxu0 0.0
        %2766 = vmatprep.subr.mxu0 0.0
        %2767 = vmatpush2.msra.mxu0 0.0
        %2768 = vmatprep.subr.mxu0 0.0
        %2769 = vmatpush2.msra.mxu0 0.0
        %2770 = vmatprep.subr.mxu0 0.0
        %2771 = vmatpush2.msra.mxu0 0.0
        %2772 = vmatprep.subr.mxu0 0.0
        %2773 = vmatpush2.msra.mxu0 0.0
        %2774 = vmatprep.subr.mxu0 0.0
        %2775 = vmatpush2.msra.mxu0 0.0
        %2776 = vmatprep.subr.mxu0 0.0
        %2777 = vmatpush2.msra.mxu0 0.0
        %2778 = vmatprep.subr.mxu0 0.0
        %2779 = vmatpush2.msra.mxu0 0.0
        %2780 = vmatprep.subr.mxu0 0.0
        %2781 = vmatpush2.msra.mxu0 0.0
        %2782 = vmatprep.subr.mxu0 0.0
        %2783 = vmatpush2.msra.mxu0 0.0
        %2784 = vmatprep.subr.mxu0 0.0
        %2785 = vmatpush2.msra.mxu0 0.0
        %2786 = vmatprep.subr.mxu0 0.0
        %2787 = vmatpush2.msra.mxu0 0.0
        %2788 = vmatprep.subr.mxu0 0.0
        %2789 = vmatpush2.msra.mxu0 0.0
        %2790 = vmatprep.subr.mxu0 0.0
        %2791 = vmatpush2.msra.mxu0 0.0
        %2792 = vmatprep.mubr.f32.mxu0 0.0
        %2793 = vmatmul.mubr.f32.gmra.mxu0 %v2723
        %v2794 = vpop.f32.mrf.mxu0
        %v2795 = vadd.f32 %v2721, %v2794
        %v2796 = vpop.f32.mrf.mxu0
        %2797 = vdwg.mxu0
        %v2798 = vtanh.pop %v2795
        %vm2799 = vcmask 73728
        %v2800 = vsel %vm2799, %v2798, -inf
        %2801 = vmax.xlane.f32.xlu0 %v2800
        %v2802 = vpop.xlane.xlu0 %2801
        %v2803 = vsub.f32 %v2798, %v2802
        %v2804 = vmul.f32 %v2803, 1.442695
        %v2805 = vpow.pop %v2804
        %v2806 = vsel %vm2799, %v2805, 0.0
        %2807 = vadd.xlane.f32.xlu0 %v2806
        %v2808 = vpop.xlane.xlu0 %2807
        %v2809 = vrcp.pop %v2808
        %v2810 = vmul.f32 %v2805, %v2809
        %2811 = vst.msk [vmem:[%s486] sm:$0x1] %vm2799, %v2810
        %s2812 = sand.u32 %s357, 1
        %s2813 = scalar_lea.sflag [#allocation3], %s2812
        %s2814 = sand.u32 %s357, 1
        %s2815 = scalar_lea.vmem [#allocation2], %s2814
        // Predicated region
        $region81: #{lenet5_forward.1} parent=79 // pred_check
          %p2816 = pneg %p367
        $region82: #{lenet5_forward.1} parent=79 // pred_check_branch
          %2818 = sbr.rel (%p2816) target = $region84
        $region83: #{lenet5_forward.1} parent=79 // pred_region
          %s2820 = ssub.s32 16, 16
          %2821 = vsyncadd %s2813, %s2820
          %s2822 = smul.addr %s29, 16
          %s2823 = scalar_lea.hbm %s15, %s2822
          %s2825 = sshll.u32 %s2815, 4
          %s2826 = int_to_ptr.vmem [resolvable:$true] %s2825
          %2828 = dma.vmem_to_hbm [thread:$0]  %s2826, 16, %s2823, %s2813
        $region84: #{lenet5_forward.1} parent=79 // pred_fallthru
          _
      $region80: #{lenet5_forward.1} parent=5 // pred_fallthru
        _
      %p2829 = scmp.le.s32.totalorder 2, %s24
      // Predicated region
      $region85: #{lenet5_forward.1} parent=5 // pred_check
        %p2830 = pneg %p2829
      $region86: #{lenet5_forward.1} parent=5 // pred_check_branch
        %2832 = sbr.rel (%p2830) target = $region88
      $region87: #{lenet5_forward.1} parent=5 // pred_region
        %s2833 = ssub.s32 %s24, 2
        // Predicated region
        $region89: #{lenet5_forward.1} parent=87 // pred_check
          %p2834 = pneg %p373
        $region90: #{lenet5_forward.1} parent=87 // pred_check_branch
          %2836 = sbr.rel (%p2834) target = $region92
        $region91: #{lenet5_forward.1} parent=87 // pred_region
          %s2837 = sand.u32 %s358, 1
          %s2838 = scalar_lea.sflag [#allocation3], %s2837
          %s2839 = sand.u32 %s358, 1
          %s2840 = scalar_lea.vmem [#allocation2], %s2839
          %2841 = dma.done %s2838, 16
        $region92: #{lenet5_forward.1} parent=87 // pred_fallthru
          _
      $region88: #{lenet5_forward.1} parent=5 // pred_fallthru
        _
    $region6: #{lenet5_forward.1} parent=1 // loop_footer
      %s28 = sadd.s32 1, %s24
    $region7: #{lenet5_forward.1} parent=1 // loop_footer_branch
      %23 = sbr.rel target = $region3
    $region8: #{lenet5_forward.1} parent=1 // loop_exit
      _
    %2842 = vsyncpa [#allocation3], 1
    %s2843 = scalar_lea.sflag [#allocation3], 1
    %2844 = vsyncpa %s2843, 1

</llo_original>
